<compile_context>
chip_gen: v7x
topology: tpu7x:2x2x1
jax: 0.10.0
libtpu: 0.0.40
codegen_flags: <defaults>
</compile_context>

<pallas_src>
import jax
import jax.numpy as jnp
from jax.experimental import pallas as pl
from jax.experimental.pallas import tpu as pltpu


def _discriminator_kernel(x_ref, w1_ref, b1_ref, w2_ref, b2_ref,
                          w3_ref, b3_ref, out_ref):
    # Cast the streamed f32 input tile to bf16 in VMEM (hides under the MXU).
    x = x_ref[...].astype(jnp.bfloat16)

    # Layer 1: Linear(input_dim, 512) + ReLU  (bf16 operands, f32 accumulate)
    h1 = jnp.dot(x, w1_ref[...], preferred_element_type=jnp.float32)
    h1 = jnp.maximum(h1 + b1_ref[...], 0.0)

    # Layer 2: Linear(512, 256) + ReLU
    h2 = jnp.dot(h1.astype(jnp.bfloat16), w2_ref[...],
                 preferred_element_type=jnp.float32)
    h2 = jnp.maximum(h2 + b2_ref[...], 0.0)

    # Layer 3: Linear(256, 1) as VPU multiply + cross-lane reduction (f32),
    # then Sigmoid via EUP exp + approx reciprocal.
    logits = jnp.sum(h2 * w3_ref[...], axis=-1, keepdims=True) + b3_ref[...]
    e = jnp.exp(-logits)                                  # EUP
    out_ref[...] = pl.reciprocal(1.0 + e, approx=True).astype(out_ref.dtype)


def _pick_tm(batch, *, target=1024, min_tm=256):
    """Batch tile: multiple of 256 (MXU-friendly on v6e/v7x, also a multiple
    of 128 for v5e); keep >= 4 grid blocks when the batch allows so both v7x
    TensorCores stay busy and input prefetch has an i+1 block."""
    per4 = -(-batch // 4)                 # cdiv(batch, 4)
    per4 = -(-per4 // 256) * 256          # round up to a multiple of 256
    return max(min_tm, min(target, per4))


def discriminator_forward(x, params, *, tm=None):
    """x: [B, input_dim] float32; params: dict of transposed weights/biases."""
    B, input_dim = x.shape
    if tm is None:
        tm = _pick_tm(B)
    n_blocks = pl.cdiv(B, tm)             # ragged last block handled by Pallas

    # Resident operands: weights in bf16 for the MXU, biases / final layer f32.
    w1 = params["w1"].astype(jnp.bfloat16)                  # [in, 512]
    w2 = params["w2"].astype(jnp.bfloat16)                  # [512, 256]
    b1 = params["b1"].astype(jnp.float32).reshape(1, 512)
    b2 = params["b2"].astype(jnp.float32).reshape(1, 256)
    w3 = params["w3"].astype(jnp.float32).reshape(1, 256)   # [256,1] -> [1,256]
    b3 = params["b3"].astype(jnp.float32).reshape(1, 1)

    const = lambda i: (0, 0)   # resident operands: DMA'd once, stay in VMEM

    out = pl.pallas_call(
        _discriminator_kernel,
        out_shape=jax.ShapeDtypeStruct((B, 1), jnp.float32),
        grid=(n_blocks,),
        in_specs=[
            pl.BlockSpec((tm, input_dim), lambda i: (i, 0)),   # x tiles stream
            pl.BlockSpec((input_dim, 512), const),             # w1
            pl.BlockSpec((1, 512), const),                     # b1
            pl.BlockSpec((512, 256), const),                   # w2
            pl.BlockSpec((1, 256), const),                     # b2
            pl.BlockSpec((1, 256), const),                     # w3 (as row vec)
            pl.BlockSpec((1, 1), const),                       # b3
        ],
        out_specs=pl.BlockSpec((tm, 1), lambda i: (i, 0)),
        compiler_params=pltpu.CompilerParams(
            dimension_semantics=("parallel",),
            vmem_limit_bytes=40 * 1024 * 1024),
    )(x.astype(jnp.float32), w1, b1, w2, b2, w3, b3)

    return out


def init_params(key, input_dim=1024):
    """Deterministic synthetic init. Weights stored as [in, out] (already
    transposed relative to PyTorch's [out, in])."""
    k1, k2, k3, k4, k5, k6 = jax.random.split(key, 6)

    def u(k, shape, fan_in):
        bound = 1.0 / jnp.sqrt(fan_in)
        return jax.random.uniform(k, shape, jnp.float32, -bound, bound)

    return {
        "w1": u(k1, (input_dim, 512), input_dim),
        "b1": u(k2, (1, 512), input_dim),
        "w2": u(k3, (512, 256), 512),
        "b2": u(k4, (1, 256), 512),
        "w3": u(k5, (256, 1), 256),
        "b3": u(k6, (1, 1), 256),
    }


def _reference_forward(x, params):
    h1 = jax.nn.relu(x @ params["w1"] + params["b1"])
    h2 = jax.nn.relu(h1 @ params["w2"] + params["b2"])
    return jax.nn.sigmoid(h2 @ params["w3"] + params["b3"])


if __name__ == "__main__":
    key = jax.random.PRNGKey(0)
    kx, kp = jax.random.split(key)

    # batch not a multiple of TM to exercise the grid (2 tiles) + ragged tail.
    batch, input_dim = 260, 1024
    x = jax.random.normal(kx, (batch, input_dim), dtype=jnp.float32)
    params = init_params(kp, input_dim=input_dim)

    out = discriminator_forward(x, params)
    out = jax.block_until_ready(out)

    ref = _reference_forward(x, params)
    assert out.shape == (batch, 1)
    # bf16 matmul operands + approx reciprocal -> loosened tolerance vs f32 ref.
    assert jnp.allclose(out, ref, atol=2e-2, rtol=2e-2), (
        float(jnp.max(jnp.abs(out - ref))))

    print("KERNEL_OK")
</pallas_src>

<mosaic_0001>
module attributes {stable_mosaic.version = 11 : i64} {
  func.func @_discriminator_kernel(%arg0: i32, %arg1: memref<256x1024xf32, #tpu.memory_space<vmem>>, %arg2: memref<1024x512xbf16, #tpu.memory_space<vmem>>, %arg3: memref<1x512xf32, #tpu.memory_space<vmem>>, %arg4: memref<512x256xbf16, #tpu.memory_space<vmem>>, %arg5: memref<1x256xf32, #tpu.memory_space<vmem>>, %arg6: memref<1x256xf32, #tpu.memory_space<vmem>>, %arg7: memref<1x1xf32, #tpu.memory_space<vmem>>, %arg8: memref<256x1xf32, #tpu.memory_space<vmem>>) attributes {dimension_semantics = [#tpu.dimension_semantics<parallel>], iteration_bounds = array<i64: 2>, scalar_prefetch = 0 : i64, scratch_operands = 0 : i64, tpu.core_type = #tpu.core_type<tc>, window_params = [{transform_indices = @transform_0, window_bounds = array<i64: 256, 1024>}, {pipeline_mode = #tpu.pipeline_mode<synchronous>, transform_indices = @transform_1, window_bounds = array<i64: 1024, 512>}, {pipeline_mode = #tpu.pipeline_mode<synchronous>, transform_indices = @transform_2, window_bounds = array<i64: 1, 512>}, {pipeline_mode = #tpu.pipeline_mode<synchronous>, transform_indices = @transform_3, window_bounds = array<i64: 512, 256>}, {pipeline_mode = #tpu.pipeline_mode<synchronous>, transform_indices = @transform_4, window_bounds = array<i64: 1, 256>}, {pipeline_mode = #tpu.pipeline_mode<synchronous>, transform_indices = @transform_5, window_bounds = array<i64: 1, 256>}, {pipeline_mode = #tpu.pipeline_mode<synchronous>, transform_indices = @transform_6, window_bounds = array<i64: 1, 1>}, {transform_indices = @transform_7, window_bounds = array<i64: 256, 1>}]} {
    %c0 = arith.constant 0 : index
    %c0_0 = arith.constant 0 : index
    %0 = vector.load %arg1[%c0, %c0_0] : memref<256x1024xf32, #tpu.memory_space<vmem>>, vector<256x1024xf32>
    %1 = arith.truncf %0 : vector<256x1024xf32> to vector<256x1024xbf16>
    %c0_1 = arith.constant 0 : index
    %c0_2 = arith.constant 0 : index
    %2 = vector.load %arg2[%c0_1, %c0_2] : memref<1024x512xbf16, #tpu.memory_space<vmem>>, vector<1024x512xbf16>
    %cst = arith.constant dense<0.000000e+00> : vector<256x512xf32>
    %3 = tpu.matmul %1, %2, %cst {dimension_numbers = #tpu.dot_dimension_numbers<[1], [0], [0], [1], [0, 0, 1, 1], [], []>} : vector<256x1024xbf16>, vector<1024x512xbf16>, vector<256x512xf32> -> vector<256x512xf32>
    %c0_3 = arith.constant 0 : index
    %c0_4 = arith.constant 0 : index
    %4 = vector.load %arg3[%c0_3, %c0_4] : memref<1x512xf32, #tpu.memory_space<vmem>>, vector<1x512xf32>
    %5 = vector.broadcast %4 : vector<1x512xf32> to vector<256x512xf32>
    %6 = arith.addf %3, %5 : vector<256x512xf32>
    %cst_5 = arith.constant 0.000000e+00 : f32
    %7 = vector.broadcast %cst_5 : f32 to vector<256x512xf32>
    %8 = arith.maximumf %6, %7 : vector<256x512xf32>
    %9 = arith.truncf %8 : vector<256x512xf32> to vector<256x512xbf16>
    %c0_6 = arith.constant 0 : index
    %c0_7 = arith.constant 0 : index
    %10 = vector.load %arg4[%c0_6, %c0_7] : memref<512x256xbf16, #tpu.memory_space<vmem>>, vector<512x256xbf16>
    %cst_8 = arith.constant dense<0.000000e+00> : vector<256x256xf32>
    %11 = tpu.matmul %9, %10, %cst_8 {dimension_numbers = #tpu.dot_dimension_numbers<[1], [0], [0], [1], [0, 0, 1, 1], [], []>} : vector<256x512xbf16>, vector<512x256xbf16>, vector<256x256xf32> -> vector<256x256xf32>
    %c0_9 = arith.constant 0 : index
    %c0_10 = arith.constant 0 : index
    %12 = vector.load %arg5[%c0_9, %c0_10] : memref<1x256xf32, #tpu.memory_space<vmem>>, vector<1x256xf32>
    %13 = vector.broadcast %12 : vector<1x256xf32> to vector<256x256xf32>
    %14 = arith.addf %11, %13 : vector<256x256xf32>
    %cst_11 = arith.constant 0.000000e+00 : f32
    %15 = vector.broadcast %cst_11 : f32 to vector<256x256xf32>
    %16 = arith.maximumf %14, %15 : vector<256x256xf32>
    %c0_12 = arith.constant 0 : index
    %c0_13 = arith.constant 0 : index
    %17 = vector.load %arg6[%c0_12, %c0_13] : memref<1x256xf32, #tpu.memory_space<vmem>>, vector<1x256xf32>
    %18 = vector.broadcast %17 : vector<1x256xf32> to vector<256x256xf32>
    %19 = arith.mulf %16, %18 : vector<256x256xf32>
    %cst_14 = arith.constant dense<0.000000e+00> : vector<256xf32>
    %20 = vector.multi_reduction <add>, %19, %cst_14 [1] : vector<256x256xf32> to vector<256xf32>
    %21 = vector.shape_cast %20 : vector<256xf32> to vector<256x1xf32>
    %c0_15 = arith.constant 0 : index
    %c0_16 = arith.constant 0 : index
    %22 = vector.load %arg7[%c0_15, %c0_16] : memref<1x1xf32, #tpu.memory_space<vmem>>, vector<1x1xf32>
    %23 = vector.broadcast %22 : vector<1x1xf32> to vector<256x1xf32>
    %24 = arith.addf %21, %23 : vector<256x1xf32>
    %cst_17 = arith.constant 0.000000e+00 : f32
    %25 = vector.broadcast %cst_17 : f32 to vector<256x1xf32>
    %26 = arith.subf %25, %24 : vector<256x1xf32>
    %27 = math.exp %26 : vector<256x1xf32>
    %cst_18 = arith.constant 1.000000e+00 : f32
    %28 = vector.broadcast %cst_18 : f32 to vector<256x1xf32>
    %29 = arith.addf %28, %27 : vector<256x1xf32>
    %30 = tpu.reciprocal %29 {approx = true} : vector<256x1xf32> -> vector<256x1xf32>
    %c0_19 = arith.constant 0 : index
    %c0_20 = arith.constant 0 : index
    %31 = vector.load %arg8[%c0_19, %c0_20] : memref<256x1xf32, #tpu.memory_space<vmem>>, vector<256x1xf32>
    tpu.vector_store %arg8[%c0_19, %c0_20], %30 {strides = array<i32>} : memref<256x1xf32, #tpu.memory_space<vmem>>, vector<256x1xf32>,
    return
  }
  func.func @transform_0(%arg0: i32) -> (i32, i32) {
    %c0_i32 = arith.constant 0 : i32
    %c0_i32_0 = arith.constant 0 : i32
    return %arg0, %c0_i32 : i32, i32
  }
  func.func @transform_1(%arg0: i32) -> (i32, i32) {
    %c0_i32 = arith.constant 0 : i32
    %c0_i32_0 = arith.constant 0 : i32
    %c0_i32_1 = arith.constant 0 : i32
    return %c0_i32, %c0_i32_0 : i32, i32
  }
  func.func @transform_2(%arg0: i32) -> (i32, i32) {
    %c0_i32 = arith.constant 0 : i32
    %c0_i32_0 = arith.constant 0 : i32
    %c0_i32_1 = arith.constant 0 : i32
    return %c0_i32, %c0_i32_0 : i32, i32
  }
  func.func @transform_3(%arg0: i32) -> (i32, i32) {
    %c0_i32 = arith.constant 0 : i32
    %c0_i32_0 = arith.constant 0 : i32
    %c0_i32_1 = arith.constant 0 : i32
    return %c0_i32, %c0_i32_0 : i32, i32
  }
  func.func @transform_4(%arg0: i32) -> (i32, i32) {
    %c0_i32 = arith.constant 0 : i32
    %c0_i32_0 = arith.constant 0 : i32
    %c0_i32_1 = arith.constant 0 : i32
    return %c0_i32, %c0_i32_0 : i32, i32
  }
  func.func @transform_5(%arg0: i32) -> (i32, i32) {
    %c0_i32 = arith.constant 0 : i32
    %c0_i32_0 = arith.constant 0 : i32
    %c0_i32_1 = arith.constant 0 : i32
    return %c0_i32, %c0_i32_0 : i32, i32
  }
  func.func @transform_6(%arg0: i32) -> (i32, i32) {
    %c0_i32 = arith.constant 0 : i32
    %c0_i32_0 = arith.constant 0 : i32
    %c0_i32_1 = arith.constant 0 : i32
    return %c0_i32, %c0_i32_0 : i32, i32
  }
  func.func @transform_7(%arg0: i32) -> (i32, i32) {
    %c0_i32 = arith.constant 0 : i32
    %c0_i32_0 = arith.constant 0 : i32
    return %arg0, %c0_i32 : i32, i32
  }
}

</mosaic_0001>

<llo_original>
// kernel: tpu_custom_call.1
$region0: #{tpu_custom_call.1}
  #allocation0 [shape = 'u32[]', space=smem, size = 0x4, offset = 0x4, fixed_abs, tag = 'smem constant byte address 0x4 - core index']
  #allocation1 [shape = 'u32[144,128]{1,0:T(1,128)}', space=vmem, size = 0x12000, scoped, tag = 'internal scratch']
  #allocation2 [shape = 'f32[1,1]{1,0:T(1,128)S(1)}', space=vmem, size = 0x200, scoped, tag = 'scoped memory for tpu_custom_call.1']
  %s0 = inlined_call_operand.hbm [shape: f32[260,1024], index: 0, kind: input, shape index: {}]
  %s1 = inlined_call_operand.hbm [shape: bf16[1024,512], index: 1, kind: input, shape index: {}]
  %s2 = inlined_call_operand.hbm [shape: f32[1,512], index: 2, kind: input, shape index: {}]
  %s3 = inlined_call_operand.hbm [shape: bf16[512,256], index: 3, kind: input, shape index: {}]
  %s4 = inlined_call_operand.hbm [shape: f32[1,256], index: 4, kind: input, shape index: {}]
  %s5 = inlined_call_operand.hbm [shape: f32[1,256], index: 5, kind: input, shape index: {}]
  %s6 = inlined_call_operand.<no memory space> [shape: f32[1,1], index: 6, kind: input, shape index: {}]
  %s7 = inlined_call_operand.vmem [shape: f32[260,1], index: 7, kind: output, shape index: {}]
  %s8 = sld [smem:[#allocation0]]
  $region133: #{tpu_custom_call.1} parent=0
    _
  %s10 = ssub.s32 1, %s8
  %s11 = scalar_select 0, %s10, %s8
  %v12 = vstv %s6
  %13 = vst [vmem:[#allocation2] sm:$0x1] %v12
  $region1: #{tpu_custom_call.1} parent=0
    #allocation3 [shape = 'u8[2097152]{0}', space=vmem, size = 0x200000, scoped, tag = 'input window, operand 0']
    #allocation4 [shape = 's32[2]{0}', space=sflag, size = 0x8, scoped, tag = 'scoped memory for tpu_custom_call.1']
    #allocation5 [shape = 'u8[1048576]{0}', space=vmem, size = 0x100000, scoped, tag = 'input window, operand 1, single buffered']
    #allocation6 [shape = 's32[1]{0}', space=sflag, size = 0x4, scoped, tag = 'scoped memory for tpu_custom_call.1']
    #allocation7 [shape = 'u8[2048]{0}', space=vmem, size = 0x800, scoped, tag = 'input window, operand 2, single buffered']
    #allocation8 [shape = 'u8[262144]{0}', space=vmem, size = 0x40000, scoped, tag = 'input window, operand 3, single buffered']
    #allocation9 [shape = 's32[1]{0}', space=sflag, size = 0x4, scoped, tag = 'scoped memory for tpu_custom_call.1']
    #allocation10 [shape = 'u8[1024]{0}', space=vmem, size = 0x400, scoped, tag = 'input window, operand 4, single buffered']
    #allocation11 [shape = 'u8[1024]{0}', space=vmem, size = 0x400, scoped, tag = 'input window, operand 5, single buffered']
    #allocation12 [shape = 's32[1]{0}', space=sflag, size = 0x4, scoped, tag = 'scoped memory for tpu_custom_call.1']
    #allocation13 [shape = 'u8[262144]{0}', space=vmem, size = 0x40000, scoped, tag = 'output window, operand 0']
    %14 = vsyncpa [#allocation4], 0
    %s15 = scalar_lea.sflag [#allocation4], 1
    %16 = vsyncpa %s15, 0
    %17 = vsyncpa [#allocation6], 0
    %18 = vsyncpa [#allocation9], 0
    %19 = vsyncpa [#allocation12], 0
    loop: start=0, step=1, limit=4
    $region2: #{tpu_custom_call.1} parent=1 // loop_pre_header
      _
    $region3: #{tpu_custom_call.1} parent=1 // loop_header
      %s21 = sphi 0, %s25
      %p22 = scmp.ge.s32.totalorder %s21, 4
      %s31 = sphi 0, %s33
      %s34 = sphi 0, %s31
      %s35 = sphi 0, %s34
      %s51 = sphi 0, %s35
      %s55 = sphi 0, %s55
      %s57 = sphi 0, %s55
      %s58 = sphi 0, %s57
      %s72 = sphi 0, %s58
      %s76 = sphi 0, %s76
      %s78 = sphi 0, %s76
      %s79 = sphi 0, %s78
      %s93 = sphi 0, %s79
      %s97 = sphi 0, %s97
      %s99 = sphi 0, %s97
      %s100 = sphi 0, %s99
      %s114 = sphi 0, %s100
      %s118 = sphi 0, %s118
      %s120 = sphi 0, %s118
      %s121 = sphi 0, %s120
      %s135 = sphi 0, %s121
      %s139 = sphi 0, %s139
      %s141 = sphi 0, %s139
      %s142 = sphi 0, %s141
      %s156 = sphi 0, %s142
      %s160 = sphi 0, %s160
      %s162 = sphi 0, %s160
      %s163 = sphi 0, %s162
      %s177 = sphi 0, %s163
      %s183 = sphi 0, %s185
      %s186 = sphi 0, %s183
      %s187 = sphi 0, %s186
      %s203 = sphi 0, %s187
    $region4: #{tpu_custom_call.1} parent=1 // loop_header_branch
      %24 = sbr.rel (%p22) target = $region8
    $region5: #{tpu_custom_call.1} parent=1 // loop_body
      %s26 = ssub.s32 %s21, 1
      %s27 = ssub.s32 %s21, 2
      %s28 = sadd.s32 %s21, 1
      %s29 = ssub.s32 %s21, %s28
      %p30 = scmp.eq.s32.totalorder %s29, 0
      %s32 = sadd.s32 %s31, 1
      %s33 = scalar_select %p30, %s31, %s32
      %p36 = pneg %p30
      %p37 = scmp.eq.s32.totalorder %s21, 1
      %p38 = por %p36, %p37
      %p39 = scmp.ne.s32.totalorder %s31, %s34
      %p40 = scmp.eq.s32.totalorder %s21, 0
      %p41 = por %p39, %p40
      %p42 = scmp.ne.s32.totalorder %s31, %s34
      %p43 = scmp.eq.s32.totalorder %s26, 1
      %p44 = por %p42, %p43
      %p45 = scmp.ne.s32.totalorder %s34, %s35
      %p46 = scmp.eq.s32.totalorder %s26, 0
      %p47 = por %p45, %p46
      %p48 = scmp.ne.s32.totalorder %s34, %s35
      %p49 = scmp.eq.s32.totalorder %s27, 1
      %p50 = por %p48, %p49
      %p52 = scmp.ne.s32.totalorder %s35, %s51
      %p53 = scmp.eq.s32.totalorder %s27, 0
      %p54 = por %p52, %p53
      %s56 = sadd.s32 %s55, 1
      %p59 = scmp.eq.s32.totalorder %s21, 1
      %p60 = scmp.ne.s32.totalorder %s55, %s57
      %p61 = scmp.eq.s32.totalorder %s21, 0
      %p62 = por %p60, %p61
      %p63 = scmp.ne.s32.totalorder %s55, %s57
      %p64 = scmp.eq.s32.totalorder %s26, 1
      %p65 = por %p63, %p64
      %p66 = scmp.ne.s32.totalorder %s57, %s58
      %p67 = scmp.eq.s32.totalorder %s26, 0
      %p68 = por %p66, %p67
      %p69 = scmp.ne.s32.totalorder %s57, %s58
      %p70 = scmp.eq.s32.totalorder %s27, 1
      %p71 = por %p69, %p70
      %p73 = scmp.ne.s32.totalorder %s58, %s72
      %p74 = scmp.eq.s32.totalorder %s27, 0
      %p75 = por %p73, %p74
      %s77 = sadd.s32 %s76, 1
      %p80 = scmp.eq.s32.totalorder %s21, 1
      %p81 = scmp.ne.s32.totalorder %s76, %s78
      %p82 = scmp.eq.s32.totalorder %s21, 0
      %p83 = por %p81, %p82
      %p84 = scmp.ne.s32.totalorder %s76, %s78
      %p85 = scmp.eq.s32.totalorder %s26, 1
      %p86 = por %p84, %p85
      %p87 = scmp.ne.s32.totalorder %s78, %s79
      %p88 = scmp.eq.s32.totalorder %s26, 0
      %p89 = por %p87, %p88
      %p90 = scmp.ne.s32.totalorder %s78, %s79
      %p91 = scmp.eq.s32.totalorder %s27, 1
      %p92 = por %p90, %p91
      %p94 = scmp.ne.s32.totalorder %s79, %s93
      %p95 = scmp.eq.s32.totalorder %s27, 0
      %p96 = por %p94, %p95
      %s98 = sadd.s32 %s97, 1
      %p101 = scmp.eq.s32.totalorder %s21, 1
      %p102 = scmp.ne.s32.totalorder %s97, %s99
      %p103 = scmp.eq.s32.totalorder %s21, 0
      %p104 = por %p102, %p103
      %p105 = scmp.ne.s32.totalorder %s97, %s99
      %p106 = scmp.eq.s32.totalorder %s26, 1
      %p107 = por %p105, %p106
      %p108 = scmp.ne.s32.totalorder %s99, %s100
      %p109 = scmp.eq.s32.totalorder %s26, 0
      %p110 = por %p108, %p109
      %p111 = scmp.ne.s32.totalorder %s99, %s100
      %p112 = scmp.eq.s32.totalorder %s27, 1
      %p113 = por %p111, %p112
      %p115 = scmp.ne.s32.totalorder %s100, %s114
      %p116 = scmp.eq.s32.totalorder %s27, 0
      %p117 = por %p115, %p116
      %s119 = sadd.s32 %s118, 1
      %p122 = scmp.eq.s32.totalorder %s21, 1
      %p123 = scmp.ne.s32.totalorder %s118, %s120
      %p124 = scmp.eq.s32.totalorder %s21, 0
      %p125 = por %p123, %p124
      %p126 = scmp.ne.s32.totalorder %s118, %s120
      %p127 = scmp.eq.s32.totalorder %s26, 1
      %p128 = por %p126, %p127
      %p129 = scmp.ne.s32.totalorder %s120, %s121
      %p130 = scmp.eq.s32.totalorder %s26, 0
      %p131 = por %p129, %p130
      %p132 = scmp.ne.s32.totalorder %s120, %s121
      %p133 = scmp.eq.s32.totalorder %s27, 1
      %p134 = por %p132, %p133
      %p136 = scmp.ne.s32.totalorder %s121, %s135
      %p137 = scmp.eq.s32.totalorder %s27, 0
      %p138 = por %p136, %p137
      %s140 = sadd.s32 %s139, 1
      %p143 = scmp.eq.s32.totalorder %s21, 1
      %p144 = scmp.ne.s32.totalorder %s139, %s141
      %p145 = scmp.eq.s32.totalorder %s21, 0
      %p146 = por %p144, %p145
      %p147 = scmp.ne.s32.totalorder %s139, %s141
      %p148 = scmp.eq.s32.totalorder %s26, 1
      %p149 = por %p147, %p148
      %p150 = scmp.ne.s32.totalorder %s141, %s142
      %p151 = scmp.eq.s32.totalorder %s26, 0
      %p152 = por %p150, %p151
      %p153 = scmp.ne.s32.totalorder %s141, %s142
      %p154 = scmp.eq.s32.totalorder %s27, 1
      %p155 = por %p153, %p154
      %p157 = scmp.ne.s32.totalorder %s142, %s156
      %p158 = scmp.eq.s32.totalorder %s27, 0
      %p159 = por %p157, %p158
      %s161 = sadd.s32 %s160, 1
      %p164 = scmp.eq.s32.totalorder %s21, 1
      %p165 = scmp.ne.s32.totalorder %s160, %s162
      %p166 = scmp.eq.s32.totalorder %s21, 0
      %p167 = por %p165, %p166
      %p168 = scmp.ne.s32.totalorder %s160, %s162
      %p169 = scmp.eq.s32.totalorder %s26, 1
      %p170 = por %p168, %p169
      %p171 = scmp.ne.s32.totalorder %s162, %s163
      %p172 = scmp.eq.s32.totalorder %s26, 0
      %p173 = por %p171, %p172
      %p174 = scmp.ne.s32.totalorder %s162, %s163
      %p175 = scmp.eq.s32.totalorder %s27, 1
      %p176 = por %p174, %p175
      %p178 = scmp.ne.s32.totalorder %s163, %s177
      %p179 = scmp.eq.s32.totalorder %s27, 0
      %p180 = por %p178, %p179
      %s181 = ssub.s32 %s21, %s28
      %p182 = scmp.eq.s32.totalorder %s181, 0
      %s184 = sadd.s32 %s183, 1
      %s185 = scalar_select %p182, %s183, %s184
      %p188 = pneg %p182
      %p189 = scmp.eq.s32.totalorder %s21, 1
      %p190 = por %p188, %p189
      %p191 = scmp.ne.s32.totalorder %s183, %s186
      %p192 = scmp.eq.s32.totalorder %s21, 0
      %p193 = por %p191, %p192
      %p194 = scmp.ne.s32.totalorder %s183, %s186
      %p195 = scmp.eq.s32.totalorder %s26, 1
      %p196 = por %p194, %p195
      %p197 = scmp.ne.s32.totalorder %s186, %s187
      %p198 = scmp.eq.s32.totalorder %s26, 0
      %p199 = por %p197, %p198
      %p200 = scmp.ne.s32.totalorder %s186, %s187
      %p201 = scmp.eq.s32.totalorder %s27, 1
      %p202 = por %p200, %p201
      %p204 = scmp.ne.s32.totalorder %s187, %s203
      %p205 = scmp.eq.s32.totalorder %s27, 0
      %p206 = por %p204, %p205
      %p207 = scmp.le.s32.totalorder 1, %s21
      %p208 = scmp.lt.s32.totalorder %s21, 3
      %p209 = pnand %p207, %p208
      %p210 = pneg %p209
      // Predicated region
      $region9: #{tpu_custom_call.1} parent=5 // pred_check
        _
      $region10: #{tpu_custom_call.1} parent=5 // pred_check_branch
        %212 = sbr.rel (%p209) target = $region12
      $region11: #{tpu_custom_call.1} parent=5 // pred_region
        %s213 = ssub.s32 %s21, 1
        // Predicated region
        $region13: #{tpu_custom_call.1} parent=11 // pred_check
          %p214 = pneg %p68
        $region14: #{tpu_custom_call.1} parent=11 // pred_check_branch
          %216 = sbr.rel (%p214) target = $region16
        $region15: #{tpu_custom_call.1} parent=11 // pred_region
          %s218 = ssub.s32 32768, 32768
          %219 = vsyncadd [#allocation6], %s218
          %s220 = sshll.u32 [#allocation5], 4
          %s221 = int_to_ptr.vmem [resolvable:$true] %s220
          %226 = dma.hbm_to_vmem [thread:$0]  %s1, 32768, %s221, [#allocation6], 256, 256, 16
        $region16: #{tpu_custom_call.1} parent=11 // pred_fallthru
          _
        // Predicated region
        $region17: #{tpu_custom_call.1} parent=11 // pred_check
          %p227 = pneg %p89
        $region18: #{tpu_custom_call.1} parent=11 // pred_check_branch
          %229 = sbr.rel (%p227) target = $region20
        $region19: #{tpu_custom_call.1} parent=11 // pred_region
          %s231 = ssub.s32 64, 64
          %232 = vsyncadd [#allocation6], %s231
          %s234 = sshll.u32 [#allocation7], 4
          %s235 = int_to_ptr.vmem [resolvable:$true] %s234
          %237 = dma.hbm_to_vmem [thread:$0]  %s2, 64, %s235, [#allocation6]
        $region20: #{tpu_custom_call.1} parent=11 // pred_fallthru
          _
        // Predicated region
        $region21: #{tpu_custom_call.1} parent=11 // pred_check
          %p238 = pneg %p110
        $region22: #{tpu_custom_call.1} parent=11 // pred_check_branch
          %240 = sbr.rel (%p238) target = $region24
        $region23: #{tpu_custom_call.1} parent=11 // pred_region
          %s242 = ssub.s32 8192, 8192
          %243 = vsyncadd [#allocation9], %s242
          %s244 = sshll.u32 [#allocation8], 4
          %s245 = int_to_ptr.vmem [resolvable:$true] %s244
          %250 = dma.hbm_to_vmem [thread:$0]  %s3, 8192, %s245, [#allocation9], 128, 128, 8
        $region24: #{tpu_custom_call.1} parent=11 // pred_fallthru
          _
        // Predicated region
        $region25: #{tpu_custom_call.1} parent=11 // pred_check
          %p251 = pneg %p131
        $region26: #{tpu_custom_call.1} parent=11 // pred_check_branch
          %253 = sbr.rel (%p251) target = $region28
        $region27: #{tpu_custom_call.1} parent=11 // pred_region
          %s255 = ssub.s32 32, 32
          %256 = vsyncadd [#allocation9], %s255
          %s258 = sshll.u32 [#allocation10], 4
          %s259 = int_to_ptr.vmem [resolvable:$true] %s258
          %261 = dma.hbm_to_vmem [thread:$0]  %s4, 32, %s259, [#allocation9]
        $region28: #{tpu_custom_call.1} parent=11 // pred_fallthru
          _
        // Predicated region
        $region29: #{tpu_custom_call.1} parent=11 // pred_check
          %p262 = pneg %p152
        $region30: #{tpu_custom_call.1} parent=11 // pred_check_branch
          %264 = sbr.rel (%p262) target = $region32
        $region31: #{tpu_custom_call.1} parent=11 // pred_region
          %s266 = ssub.s32 32, 32
          %267 = vsyncadd [#allocation12], %s266
          %s269 = sshll.u32 [#allocation11], 4
          %s270 = int_to_ptr.vmem [resolvable:$true] %s269
          %272 = dma.hbm_to_vmem [thread:$0]  %s5, 32, %s270, [#allocation12]
        $region32: #{tpu_custom_call.1} parent=11 // pred_fallthru
          _
        // Predicated region
        $region33: #{tpu_custom_call.1} parent=11 // pred_check
          %p273 = pneg %p173
        $region34: #{tpu_custom_call.1} parent=11 // pred_check_branch
          %275 = sbr.rel (%p273) target = $region36
        $region35: #{tpu_custom_call.1} parent=11 // pred_region
          _
        $region36: #{tpu_custom_call.1} parent=11 // pred_fallthru
          _
      $region12: #{tpu_custom_call.1} parent=5 // pred_fallthru
        _
      %p276 = scmp.lt.s32.totalorder %s21, 2
      // Predicated region
      $region37: #{tpu_custom_call.1} parent=5 // pred_check
        %p277 = pneg %p276
      $region38: #{tpu_custom_call.1} parent=5 // pred_check_branch
        %279 = sbr.rel (%p277) target = $region40
      $region39: #{tpu_custom_call.1} parent=5 // pred_region
        // Predicated region
        $region41: #{tpu_custom_call.1} parent=39 // pred_check
          %p280 = pneg %p41
        $region42: #{tpu_custom_call.1} parent=39 // pred_check_branch
          %282 = sbr.rel (%p280) target = $region44
        $region43: #{tpu_custom_call.1} parent=39 // pred_region
          %s283 = sand.u32 %s31, 1
          %s284 = scalar_lea.sflag [#allocation4], %s283
          %s285 = sand.u32 %s31, 1
          %s286 = smul.addr %s285, 2048
          %s287 = scalar_lea.vmem [#allocation3], %s286
          %s288 = smul.u32 32, %s21
          %s289 = ssub.s32 33, %s288
          %p290 = scmp.lt.s32.totalorder %s289, 32
          %s291 = scalar_select %p290, %s289, 32
          %s292 = smul.u32 128, %s291
          %s293 = smul.u32 %s292, 8
          %s295 = ssub.s32 32768, %s293
          %296 = vsyncadd %s284, %s295
          %p297 = scmp.ne.s32.totalorder 0, %s293
          %s298 = smul.addr %s288, 8
          %s299 = smul.addr %s298, 128
          %s300 = scalar_lea.hbm %s0, %s299
          %s301 = smul.u32 64, %s291
          %s302 = sshll.u32 %s287, 4
          %s303 = int_to_ptr.vmem [resolvable:$true] %s302
          %s304 = sshll.u32 %s301, 4
          %308 = dma.hbm_to_vmem [thread:$0]  (%p297), %s300, %s304, %s303, %s284, 1024, 1024, 64
        $region44: #{tpu_custom_call.1} parent=39 // pred_fallthru
          _
      $region40: #{tpu_custom_call.1} parent=5 // pred_fallthru
        _
      %p309 = scmp.le.s32.totalorder 1, %s21
      %p310 = scmp.lt.s32.totalorder %s21, 3
      %p311 = pnand %p309, %p310
      %p312 = pneg %p311
      // Predicated region
      $region45: #{tpu_custom_call.1} parent=5 // pred_check
        _
      $region46: #{tpu_custom_call.1} parent=5 // pred_check_branch
        %314 = sbr.rel (%p311) target = $region48
      $region47: #{tpu_custom_call.1} parent=5 // pred_region
        %s315 = ssub.s32 %s21, 1
        %s316 = sand.u32 %s34, 1
        %s317 = scalar_lea.sflag [#allocation4], %s316
        %s318 = sand.u32 %s34, 1
        %s319 = smul.addr %s318, 2048
        %s320 = scalar_lea.vmem [#allocation3], %s319
        // Predicated region
        $region49: #{tpu_custom_call.1} parent=47 // pred_check
          %p321 = pneg %p47
        $region50: #{tpu_custom_call.1} parent=47 // pred_check_branch
          %323 = sbr.rel (%p321) target = $region52
        $region51: #{tpu_custom_call.1} parent=47 // pred_region
          %324 = dma.done %s317, 32768
        $region52: #{tpu_custom_call.1} parent=47 // pred_fallthru
          _
        // Predicated region
        $region53: #{tpu_custom_call.1} parent=47 // pred_check
          %p325 = pneg %p68
        $region54: #{tpu_custom_call.1} parent=47 // pred_check_branch
          %327 = sbr.rel (%p325) target = $region56
        $region55: #{tpu_custom_call.1} parent=47 // pred_region
          %328 = dma.done [#allocation6], 32768
        $region56: #{tpu_custom_call.1} parent=47 // pred_fallthru
          _
        // Predicated region
        $region57: #{tpu_custom_call.1} parent=47 // pred_check
          %p329 = pneg %p89
        $region58: #{tpu_custom_call.1} parent=47 // pred_check_branch
          %331 = sbr.rel (%p329) target = $region60
        $region59: #{tpu_custom_call.1} parent=47 // pred_region
          %332 = dma.done [#allocation6], 64
        $region60: #{tpu_custom_call.1} parent=47 // pred_fallthru
          _
        // Predicated region
        $region61: #{tpu_custom_call.1} parent=47 // pred_check
          %p333 = pneg %p110
        $region62: #{tpu_custom_call.1} parent=47 // pred_check_branch
          %335 = sbr.rel (%p333) target = $region64
        $region63: #{tpu_custom_call.1} parent=47 // pred_region
          %336 = dma.done [#allocation9], 8192
        $region64: #{tpu_custom_call.1} parent=47 // pred_fallthru
          _
        // Predicated region
        $region65: #{tpu_custom_call.1} parent=47 // pred_check
          %p337 = pneg %p131
        $region66: #{tpu_custom_call.1} parent=47 // pred_check_branch
          %339 = sbr.rel (%p337) target = $region68
        $region67: #{tpu_custom_call.1} parent=47 // pred_region
          %340 = dma.done [#allocation9], 32
        $region68: #{tpu_custom_call.1} parent=47 // pred_fallthru
          _
        // Predicated region
        $region69: #{tpu_custom_call.1} parent=47 // pred_check
          %p341 = pneg %p152
        $region70: #{tpu_custom_call.1} parent=47 // pred_check_branch
          %343 = sbr.rel (%p341) target = $region72
        $region71: #{tpu_custom_call.1} parent=47 // pred_region
          %344 = dma.done [#allocation12], 32
        $region72: #{tpu_custom_call.1} parent=47 // pred_fallthru
          _
        %s345 = sand.u32 %s34, 1
        %s346 = scalar_lea.sflag [#allocation4], %s345
        %s347 = sand.u32 %s34, 1
        %s348 = smul.addr %s347, 2048
        %s349 = scalar_lea.vmem [#allocation3], %s348
        %p350 = pneg %p47
        %p351 = pneg %p44
        %p352 = pneg %p68
        %p353 = pneg %p65
        %p354 = pneg %p89
        %p355 = pneg %p86
        %p356 = pneg %p110
        %p357 = pneg %p107
        %p358 = pneg %p131
        %p359 = pneg %p128
        %p360 = pneg %p152
        %p361 = pneg %p149
        %p362 = pneg %p173
        %p363 = pneg %p170
        %p364 = pneg %p199
        %p365 = pneg %p196
        %s366 = sand.u32 %s186, 1
        %s367 = sand.u32 %s186, 1
        %s368 = smul.addr %s367, 256
        %s369 = scalar_lea.vmem [#allocation13], %s368
        %s370 = smul.u32 32, %s26
        %s371 = ssub.s32 33, %s370
        %p372 = scmp.lt.s32.totalorder %s371, 32
        %s373 = scalar_select %p372, %s371, 32
        %s374 = smul.u32 128, %s373
        %s375 = smul.u32 %s374, 8
        %s376 = smul.u32 32, %s26
        %s377 = ssub.s32 33, %s376
        %p378 = scmp.lt.s32.totalorder %s377, 32
        %s379 = scalar_select %p378, %s377, 32
        %s380 = smul.u32 128, %s379
        %v381 = vld [vmem:[%s320] sm:$0xff]
        %v382 = vld [vmem:[%s320 + $0x8] sm:$0xff]
        %v383 = vld [vmem:[%s320 + $0x10] sm:$0xff]
        %v384 = vld [vmem:[%s320 + $0x18] sm:$0xff]
        %v385 = vld [vmem:[%s320 + $0x20] sm:$0xff]
        %v386 = vld [vmem:[%s320 + $0x28] sm:$0xff]
        %v387 = vld [vmem:[%s320 + $0x30] sm:$0xff]
        %v388 = vld [vmem:[%s320 + $0x38] sm:$0xff]
        %v389 = vld [vmem:[%s320 + $0x40] sm:$0xff]
        %v390 = vld [vmem:[%s320 + $0x48] sm:$0xff]
        %v391 = vld [vmem:[%s320 + $0x50] sm:$0xff]
        %v392 = vld [vmem:[%s320 + $0x58] sm:$0xff]
        %v393 = vld [vmem:[%s320 + $0x60] sm:$0xff]
        %v394 = vld [vmem:[%s320 + $0x68] sm:$0xff]
        %v395 = vld [vmem:[%s320 + $0x70] sm:$0xff]
        %v396 = vld [vmem:[%s320 + $0x78] sm:$0xff]
        %v397 = vld [vmem:[%s320 + $0x80] sm:$0xff]
        %v398 = vld [vmem:[%s320 + $0x88] sm:$0xff]
        %v399 = vld [vmem:[%s320 + $0x90] sm:$0xff]
        %v400 = vld [vmem:[%s320 + $0x98] sm:$0xff]
        %v401 = vld [vmem:[%s320 + $0xa0] sm:$0xff]
        %v402 = vld [vmem:[%s320 + $0xa8] sm:$0xff]
        %v403 = vld [vmem:[%s320 + $0xb0] sm:$0xff]
        %v404 = vld [vmem:[%s320 + $0xb8] sm:$0xff]
        %v405 = vld [vmem:[%s320 + $0xc0] sm:$0xff]
        %v406 = vld [vmem:[%s320 + $0xc8] sm:$0xff]
        %v407 = vld [vmem:[%s320 + $0xd0] sm:$0xff]
        %v408 = vld [vmem:[%s320 + $0xd8] sm:$0xff]
        %v409 = vld [vmem:[%s320 + $0xe0] sm:$0xff]
        %v410 = vld [vmem:[%s320 + $0xe8] sm:$0xff]
        %v411 = vld [vmem:[%s320 + $0xf0] sm:$0xff]
        %v412 = vld [vmem:[%s320 + $0xf8] sm:$0xff]
        %v413 = vld [vmem:[%s320 + $0x100] sm:$0xff]
        %v414 = vld [vmem:[%s320 + $0x108] sm:$0xff]
        %v415 = vld [vmem:[%s320 + $0x110] sm:$0xff]
        %v416 = vld [vmem:[%s320 + $0x118] sm:$0xff]
        %v417 = vld [vmem:[%s320 + $0x120] sm:$0xff]
        %v418 = vld [vmem:[%s320 + $0x128] sm:$0xff]
        %v419 = vld [vmem:[%s320 + $0x130] sm:$0xff]
        %v420 = vld [vmem:[%s320 + $0x138] sm:$0xff]
        %v421 = vld [vmem:[%s320 + $0x140] sm:$0xff]
        %v422 = vld [vmem:[%s320 + $0x148] sm:$0xff]
        %v423 = vld [vmem:[%s320 + $0x150] sm:$0xff]
        %v424 = vld [vmem:[%s320 + $0x158] sm:$0xff]
        %v425 = vld [vmem:[%s320 + $0x160] sm:$0xff]
        %v426 = vld [vmem:[%s320 + $0x168] sm:$0xff]
        %v427 = vld [vmem:[%s320 + $0x170] sm:$0xff]
        %v428 = vld [vmem:[%s320 + $0x178] sm:$0xff]
        %v429 = vld [vmem:[%s320 + $0x180] sm:$0xff]
        %v430 = vld [vmem:[%s320 + $0x188] sm:$0xff]
        %v431 = vld [vmem:[%s320 + $0x190] sm:$0xff]
        %v432 = vld [vmem:[%s320 + $0x198] sm:$0xff]
        %v433 = vld [vmem:[%s320 + $0x1a0] sm:$0xff]
        %v434 = vld [vmem:[%s320 + $0x1a8] sm:$0xff]
        %v435 = vld [vmem:[%s320 + $0x1b0] sm:$0xff]
        %v436 = vld [vmem:[%s320 + $0x1b8] sm:$0xff]
        %v437 = vld [vmem:[%s320 + $0x1c0] sm:$0xff]
        %v438 = vld [vmem:[%s320 + $0x1c8] sm:$0xff]
        %v439 = vld [vmem:[%s320 + $0x1d0] sm:$0xff]
        %v440 = vld [vmem:[%s320 + $0x1d8] sm:$0xff]
        %v441 = vld [vmem:[%s320 + $0x1e0] sm:$0xff]
        %v442 = vld [vmem:[%s320 + $0x1e8] sm:$0xff]
        %v443 = vld [vmem:[%s320 + $0x1f0] sm:$0xff]
        %v444 = vld [vmem:[%s320 + $0x1f8] sm:$0xff]
        %v445 = vld [vmem:[%s320 + $0x200] sm:$0xff]
        %v446 = vld [vmem:[%s320 + $0x208] sm:$0xff]
        %v447 = vld [vmem:[%s320 + $0x210] sm:$0xff]
        %v448 = vld [vmem:[%s320 + $0x218] sm:$0xff]
        %v449 = vld [vmem:[%s320 + $0x220] sm:$0xff]
        %v450 = vld [vmem:[%s320 + $0x228] sm:$0xff]
        %v451 = vld [vmem:[%s320 + $0x230] sm:$0xff]
        %v452 = vld [vmem:[%s320 + $0x238] sm:$0xff]
        %v453 = vld [vmem:[%s320 + $0x240] sm:$0xff]
        %v454 = vld [vmem:[%s320 + $0x248] sm:$0xff]
        %v455 = vld [vmem:[%s320 + $0x250] sm:$0xff]
        %v456 = vld [vmem:[%s320 + $0x258] sm:$0xff]
        %v457 = vld [vmem:[%s320 + $0x260] sm:$0xff]
        %v458 = vld [vmem:[%s320 + $0x268] sm:$0xff]
        %v459 = vld [vmem:[%s320 + $0x270] sm:$0xff]
        %v460 = vld [vmem:[%s320 + $0x278] sm:$0xff]
        %v461 = vld [vmem:[%s320 + $0x280] sm:$0xff]
        %v462 = vld [vmem:[%s320 + $0x288] sm:$0xff]
        %v463 = vld [vmem:[%s320 + $0x290] sm:$0xff]
        %v464 = vld [vmem:[%s320 + $0x298] sm:$0xff]
        %v465 = vld [vmem:[%s320 + $0x2a0] sm:$0xff]
        %v466 = vld [vmem:[%s320 + $0x2a8] sm:$0xff]
        %v467 = vld [vmem:[%s320 + $0x2b0] sm:$0xff]
        %v468 = vld [vmem:[%s320 + $0x2b8] sm:$0xff]
        %v469 = vld [vmem:[%s320 + $0x2c0] sm:$0xff]
        %v470 = vld [vmem:[%s320 + $0x2c8] sm:$0xff]
        %v471 = vld [vmem:[%s320 + $0x2d0] sm:$0xff]
        %v472 = vld [vmem:[%s320 + $0x2d8] sm:$0xff]
        %v473 = vld [vmem:[%s320 + $0x2e0] sm:$0xff]
        %v474 = vld [vmem:[%s320 + $0x2e8] sm:$0xff]
        %v475 = vld [vmem:[%s320 + $0x2f0] sm:$0xff]
        %v476 = vld [vmem:[%s320 + $0x2f8] sm:$0xff]
        %v477 = vld [vmem:[%s320 + $0x300] sm:$0xff]
        %v478 = vld [vmem:[%s320 + $0x308] sm:$0xff]
        %v479 = vld [vmem:[%s320 + $0x310] sm:$0xff]
        %v480 = vld [vmem:[%s320 + $0x318] sm:$0xff]
        %v481 = vld [vmem:[%s320 + $0x320] sm:$0xff]
        %v482 = vld [vmem:[%s320 + $0x328] sm:$0xff]
        %v483 = vld [vmem:[%s320 + $0x330] sm:$0xff]
        %v484 = vld [vmem:[%s320 + $0x338] sm:$0xff]
        %v485 = vld [vmem:[%s320 + $0x340] sm:$0xff]
        %v486 = vld [vmem:[%s320 + $0x348] sm:$0xff]
        %v487 = vld [vmem:[%s320 + $0x350] sm:$0xff]
        %v488 = vld [vmem:[%s320 + $0x358] sm:$0xff]
        %v489 = vld [vmem:[%s320 + $0x360] sm:$0xff]
        %v490 = vld [vmem:[%s320 + $0x368] sm:$0xff]
        %v491 = vld [vmem:[%s320 + $0x370] sm:$0xff]
        %v492 = vld [vmem:[%s320 + $0x378] sm:$0xff]
        %v493 = vld [vmem:[%s320 + $0x380] sm:$0xff]
        %v494 = vld [vmem:[%s320 + $0x388] sm:$0xff]
        %v495 = vld [vmem:[%s320 + $0x390] sm:$0xff]
        %v496 = vld [vmem:[%s320 + $0x398] sm:$0xff]
        %v497 = vld [vmem:[%s320 + $0x3a0] sm:$0xff]
        %v498 = vld [vmem:[%s320 + $0x3a8] sm:$0xff]
        %v499 = vld [vmem:[%s320 + $0x3b0] sm:$0xff]
        %v500 = vld [vmem:[%s320 + $0x3b8] sm:$0xff]
        %v501 = vld [vmem:[%s320 + $0x3c0] sm:$0xff]
        %v502 = vld [vmem:[%s320 + $0x3c8] sm:$0xff]
        %v503 = vld [vmem:[%s320 + $0x3d0] sm:$0xff]
        %v504 = vld [vmem:[%s320 + $0x3d8] sm:$0xff]
        %v505 = vld [vmem:[%s320 + $0x3e0] sm:$0xff]
        %v506 = vld [vmem:[%s320 + $0x3e8] sm:$0xff]
        %v507 = vld [vmem:[%s320 + $0x3f0] sm:$0xff]
        %v508 = vld [vmem:[%s320 + $0x3f8] sm:$0xff]
        %v509 = vld [vmem:[%s320 + $0x400] sm:$0xff]
        %v510 = vld [vmem:[%s320 + $0x408] sm:$0xff]
        %v511 = vld [vmem:[%s320 + $0x410] sm:$0xff]
        %v512 = vld [vmem:[%s320 + $0x418] sm:$0xff]
        %v513 = vld [vmem:[%s320 + $0x420] sm:$0xff]
        %v514 = vld [vmem:[%s320 + $0x428] sm:$0xff]
        %v515 = vld [vmem:[%s320 + $0x430] sm:$0xff]
        %v516 = vld [vmem:[%s320 + $0x438] sm:$0xff]
        %v517 = vld [vmem:[%s320 + $0x440] sm:$0xff]
        %v518 = vld [vmem:[%s320 + $0x448] sm:$0xff]
        %v519 = vld [vmem:[%s320 + $0x450] sm:$0xff]
        %v520 = vld [vmem:[%s320 + $0x458] sm:$0xff]
        %v521 = vld [vmem:[%s320 + $0x460] sm:$0xff]
        %v522 = vld [vmem:[%s320 + $0x468] sm:$0xff]
        %v523 = vld [vmem:[%s320 + $0x470] sm:$0xff]
        %v524 = vld [vmem:[%s320 + $0x478] sm:$0xff]
        %v525 = vld [vmem:[%s320 + $0x480] sm:$0xff]
        %v526 = vld [vmem:[%s320 + $0x488] sm:$0xff]
        %v527 = vld [vmem:[%s320 + $0x490] sm:$0xff]
        %v528 = vld [vmem:[%s320 + $0x498] sm:$0xff]
        %v529 = vld [vmem:[%s320 + $0x4a0] sm:$0xff]
        %v530 = vld [vmem:[%s320 + $0x4a8] sm:$0xff]
        %v531 = vld [vmem:[%s320 + $0x4b0] sm:$0xff]
        %v532 = vld [vmem:[%s320 + $0x4b8] sm:$0xff]
        %v533 = vld [vmem:[%s320 + $0x4c0] sm:$0xff]
        %v534 = vld [vmem:[%s320 + $0x4c8] sm:$0xff]
        %v535 = vld [vmem:[%s320 + $0x4d0] sm:$0xff]
        %v536 = vld [vmem:[%s320 + $0x4d8] sm:$0xff]
        %v537 = vld [vmem:[%s320 + $0x4e0] sm:$0xff]
        %v538 = vld [vmem:[%s320 + $0x4e8] sm:$0xff]
        %v539 = vld [vmem:[%s320 + $0x4f0] sm:$0xff]
        %v540 = vld [vmem:[%s320 + $0x4f8] sm:$0xff]
        %v541 = vld [vmem:[%s320 + $0x500] sm:$0xff]
        %v542 = vld [vmem:[%s320 + $0x508] sm:$0xff]
        %v543 = vld [vmem:[%s320 + $0x510] sm:$0xff]
        %v544 = vld [vmem:[%s320 + $0x518] sm:$0xff]
        %v545 = vld [vmem:[%s320 + $0x520] sm:$0xff]
        %v546 = vld [vmem:[%s320 + $0x528] sm:$0xff]
        %v547 = vld [vmem:[%s320 + $0x530] sm:$0xff]
        %v548 = vld [vmem:[%s320 + $0x538] sm:$0xff]
        %v549 = vld [vmem:[%s320 + $0x540] sm:$0xff]
        %v550 = vld [vmem:[%s320 + $0x548] sm:$0xff]
        %v551 = vld [vmem:[%s320 + $0x550] sm:$0xff]
        %v552 = vld [vmem:[%s320 + $0x558] sm:$0xff]
        %v553 = vld [vmem:[%s320 + $0x560] sm:$0xff]
        %v554 = vld [vmem:[%s320 + $0x568] sm:$0xff]
        %v555 = vld [vmem:[%s320 + $0x570] sm:$0xff]
        %v556 = vld [vmem:[%s320 + $0x578] sm:$0xff]
        %v557 = vld [vmem:[%s320 + $0x580] sm:$0xff]
        %v558 = vld [vmem:[%s320 + $0x588] sm:$0xff]
        %v559 = vld [vmem:[%s320 + $0x590] sm:$0xff]
        %v560 = vld [vmem:[%s320 + $0x598] sm:$0xff]
        %v561 = vld [vmem:[%s320 + $0x5a0] sm:$0xff]
        %v562 = vld [vmem:[%s320 + $0x5a8] sm:$0xff]
        %v563 = vld [vmem:[%s320 + $0x5b0] sm:$0xff]
        %v564 = vld [vmem:[%s320 + $0x5b8] sm:$0xff]
        %v565 = vld [vmem:[%s320 + $0x5c0] sm:$0xff]
        %v566 = vld [vmem:[%s320 + $0x5c8] sm:$0xff]
        %v567 = vld [vmem:[%s320 + $0x5d0] sm:$0xff]
        %v568 = vld [vmem:[%s320 + $0x5d8] sm:$0xff]
        %v569 = vld [vmem:[%s320 + $0x5e0] sm:$0xff]
        %v570 = vld [vmem:[%s320 + $0x5e8] sm:$0xff]
        %v571 = vld [vmem:[%s320 + $0x5f0] sm:$0xff]
        %v572 = vld [vmem:[%s320 + $0x5f8] sm:$0xff]
        %v573 = vld [vmem:[%s320 + $0x600] sm:$0xff]
        %v574 = vld [vmem:[%s320 + $0x608] sm:$0xff]
        %v575 = vld [vmem:[%s320 + $0x610] sm:$0xff]
        %v576 = vld [vmem:[%s320 + $0x618] sm:$0xff]
        %v577 = vld [vmem:[%s320 + $0x620] sm:$0xff]
        %v578 = vld [vmem:[%s320 + $0x628] sm:$0xff]
        %v579 = vld [vmem:[%s320 + $0x630] sm:$0xff]
        %v580 = vld [vmem:[%s320 + $0x638] sm:$0xff]
        %v581 = vld [vmem:[%s320 + $0x640] sm:$0xff]
        %v582 = vld [vmem:[%s320 + $0x648] sm:$0xff]
        %v583 = vld [vmem:[%s320 + $0x650] sm:$0xff]
        %v584 = vld [vmem:[%s320 + $0x658] sm:$0xff]
        %v585 = vld [vmem:[%s320 + $0x660] sm:$0xff]
        %v586 = vld [vmem:[%s320 + $0x668] sm:$0xff]
        %v587 = vld [vmem:[%s320 + $0x670] sm:$0xff]
        %v588 = vld [vmem:[%s320 + $0x678] sm:$0xff]
        %v589 = vld [vmem:[%s320 + $0x680] sm:$0xff]
        %v590 = vld [vmem:[%s320 + $0x688] sm:$0xff]
        %v591 = vld [vmem:[%s320 + $0x690] sm:$0xff]
        %v592 = vld [vmem:[%s320 + $0x698] sm:$0xff]
        %v593 = vld [vmem:[%s320 + $0x6a0] sm:$0xff]
        %v594 = vld [vmem:[%s320 + $0x6a8] sm:$0xff]
        %v595 = vld [vmem:[%s320 + $0x6b0] sm:$0xff]
        %v596 = vld [vmem:[%s320 + $0x6b8] sm:$0xff]
        %v597 = vld [vmem:[%s320 + $0x6c0] sm:$0xff]
        %v598 = vld [vmem:[%s320 + $0x6c8] sm:$0xff]
        %v599 = vld [vmem:[%s320 + $0x6d0] sm:$0xff]
        %v600 = vld [vmem:[%s320 + $0x6d8] sm:$0xff]
        %v601 = vld [vmem:[%s320 + $0x6e0] sm:$0xff]
        %v602 = vld [vmem:[%s320 + $0x6e8] sm:$0xff]
        %v603 = vld [vmem:[%s320 + $0x6f0] sm:$0xff]
        %v604 = vld [vmem:[%s320 + $0x6f8] sm:$0xff]
        %v605 = vld [vmem:[%s320 + $0x700] sm:$0xff]
        %v606 = vld [vmem:[%s320 + $0x708] sm:$0xff]
        %v607 = vld [vmem:[%s320 + $0x710] sm:$0xff]
        %v608 = vld [vmem:[%s320 + $0x718] sm:$0xff]
        %v609 = vld [vmem:[%s320 + $0x720] sm:$0xff]
        %v610 = vld [vmem:[%s320 + $0x728] sm:$0xff]
        %v611 = vld [vmem:[%s320 + $0x730] sm:$0xff]
        %v612 = vld [vmem:[%s320 + $0x738] sm:$0xff]
        %v613 = vld [vmem:[%s320 + $0x740] sm:$0xff]
        %v614 = vld [vmem:[%s320 + $0x748] sm:$0xff]
        %v615 = vld [vmem:[%s320 + $0x750] sm:$0xff]
        %v616 = vld [vmem:[%s320 + $0x758] sm:$0xff]
        %v617 = vld [vmem:[%s320 + $0x760] sm:$0xff]
        %v618 = vld [vmem:[%s320 + $0x768] sm:$0xff]
        %v619 = vld [vmem:[%s320 + $0x770] sm:$0xff]
        %v620 = vld [vmem:[%s320 + $0x778] sm:$0xff]
        %v621 = vld [vmem:[%s320 + $0x780] sm:$0xff]
        %v622 = vld [vmem:[%s320 + $0x788] sm:$0xff]
        %v623 = vld [vmem:[%s320 + $0x790] sm:$0xff]
        %v624 = vld [vmem:[%s320 + $0x798] sm:$0xff]
        %v625 = vld [vmem:[%s320 + $0x7a0] sm:$0xff]
        %v626 = vld [vmem:[%s320 + $0x7a8] sm:$0xff]
        %v627 = vld [vmem:[%s320 + $0x7b0] sm:$0xff]
        %v628 = vld [vmem:[%s320 + $0x7b8] sm:$0xff]
        %v629 = vld [vmem:[%s320 + $0x7c0] sm:$0xff]
        %v630 = vld [vmem:[%s320 + $0x7c8] sm:$0xff]
        %v631 = vld [vmem:[%s320 + $0x7d0] sm:$0xff]
        %v632 = vld [vmem:[%s320 + $0x7d8] sm:$0xff]
        %v633 = vld [vmem:[%s320 + $0x7e0] sm:$0xff]
        %v634 = vld [vmem:[%s320 + $0x7e8] sm:$0xff]
        %v635 = vld [vmem:[%s320 + $0x7f0] sm:$0xff]
        %v636 = vld [vmem:[%s320 + $0x7f8] sm:$0xff]
        %v637 = vpack.c.bf16 %v389, %v381
        %v638 = vpack.c.bf16 %v390, %v382
        %v639 = vpack.c.bf16 %v391, %v383
        %v640 = vpack.c.bf16 %v392, %v384
        %v641 = vpack.c.bf16 %v393, %v385
        %v642 = vpack.c.bf16 %v394, %v386
        %v643 = vpack.c.bf16 %v395, %v387
        %v644 = vpack.c.bf16 %v396, %v388
        %v645 = vpack.c.bf16 %v405, %v397
        %v646 = vpack.c.bf16 %v406, %v398
        %v647 = vpack.c.bf16 %v407, %v399
        %v648 = vpack.c.bf16 %v408, %v400
        %v649 = vpack.c.bf16 %v409, %v401
        %v650 = vpack.c.bf16 %v410, %v402
        %v651 = vpack.c.bf16 %v411, %v403
        %v652 = vpack.c.bf16 %v412, %v404
        %v653 = vpack.c.bf16 %v421, %v413
        %v654 = vpack.c.bf16 %v422, %v414
        %v655 = vpack.c.bf16 %v423, %v415
        %v656 = vpack.c.bf16 %v424, %v416
        %v657 = vpack.c.bf16 %v425, %v417
        %v658 = vpack.c.bf16 %v426, %v418
        %v659 = vpack.c.bf16 %v427, %v419
        %v660 = vpack.c.bf16 %v428, %v420
        %v661 = vpack.c.bf16 %v437, %v429
        %v662 = vpack.c.bf16 %v438, %v430
        %v663 = vpack.c.bf16 %v439, %v431
        %v664 = vpack.c.bf16 %v440, %v432
        %v665 = vpack.c.bf16 %v441, %v433
        %v666 = vpack.c.bf16 %v442, %v434
        %v667 = vpack.c.bf16 %v443, %v435
        %v668 = vpack.c.bf16 %v444, %v436
        %v669 = vpack.c.bf16 %v453, %v445
        %v670 = vpack.c.bf16 %v454, %v446
        %v671 = vpack.c.bf16 %v455, %v447
        %v672 = vpack.c.bf16 %v456, %v448
        %v673 = vpack.c.bf16 %v457, %v449
        %v674 = vpack.c.bf16 %v458, %v450
        %v675 = vpack.c.bf16 %v459, %v451
        %v676 = vpack.c.bf16 %v460, %v452
        %v677 = vpack.c.bf16 %v469, %v461
        %v678 = vpack.c.bf16 %v470, %v462
        %v679 = vpack.c.bf16 %v471, %v463
        %v680 = vpack.c.bf16 %v472, %v464
        %v681 = vpack.c.bf16 %v473, %v465
        %v682 = vpack.c.bf16 %v474, %v466
        %v683 = vpack.c.bf16 %v475, %v467
        %v684 = vpack.c.bf16 %v476, %v468
        %v685 = vpack.c.bf16 %v485, %v477
        %v686 = vpack.c.bf16 %v486, %v478
        %v687 = vpack.c.bf16 %v487, %v479
        %v688 = vpack.c.bf16 %v488, %v480
        %v689 = vpack.c.bf16 %v489, %v481
        %v690 = vpack.c.bf16 %v490, %v482
        %v691 = vpack.c.bf16 %v491, %v483
        %v692 = vpack.c.bf16 %v492, %v484
        %v693 = vpack.c.bf16 %v501, %v493
        %v694 = vpack.c.bf16 %v502, %v494
        %v695 = vpack.c.bf16 %v503, %v495
        %v696 = vpack.c.bf16 %v504, %v496
        %v697 = vpack.c.bf16 %v505, %v497
        %v698 = vpack.c.bf16 %v506, %v498
        %v699 = vpack.c.bf16 %v507, %v499
        %v700 = vpack.c.bf16 %v508, %v500
        %v701 = vpack.c.bf16 %v517, %v509
        %v702 = vpack.c.bf16 %v518, %v510
        %v703 = vpack.c.bf16 %v519, %v511
        %v704 = vpack.c.bf16 %v520, %v512
        %v705 = vpack.c.bf16 %v521, %v513
        %v706 = vpack.c.bf16 %v522, %v514
        %v707 = vpack.c.bf16 %v523, %v515
        %v708 = vpack.c.bf16 %v524, %v516
        %v709 = vpack.c.bf16 %v533, %v525
        %v710 = vpack.c.bf16 %v534, %v526
        %v711 = vpack.c.bf16 %v535, %v527
        %v712 = vpack.c.bf16 %v536, %v528
        %v713 = vpack.c.bf16 %v537, %v529
        %v714 = vpack.c.bf16 %v538, %v530
        %v715 = vpack.c.bf16 %v539, %v531
        %v716 = vpack.c.bf16 %v540, %v532
        %v717 = vpack.c.bf16 %v549, %v541
        %v718 = vpack.c.bf16 %v550, %v542
        %v719 = vpack.c.bf16 %v551, %v543
        %v720 = vpack.c.bf16 %v552, %v544
        %v721 = vpack.c.bf16 %v553, %v545
        %v722 = vpack.c.bf16 %v554, %v546
        %v723 = vpack.c.bf16 %v555, %v547
        %v724 = vpack.c.bf16 %v556, %v548
        %v725 = vpack.c.bf16 %v565, %v557
        %v726 = vpack.c.bf16 %v566, %v558
        %v727 = vpack.c.bf16 %v567, %v559
        %v728 = vpack.c.bf16 %v568, %v560
        %v729 = vpack.c.bf16 %v569, %v561
        %v730 = vpack.c.bf16 %v570, %v562
        %v731 = vpack.c.bf16 %v571, %v563
        %v732 = vpack.c.bf16 %v572, %v564
        %v733 = vpack.c.bf16 %v581, %v573
        %v734 = vpack.c.bf16 %v582, %v574
        %v735 = vpack.c.bf16 %v583, %v575
        %v736 = vpack.c.bf16 %v584, %v576
        %v737 = vpack.c.bf16 %v585, %v577
        %v738 = vpack.c.bf16 %v586, %v578
        %v739 = vpack.c.bf16 %v587, %v579
        %v740 = vpack.c.bf16 %v588, %v580
        %v741 = vpack.c.bf16 %v597, %v589
        %v742 = vpack.c.bf16 %v598, %v590
        %v743 = vpack.c.bf16 %v599, %v591
        %v744 = vpack.c.bf16 %v600, %v592
        %v745 = vpack.c.bf16 %v601, %v593
        %v746 = vpack.c.bf16 %v602, %v594
        %v747 = vpack.c.bf16 %v603, %v595
        %v748 = vpack.c.bf16 %v604, %v596
        %v749 = vpack.c.bf16 %v613, %v605
        %v750 = vpack.c.bf16 %v614, %v606
        %v751 = vpack.c.bf16 %v615, %v607
        %v752 = vpack.c.bf16 %v616, %v608
        %v753 = vpack.c.bf16 %v617, %v609
        %v754 = vpack.c.bf16 %v618, %v610
        %v755 = vpack.c.bf16 %v619, %v611
        %v756 = vpack.c.bf16 %v620, %v612
        %v757 = vpack.c.bf16 %v629, %v621
        %v758 = vpack.c.bf16 %v630, %v622
        %v759 = vpack.c.bf16 %v631, %v623
        %v760 = vpack.c.bf16 %v632, %v624
        %v761 = vpack.c.bf16 %v633, %v625
        %v762 = vpack.c.bf16 %v634, %v626
        %v763 = vpack.c.bf16 %v635, %v627
        %v764 = vpack.c.bf16 %v636, %v628
        %v765 = vld [vmem:[#allocation5] sm:$0xff]
        %v766 = vld [vmem:[#allocation5 + $0x8] sm:$0xff]
        %v767 = vld [vmem:[#allocation5 + $0x10] sm:$0xff]
        %v768 = vld [vmem:[#allocation5 + $0x18] sm:$0xff]
        %v769 = vld [vmem:[#allocation5 + $0x20] sm:$0xff]
        %v770 = vld [vmem:[#allocation5 + $0x28] sm:$0xff]
        %v771 = vld [vmem:[#allocation5 + $0x30] sm:$0xff]
        %v772 = vld [vmem:[#allocation5 + $0x38] sm:$0xff]
        %v773 = vld [vmem:[#allocation5 + $0x40] sm:$0xff]
        %v774 = vld [vmem:[#allocation5 + $0x48] sm:$0xff]
        %v775 = vld [vmem:[#allocation5 + $0x50] sm:$0xff]
        %v776 = vld [vmem:[#allocation5 + $0x58] sm:$0xff]
        %v777 = vld [vmem:[#allocation5 + $0x60] sm:$0xff]
        %v778 = vld [vmem:[#allocation5 + $0x68] sm:$0xff]
        %v779 = vld [vmem:[#allocation5 + $0x70] sm:$0xff]
        %v780 = vld [vmem:[#allocation5 + $0x78] sm:$0xff]
        %v781 = vld [vmem:[#allocation5 + $0x80] sm:$0xff]
        %v782 = vld [vmem:[#allocation5 + $0x88] sm:$0xff]
        %v783 = vld [vmem:[#allocation5 + $0x90] sm:$0xff]
        %v784 = vld [vmem:[#allocation5 + $0x98] sm:$0xff]
        %v785 = vld [vmem:[#allocation5 + $0xa0] sm:$0xff]
        %v786 = vld [vmem:[#allocation5 + $0xa8] sm:$0xff]
        %v787 = vld [vmem:[#allocation5 + $0xb0] sm:$0xff]
        %v788 = vld [vmem:[#allocation5 + $0xb8] sm:$0xff]
        %v789 = vld [vmem:[#allocation5 + $0xc0] sm:$0xff]
        %v790 = vld [vmem:[#allocation5 + $0xc8] sm:$0xff]
        %v791 = vld [vmem:[#allocation5 + $0xd0] sm:$0xff]
        %v792 = vld [vmem:[#allocation5 + $0xd8] sm:$0xff]
        %v793 = vld [vmem:[#allocation5 + $0xe0] sm:$0xff]
        %v794 = vld [vmem:[#allocation5 + $0xe8] sm:$0xff]
        %v795 = vld [vmem:[#allocation5 + $0xf0] sm:$0xff]
        %v796 = vld [vmem:[#allocation5 + $0xf8] sm:$0xff]
        %v797 = vld [vmem:[#allocation5 + $0x100] sm:$0xff]
        %v798 = vld [vmem:[#allocation5 + $0x108] sm:$0xff]
        %v799 = vld [vmem:[#allocation5 + $0x110] sm:$0xff]
        %v800 = vld [vmem:[#allocation5 + $0x118] sm:$0xff]
        %v801 = vld [vmem:[#allocation5 + $0x120] sm:$0xff]
        %v802 = vld [vmem:[#allocation5 + $0x128] sm:$0xff]
        %v803 = vld [vmem:[#allocation5 + $0x130] sm:$0xff]
        %v804 = vld [vmem:[#allocation5 + $0x138] sm:$0xff]
        %v805 = vld [vmem:[#allocation5 + $0x140] sm:$0xff]
        %v806 = vld [vmem:[#allocation5 + $0x148] sm:$0xff]
        %v807 = vld [vmem:[#allocation5 + $0x150] sm:$0xff]
        %v808 = vld [vmem:[#allocation5 + $0x158] sm:$0xff]
        %v809 = vld [vmem:[#allocation5 + $0x160] sm:$0xff]
        %v810 = vld [vmem:[#allocation5 + $0x168] sm:$0xff]
        %v811 = vld [vmem:[#allocation5 + $0x170] sm:$0xff]
        %v812 = vld [vmem:[#allocation5 + $0x178] sm:$0xff]
        %v813 = vld [vmem:[#allocation5 + $0x180] sm:$0xff]
        %v814 = vld [vmem:[#allocation5 + $0x188] sm:$0xff]
        %v815 = vld [vmem:[#allocation5 + $0x190] sm:$0xff]
        %v816 = vld [vmem:[#allocation5 + $0x198] sm:$0xff]
        %v817 = vld [vmem:[#allocation5 + $0x1a0] sm:$0xff]
        %v818 = vld [vmem:[#allocation5 + $0x1a8] sm:$0xff]
        %v819 = vld [vmem:[#allocation5 + $0x1b0] sm:$0xff]
        %v820 = vld [vmem:[#allocation5 + $0x1b8] sm:$0xff]
        %v821 = vld [vmem:[#allocation5 + $0x1c0] sm:$0xff]
        %v822 = vld [vmem:[#allocation5 + $0x1c8] sm:$0xff]
        %v823 = vld [vmem:[#allocation5 + $0x1d0] sm:$0xff]
        %v824 = vld [vmem:[#allocation5 + $0x1d8] sm:$0xff]
        %v825 = vld [vmem:[#allocation5 + $0x1e0] sm:$0xff]
        %v826 = vld [vmem:[#allocation5 + $0x1e8] sm:$0xff]
        %v827 = vld [vmem:[#allocation5 + $0x1f0] sm:$0xff]
        %v828 = vld [vmem:[#allocation5 + $0x1f8] sm:$0xff]
        %v829 = vld [vmem:[#allocation5 + $0x200] sm:$0xff]
        %v830 = vld [vmem:[#allocation5 + $0x208] sm:$0xff]
        %v831 = vld [vmem:[#allocation5 + $0x210] sm:$0xff]
        %v832 = vld [vmem:[#allocation5 + $0x218] sm:$0xff]
        %v833 = vld [vmem:[#allocation5 + $0x220] sm:$0xff]
        %v834 = vld [vmem:[#allocation5 + $0x228] sm:$0xff]
        %v835 = vld [vmem:[#allocation5 + $0x230] sm:$0xff]
        %v836 = vld [vmem:[#allocation5 + $0x238] sm:$0xff]
        %v837 = vld [vmem:[#allocation5 + $0x240] sm:$0xff]
        %v838 = vld [vmem:[#allocation5 + $0x248] sm:$0xff]
        %v839 = vld [vmem:[#allocation5 + $0x250] sm:$0xff]
        %v840 = vld [vmem:[#allocation5 + $0x258] sm:$0xff]
        %v841 = vld [vmem:[#allocation5 + $0x260] sm:$0xff]
        %v842 = vld [vmem:[#allocation5 + $0x268] sm:$0xff]
        %v843 = vld [vmem:[#allocation5 + $0x270] sm:$0xff]
        %v844 = vld [vmem:[#allocation5 + $0x278] sm:$0xff]
        %v845 = vld [vmem:[#allocation5 + $0x280] sm:$0xff]
        %v846 = vld [vmem:[#allocation5 + $0x288] sm:$0xff]
        %v847 = vld [vmem:[#allocation5 + $0x290] sm:$0xff]
        %v848 = vld [vmem:[#allocation5 + $0x298] sm:$0xff]
        %v849 = vld [vmem:[#allocation5 + $0x2a0] sm:$0xff]
        %v850 = vld [vmem:[#allocation5 + $0x2a8] sm:$0xff]
        %v851 = vld [vmem:[#allocation5 + $0x2b0] sm:$0xff]
        %v852 = vld [vmem:[#allocation5 + $0x2b8] sm:$0xff]
        %v853 = vld [vmem:[#allocation5 + $0x2c0] sm:$0xff]
        %v854 = vld [vmem:[#allocation5 + $0x2c8] sm:$0xff]
        %v855 = vld [vmem:[#allocation5 + $0x2d0] sm:$0xff]
        %v856 = vld [vmem:[#allocation5 + $0x2d8] sm:$0xff]
        %v857 = vld [vmem:[#allocation5 + $0x2e0] sm:$0xff]
        %v858 = vld [vmem:[#allocation5 + $0x2e8] sm:$0xff]
        %v859 = vld [vmem:[#allocation5 + $0x2f0] sm:$0xff]
        %v860 = vld [vmem:[#allocation5 + $0x2f8] sm:$0xff]
        %v861 = vld [vmem:[#allocation5 + $0x300] sm:$0xff]
        %v862 = vld [vmem:[#allocation5 + $0x308] sm:$0xff]
        %v863 = vld [vmem:[#allocation5 + $0x310] sm:$0xff]
        %v864 = vld [vmem:[#allocation5 + $0x318] sm:$0xff]
        %v865 = vld [vmem:[#allocation5 + $0x320] sm:$0xff]
        %v866 = vld [vmem:[#allocation5 + $0x328] sm:$0xff]
        %v867 = vld [vmem:[#allocation5 + $0x330] sm:$0xff]
        %v868 = vld [vmem:[#allocation5 + $0x338] sm:$0xff]
        %v869 = vld [vmem:[#allocation5 + $0x340] sm:$0xff]
        %v870 = vld [vmem:[#allocation5 + $0x348] sm:$0xff]
        %v871 = vld [vmem:[#allocation5 + $0x350] sm:$0xff]
        %v872 = vld [vmem:[#allocation5 + $0x358] sm:$0xff]
        %v873 = vld [vmem:[#allocation5 + $0x360] sm:$0xff]
        %v874 = vld [vmem:[#allocation5 + $0x368] sm:$0xff]
        %v875 = vld [vmem:[#allocation5 + $0x370] sm:$0xff]
        %v876 = vld [vmem:[#allocation5 + $0x378] sm:$0xff]
        %v877 = vld [vmem:[#allocation5 + $0x380] sm:$0xff]
        %v878 = vld [vmem:[#allocation5 + $0x388] sm:$0xff]
        %v879 = vld [vmem:[#allocation5 + $0x390] sm:$0xff]
        %v880 = vld [vmem:[#allocation5 + $0x398] sm:$0xff]
        %v881 = vld [vmem:[#allocation5 + $0x3a0] sm:$0xff]
        %v882 = vld [vmem:[#allocation5 + $0x3a8] sm:$0xff]
        %v883 = vld [vmem:[#allocation5 + $0x3b0] sm:$0xff]
        %v884 = vld [vmem:[#allocation5 + $0x3b8] sm:$0xff]
        %v885 = vld [vmem:[#allocation5 + $0x3c0] sm:$0xff]
        %v886 = vld [vmem:[#allocation5 + $0x3c8] sm:$0xff]
        %v887 = vld [vmem:[#allocation5 + $0x3d0] sm:$0xff]
        %v888 = vld [vmem:[#allocation5 + $0x3d8] sm:$0xff]
        %v889 = vld [vmem:[#allocation5 + $0x3e0] sm:$0xff]
        %v890 = vld [vmem:[#allocation5 + $0x3e8] sm:$0xff]
        %v891 = vld [vmem:[#allocation5 + $0x3f0] sm:$0xff]
        %v892 = vld [vmem:[#allocation5 + $0x3f8] sm:$0xff]
        %v893 = vld [vmem:[#allocation5 + $0x400] sm:$0xff]
        %v894 = vld [vmem:[#allocation5 + $0x408] sm:$0xff]
        %v895 = vld [vmem:[#allocation5 + $0x410] sm:$0xff]
        %v896 = vld [vmem:[#allocation5 + $0x418] sm:$0xff]
        %v897 = vld [vmem:[#allocation5 + $0x420] sm:$0xff]
        %v898 = vld [vmem:[#allocation5 + $0x428] sm:$0xff]
        %v899 = vld [vmem:[#allocation5 + $0x430] sm:$0xff]
        %v900 = vld [vmem:[#allocation5 + $0x438] sm:$0xff]
        %v901 = vld [vmem:[#allocation5 + $0x440] sm:$0xff]
        %v902 = vld [vmem:[#allocation5 + $0x448] sm:$0xff]
        %v903 = vld [vmem:[#allocation5 + $0x450] sm:$0xff]
        %v904 = vld [vmem:[#allocation5 + $0x458] sm:$0xff]
        %v905 = vld [vmem:[#allocation5 + $0x460] sm:$0xff]
        %v906 = vld [vmem:[#allocation5 + $0x468] sm:$0xff]
        %v907 = vld [vmem:[#allocation5 + $0x470] sm:$0xff]
        %v908 = vld [vmem:[#allocation5 + $0x478] sm:$0xff]
        %v909 = vld [vmem:[#allocation5 + $0x480] sm:$0xff]
        %v910 = vld [vmem:[#allocation5 + $0x488] sm:$0xff]
        %v911 = vld [vmem:[#allocation5 + $0x490] sm:$0xff]
        %v912 = vld [vmem:[#allocation5 + $0x498] sm:$0xff]
        %v913 = vld [vmem:[#allocation5 + $0x4a0] sm:$0xff]
        %v914 = vld [vmem:[#allocation5 + $0x4a8] sm:$0xff]
        %v915 = vld [vmem:[#allocation5 + $0x4b0] sm:$0xff]
        %v916 = vld [vmem:[#allocation5 + $0x4b8] sm:$0xff]
        %v917 = vld [vmem:[#allocation5 + $0x4c0] sm:$0xff]
        %v918 = vld [vmem:[#allocation5 + $0x4c8] sm:$0xff]
        %v919 = vld [vmem:[#allocation5 + $0x4d0] sm:$0xff]
        %v920 = vld [vmem:[#allocation5 + $0x4d8] sm:$0xff]
        %v921 = vld [vmem:[#allocation5 + $0x4e0] sm:$0xff]
        %v922 = vld [vmem:[#allocation5 + $0x4e8] sm:$0xff]
        %v923 = vld [vmem:[#allocation5 + $0x4f0] sm:$0xff]
        %v924 = vld [vmem:[#allocation5 + $0x4f8] sm:$0xff]
        %v925 = vld [vmem:[#allocation5 + $0x500] sm:$0xff]
        %v926 = vld [vmem:[#allocation5 + $0x508] sm:$0xff]
        %v927 = vld [vmem:[#allocation5 + $0x510] sm:$0xff]
        %v928 = vld [vmem:[#allocation5 + $0x518] sm:$0xff]
        %v929 = vld [vmem:[#allocation5 + $0x520] sm:$0xff]
        %v930 = vld [vmem:[#allocation5 + $0x528] sm:$0xff]
        %v931 = vld [vmem:[#allocation5 + $0x530] sm:$0xff]
        %v932 = vld [vmem:[#allocation5 + $0x538] sm:$0xff]
        %v933 = vld [vmem:[#allocation5 + $0x540] sm:$0xff]
        %v934 = vld [vmem:[#allocation5 + $0x548] sm:$0xff]
        %v935 = vld [vmem:[#allocation5 + $0x550] sm:$0xff]
        %v936 = vld [vmem:[#allocation5 + $0x558] sm:$0xff]
        %v937 = vld [vmem:[#allocation5 + $0x560] sm:$0xff]
        %v938 = vld [vmem:[#allocation5 + $0x568] sm:$0xff]
        %v939 = vld [vmem:[#allocation5 + $0x570] sm:$0xff]
        %v940 = vld [vmem:[#allocation5 + $0x578] sm:$0xff]
        %v941 = vld [vmem:[#allocation5 + $0x580] sm:$0xff]
        %v942 = vld [vmem:[#allocation5 + $0x588] sm:$0xff]
        %v943 = vld [vmem:[#allocation5 + $0x590] sm:$0xff]
        %v944 = vld [vmem:[#allocation5 + $0x598] sm:$0xff]
        %v945 = vld [vmem:[#allocation5 + $0x5a0] sm:$0xff]
        %v946 = vld [vmem:[#allocation5 + $0x5a8] sm:$0xff]
        %v947 = vld [vmem:[#allocation5 + $0x5b0] sm:$0xff]
        %v948 = vld [vmem:[#allocation5 + $0x5b8] sm:$0xff]
        %v949 = vld [vmem:[#allocation5 + $0x5c0] sm:$0xff]
        %v950 = vld [vmem:[#allocation5 + $0x5c8] sm:$0xff]
        %v951 = vld [vmem:[#allocation5 + $0x5d0] sm:$0xff]
        %v952 = vld [vmem:[#allocation5 + $0x5d8] sm:$0xff]
        %v953 = vld [vmem:[#allocation5 + $0x5e0] sm:$0xff]
        %v954 = vld [vmem:[#allocation5 + $0x5e8] sm:$0xff]
        %v955 = vld [vmem:[#allocation5 + $0x5f0] sm:$0xff]
        %v956 = vld [vmem:[#allocation5 + $0x5f8] sm:$0xff]
        %v957 = vld [vmem:[#allocation5 + $0x600] sm:$0xff]
        %v958 = vld [vmem:[#allocation5 + $0x608] sm:$0xff]
        %v959 = vld [vmem:[#allocation5 + $0x610] sm:$0xff]
        %v960 = vld [vmem:[#allocation5 + $0x618] sm:$0xff]
        %v961 = vld [vmem:[#allocation5 + $0x620] sm:$0xff]
        %v962 = vld [vmem:[#allocation5 + $0x628] sm:$0xff]
        %v963 = vld [vmem:[#allocation5 + $0x630] sm:$0xff]
        %v964 = vld [vmem:[#allocation5 + $0x638] sm:$0xff]
        %v965 = vld [vmem:[#allocation5 + $0x640] sm:$0xff]
        %v966 = vld [vmem:[#allocation5 + $0x648] sm:$0xff]
        %v967 = vld [vmem:[#allocation5 + $0x650] sm:$0xff]
        %v968 = vld [vmem:[#allocation5 + $0x658] sm:$0xff]
        %v969 = vld [vmem:[#allocation5 + $0x660] sm:$0xff]
        %v970 = vld [vmem:[#allocation5 + $0x668] sm:$0xff]
        %v971 = vld [vmem:[#allocation5 + $0x670] sm:$0xff]
        %v972 = vld [vmem:[#allocation5 + $0x678] sm:$0xff]
        %v973 = vld [vmem:[#allocation5 + $0x680] sm:$0xff]
        %v974 = vld [vmem:[#allocation5 + $0x688] sm:$0xff]
        %v975 = vld [vmem:[#allocation5 + $0x690] sm:$0xff]
        %v976 = vld [vmem:[#allocation5 + $0x698] sm:$0xff]
        %v977 = vld [vmem:[#allocation5 + $0x6a0] sm:$0xff]
        %v978 = vld [vmem:[#allocation5 + $0x6a8] sm:$0xff]
        %v979 = vld [vmem:[#allocation5 + $0x6b0] sm:$0xff]
        %v980 = vld [vmem:[#allocation5 + $0x6b8] sm:$0xff]
        %v981 = vld [vmem:[#allocation5 + $0x6c0] sm:$0xff]
        %v982 = vld [vmem:[#allocation5 + $0x6c8] sm:$0xff]
        %v983 = vld [vmem:[#allocation5 + $0x6d0] sm:$0xff]
        %v984 = vld [vmem:[#allocation5 + $0x6d8] sm:$0xff]
        %v985 = vld [vmem:[#allocation5 + $0x6e0] sm:$0xff]
        %v986 = vld [vmem:[#allocation5 + $0x6e8] sm:$0xff]
        %v987 = vld [vmem:[#allocation5 + $0x6f0] sm:$0xff]
        %v988 = vld [vmem:[#allocation5 + $0x6f8] sm:$0xff]
        %v989 = vld [vmem:[#allocation5 + $0x700] sm:$0xff]
        %v990 = vld [vmem:[#allocation5 + $0x708] sm:$0xff]
        %v991 = vld [vmem:[#allocation5 + $0x710] sm:$0xff]
        %v992 = vld [vmem:[#allocation5 + $0x718] sm:$0xff]
        %v993 = vld [vmem:[#allocation5 + $0x720] sm:$0xff]
        %v994 = vld [vmem:[#allocation5 + $0x728] sm:$0xff]
        %v995 = vld [vmem:[#allocation5 + $0x730] sm:$0xff]
        %v996 = vld [vmem:[#allocation5 + $0x738] sm:$0xff]
        %v997 = vld [vmem:[#allocation5 + $0x740] sm:$0xff]
        %v998 = vld [vmem:[#allocation5 + $0x748] sm:$0xff]
        %v999 = vld [vmem:[#allocation5 + $0x750] sm:$0xff]
        %v1000 = vld [vmem:[#allocation5 + $0x758] sm:$0xff]
        %v1001 = vld [vmem:[#allocation5 + $0x760] sm:$0xff]
        %v1002 = vld [vmem:[#allocation5 + $0x768] sm:$0xff]
        %v1003 = vld [vmem:[#allocation5 + $0x770] sm:$0xff]
        %v1004 = vld [vmem:[#allocation5 + $0x778] sm:$0xff]
        %v1005 = vld [vmem:[#allocation5 + $0x780] sm:$0xff]
        %v1006 = vld [vmem:[#allocation5 + $0x788] sm:$0xff]
        %v1007 = vld [vmem:[#allocation5 + $0x790] sm:$0xff]
        %v1008 = vld [vmem:[#allocation5 + $0x798] sm:$0xff]
        %v1009 = vld [vmem:[#allocation5 + $0x7a0] sm:$0xff]
        %v1010 = vld [vmem:[#allocation5 + $0x7a8] sm:$0xff]
        %v1011 = vld [vmem:[#allocation5 + $0x7b0] sm:$0xff]
        %v1012 = vld [vmem:[#allocation5 + $0x7b8] sm:$0xff]
        %v1013 = vld [vmem:[#allocation5 + $0x7c0] sm:$0xff]
        %v1014 = vld [vmem:[#allocation5 + $0x7c8] sm:$0xff]
        %v1015 = vld [vmem:[#allocation5 + $0x7d0] sm:$0xff]
        %v1016 = vld [vmem:[#allocation5 + $0x7d8] sm:$0xff]
        %v1017 = vld [vmem:[#allocation5 + $0x7e0] sm:$0xff]
        %v1018 = vld [vmem:[#allocation5 + $0x7e8] sm:$0xff]
        %v1019 = vld [vmem:[#allocation5 + $0x7f0] sm:$0xff]
        %v1020 = vld [vmem:[#allocation5 + $0x7f8] sm:$0xff]
        %v1021 = vld [vmem:[#allocation7] sm:$0xf]
        %v1023 = vlaneseq
        %v1024 = vshrl.u32 %v1023, 7
        %v1025 = vsub.s32 0, %v1024
        %v1026 = vrot.slane %v1021, %v1025
        %v1027 = vlaneseq
        %v1028 = vshrl.u32 %v1027, 7
        %v1029 = vsub.s32 1, %v1028
        %v1030 = vrot.slane %v1021, %v1029
        %v1031 = vlaneseq
        %v1032 = vshrl.u32 %v1031, 7
        %v1033 = vsub.s32 2, %v1032
        %v1034 = vrot.slane %v1021, %v1033
        %v1035 = vlaneseq
        %v1036 = vshrl.u32 %v1035, 7
        %v1037 = vsub.s32 3, %v1036
        %v1038 = vrot.slane %v1021, %v1037
        %v1299 = vunpack.c.l.b16 %v765
        %v1300 = vunpack.c.h.b16 %v765
        %v1301 = vunpack.c.l.b16 %v766
        %v1302 = vunpack.c.h.b16 %v766
        %v1303 = vunpack.c.l.b16 %v767
        %v1304 = vunpack.c.h.b16 %v767
        %v1305 = vunpack.c.l.b16 %v768
        %v1306 = vunpack.c.h.b16 %v768
        %v1307 = vunpack.c.l.b16 %v769
        %v1308 = vunpack.c.h.b16 %v769
        %v1309 = vunpack.c.l.b16 %v770
        %v1310 = vunpack.c.h.b16 %v770
        %v1311 = vunpack.c.l.b16 %v771
        %v1312 = vunpack.c.h.b16 %v771
        %v1313 = vunpack.c.l.b16 %v772
        %v1314 = vunpack.c.h.b16 %v772
        %v1315 = vunpack.c.l.b16 %v773
        %v1316 = vunpack.c.h.b16 %v773
        %v1317 = vunpack.c.l.b16 %v774
        %v1318 = vunpack.c.h.b16 %v774
        %v1319 = vunpack.c.l.b16 %v775
        %v1320 = vunpack.c.h.b16 %v775
        %v1321 = vunpack.c.l.b16 %v776
        %v1322 = vunpack.c.h.b16 %v776
        %v1323 = vunpack.c.l.b16 %v777
        %v1324 = vunpack.c.h.b16 %v777
        %v1325 = vunpack.c.l.b16 %v778
        %v1326 = vunpack.c.h.b16 %v778
        %v1327 = vunpack.c.l.b16 %v779
        %v1328 = vunpack.c.h.b16 %v779
        %v1329 = vunpack.c.l.b16 %v780
        %v1330 = vunpack.c.h.b16 %v780
        %v1331 = vunpack.c.l.b16 %v781
        %v1332 = vunpack.c.h.b16 %v781
        %v1333 = vunpack.c.l.b16 %v782
        %v1334 = vunpack.c.h.b16 %v782
        %v1335 = vunpack.c.l.b16 %v783
        %v1336 = vunpack.c.h.b16 %v783
        %v1337 = vunpack.c.l.b16 %v784
        %v1338 = vunpack.c.h.b16 %v784
        %v1339 = vunpack.c.l.b16 %v785
        %v1340 = vunpack.c.h.b16 %v785
        %v1341 = vunpack.c.l.b16 %v786
        %v1342 = vunpack.c.h.b16 %v786
        %v1343 = vunpack.c.l.b16 %v787
        %v1344 = vunpack.c.h.b16 %v787
        %v1345 = vunpack.c.l.b16 %v788
        %v1346 = vunpack.c.h.b16 %v788
        %v1347 = vunpack.c.l.b16 %v789
        %v1348 = vunpack.c.h.b16 %v789
        %v1349 = vunpack.c.l.b16 %v790
        %v1350 = vunpack.c.h.b16 %v790
        %v1351 = vunpack.c.l.b16 %v791
        %v1352 = vunpack.c.h.b16 %v791
        %v1353 = vunpack.c.l.b16 %v792
        %v1354 = vunpack.c.h.b16 %v792
        %v1355 = vunpack.c.l.b16 %v793
        %v1356 = vunpack.c.h.b16 %v793
        %v1357 = vunpack.c.l.b16 %v794
        %v1358 = vunpack.c.h.b16 %v794
        %v1359 = vunpack.c.l.b16 %v795
        %v1360 = vunpack.c.h.b16 %v795
        %v1361 = vunpack.c.l.b16 %v796
        %v1362 = vunpack.c.h.b16 %v796
        %v1363 = vunpack.c.l.b16 %v797
        %v1364 = vunpack.c.h.b16 %v797
        %v1365 = vunpack.c.l.b16 %v798
        %v1366 = vunpack.c.h.b16 %v798
        %v1367 = vunpack.c.l.b16 %v799
        %v1368 = vunpack.c.h.b16 %v799
        %v1369 = vunpack.c.l.b16 %v800
        %v1370 = vunpack.c.h.b16 %v800
        %v1371 = vunpack.c.l.b16 %v801
        %v1372 = vunpack.c.h.b16 %v801
        %v1373 = vunpack.c.l.b16 %v802
        %v1374 = vunpack.c.h.b16 %v802
        %v1375 = vunpack.c.l.b16 %v803
        %v1376 = vunpack.c.h.b16 %v803
        %v1377 = vunpack.c.l.b16 %v804
        %v1378 = vunpack.c.h.b16 %v804
        %v1379 = vunpack.c.l.b16 %v805
        %v1380 = vunpack.c.h.b16 %v805
        %v1381 = vunpack.c.l.b16 %v806
        %v1382 = vunpack.c.h.b16 %v806
        %v1383 = vunpack.c.l.b16 %v807
        %v1384 = vunpack.c.h.b16 %v807
        %v1385 = vunpack.c.l.b16 %v808
        %v1386 = vunpack.c.h.b16 %v808
        %v1387 = vunpack.c.l.b16 %v809
        %v1388 = vunpack.c.h.b16 %v809
        %v1389 = vunpack.c.l.b16 %v810
        %v1390 = vunpack.c.h.b16 %v810
        %v1391 = vunpack.c.l.b16 %v811
        %v1392 = vunpack.c.h.b16 %v811
        %v1393 = vunpack.c.l.b16 %v812
        %v1394 = vunpack.c.h.b16 %v812
        %v1395 = vunpack.c.l.b16 %v813
        %v1396 = vunpack.c.h.b16 %v813
        %v1397 = vunpack.c.l.b16 %v814
        %v1398 = vunpack.c.h.b16 %v814
        %v1399 = vunpack.c.l.b16 %v815
        %v1400 = vunpack.c.h.b16 %v815
        %v1401 = vunpack.c.l.b16 %v816
        %v1402 = vunpack.c.h.b16 %v816
        %v1403 = vunpack.c.l.b16 %v817
        %v1404 = vunpack.c.h.b16 %v817
        %v1405 = vunpack.c.l.b16 %v818
        %v1406 = vunpack.c.h.b16 %v818
        %v1407 = vunpack.c.l.b16 %v819
        %v1408 = vunpack.c.h.b16 %v819
        %v1409 = vunpack.c.l.b16 %v820
        %v1410 = vunpack.c.h.b16 %v820
        %v1411 = vunpack.c.l.b16 %v821
        %v1412 = vunpack.c.h.b16 %v821
        %v1413 = vunpack.c.l.b16 %v822
        %v1414 = vunpack.c.h.b16 %v822
        %v1415 = vunpack.c.l.b16 %v823
        %v1416 = vunpack.c.h.b16 %v823
        %v1417 = vunpack.c.l.b16 %v824
        %v1418 = vunpack.c.h.b16 %v824
        %v1419 = vunpack.c.l.b16 %v825
        %v1420 = vunpack.c.h.b16 %v825
        %v1421 = vunpack.c.l.b16 %v826
        %v1422 = vunpack.c.h.b16 %v826
        %v1423 = vunpack.c.l.b16 %v827
        %v1424 = vunpack.c.h.b16 %v827
        %v1425 = vunpack.c.l.b16 %v828
        %v1426 = vunpack.c.h.b16 %v828
        %v1427 = vunpack.c.l.b16 %v829
        %v1428 = vunpack.c.h.b16 %v829
        %v1429 = vunpack.c.l.b16 %v830
        %v1430 = vunpack.c.h.b16 %v830
        %v1431 = vunpack.c.l.b16 %v831
        %v1432 = vunpack.c.h.b16 %v831
        %v1433 = vunpack.c.l.b16 %v832
        %v1434 = vunpack.c.h.b16 %v832
        %v1435 = vunpack.c.l.b16 %v833
        %v1436 = vunpack.c.h.b16 %v833
        %v1437 = vunpack.c.l.b16 %v834
        %v1438 = vunpack.c.h.b16 %v834
        %v1439 = vunpack.c.l.b16 %v835
        %v1440 = vunpack.c.h.b16 %v835
        %v1441 = vunpack.c.l.b16 %v836
        %v1442 = vunpack.c.h.b16 %v836
        %v1443 = vunpack.c.l.b16 %v837
        %v1444 = vunpack.c.h.b16 %v837
        %v1445 = vunpack.c.l.b16 %v838
        %v1446 = vunpack.c.h.b16 %v838
        %v1447 = vunpack.c.l.b16 %v839
        %v1448 = vunpack.c.h.b16 %v839
        %v1449 = vunpack.c.l.b16 %v840
        %v1450 = vunpack.c.h.b16 %v840
        %v1451 = vunpack.c.l.b16 %v841
        %v1452 = vunpack.c.h.b16 %v841
        %v1453 = vunpack.c.l.b16 %v842
        %v1454 = vunpack.c.h.b16 %v842
        %v1455 = vunpack.c.l.b16 %v843
        %v1456 = vunpack.c.h.b16 %v843
        %v1457 = vunpack.c.l.b16 %v844
        %v1458 = vunpack.c.h.b16 %v844
        %v1459 = vunpack.c.l.b16 %v845
        %v1460 = vunpack.c.h.b16 %v845
        %v1461 = vunpack.c.l.b16 %v846
        %v1462 = vunpack.c.h.b16 %v846
        %v1463 = vunpack.c.l.b16 %v847
        %v1464 = vunpack.c.h.b16 %v847
        %v1465 = vunpack.c.l.b16 %v848
        %v1466 = vunpack.c.h.b16 %v848
        %v1467 = vunpack.c.l.b16 %v849
        %v1468 = vunpack.c.h.b16 %v849
        %v1469 = vunpack.c.l.b16 %v850
        %v1470 = vunpack.c.h.b16 %v850
        %v1471 = vunpack.c.l.b16 %v851
        %v1472 = vunpack.c.h.b16 %v851
        %v1473 = vunpack.c.l.b16 %v852
        %v1474 = vunpack.c.h.b16 %v852
        %v1475 = vunpack.c.l.b16 %v853
        %v1476 = vunpack.c.h.b16 %v853
        %v1477 = vunpack.c.l.b16 %v854
        %v1478 = vunpack.c.h.b16 %v854
        %v1479 = vunpack.c.l.b16 %v855
        %v1480 = vunpack.c.h.b16 %v855
        %v1481 = vunpack.c.l.b16 %v856
        %v1482 = vunpack.c.h.b16 %v856
        %v1483 = vunpack.c.l.b16 %v857
        %v1484 = vunpack.c.h.b16 %v857
        %v1485 = vunpack.c.l.b16 %v858
        %v1486 = vunpack.c.h.b16 %v858
        %v1487 = vunpack.c.l.b16 %v859
        %v1488 = vunpack.c.h.b16 %v859
        %v1489 = vunpack.c.l.b16 %v860
        %v1490 = vunpack.c.h.b16 %v860
        %v1491 = vunpack.c.l.b16 %v861
        %v1492 = vunpack.c.h.b16 %v861
        %v1493 = vunpack.c.l.b16 %v862
        %v1494 = vunpack.c.h.b16 %v862
        %v1495 = vunpack.c.l.b16 %v863
        %v1496 = vunpack.c.h.b16 %v863
        %v1497 = vunpack.c.l.b16 %v864
        %v1498 = vunpack.c.h.b16 %v864
        %v1499 = vunpack.c.l.b16 %v865
        %v1500 = vunpack.c.h.b16 %v865
        %v1501 = vunpack.c.l.b16 %v866
        %v1502 = vunpack.c.h.b16 %v866
        %v1503 = vunpack.c.l.b16 %v867
        %v1504 = vunpack.c.h.b16 %v867
        %v1505 = vunpack.c.l.b16 %v868
        %v1506 = vunpack.c.h.b16 %v868
        %v1507 = vunpack.c.l.b16 %v869
        %v1508 = vunpack.c.h.b16 %v869
        %v1509 = vunpack.c.l.b16 %v870
        %v1510 = vunpack.c.h.b16 %v870
        %v1511 = vunpack.c.l.b16 %v871
        %v1512 = vunpack.c.h.b16 %v871
        %v1513 = vunpack.c.l.b16 %v872
        %v1514 = vunpack.c.h.b16 %v872
        %v1515 = vunpack.c.l.b16 %v873
        %v1516 = vunpack.c.h.b16 %v873
        %v1517 = vunpack.c.l.b16 %v874
        %v1518 = vunpack.c.h.b16 %v874
        %v1519 = vunpack.c.l.b16 %v875
        %v1520 = vunpack.c.h.b16 %v875
        %v1521 = vunpack.c.l.b16 %v876
        %v1522 = vunpack.c.h.b16 %v876
        %v1523 = vunpack.c.l.b16 %v877
        %v1524 = vunpack.c.h.b16 %v877
        %v1525 = vunpack.c.l.b16 %v878
        %v1526 = vunpack.c.h.b16 %v878
        %v1527 = vunpack.c.l.b16 %v879
        %v1528 = vunpack.c.h.b16 %v879
        %v1529 = vunpack.c.l.b16 %v880
        %v1530 = vunpack.c.h.b16 %v880
        %v1531 = vunpack.c.l.b16 %v881
        %v1532 = vunpack.c.h.b16 %v881
        %v1533 = vunpack.c.l.b16 %v882
        %v1534 = vunpack.c.h.b16 %v882
        %v1535 = vunpack.c.l.b16 %v883
        %v1536 = vunpack.c.h.b16 %v883
        %v1537 = vunpack.c.l.b16 %v884
        %v1538 = vunpack.c.h.b16 %v884
        %v1539 = vunpack.c.l.b16 %v885
        %v1540 = vunpack.c.h.b16 %v885
        %v1541 = vunpack.c.l.b16 %v886
        %v1542 = vunpack.c.h.b16 %v886
        %v1543 = vunpack.c.l.b16 %v887
        %v1544 = vunpack.c.h.b16 %v887
        %v1545 = vunpack.c.l.b16 %v888
        %v1546 = vunpack.c.h.b16 %v888
        %v1547 = vunpack.c.l.b16 %v889
        %v1548 = vunpack.c.h.b16 %v889
        %v1549 = vunpack.c.l.b16 %v890
        %v1550 = vunpack.c.h.b16 %v890
        %v1551 = vunpack.c.l.b16 %v891
        %v1552 = vunpack.c.h.b16 %v891
        %v1553 = vunpack.c.l.b16 %v892
        %v1554 = vunpack.c.h.b16 %v892
        %v1555 = vunpack.c.l.b16 %v893
        %v1556 = vunpack.c.h.b16 %v893
        %v1557 = vunpack.c.l.b16 %v894
        %v1558 = vunpack.c.h.b16 %v894
        %v1559 = vunpack.c.l.b16 %v895
        %v1560 = vunpack.c.h.b16 %v895
        %v1561 = vunpack.c.l.b16 %v896
        %v1562 = vunpack.c.h.b16 %v896
        %v1563 = vunpack.c.l.b16 %v897
        %v1564 = vunpack.c.h.b16 %v897
        %v1565 = vunpack.c.l.b16 %v898
        %v1566 = vunpack.c.h.b16 %v898
        %v1567 = vunpack.c.l.b16 %v899
        %v1568 = vunpack.c.h.b16 %v899
        %v1569 = vunpack.c.l.b16 %v900
        %v1570 = vunpack.c.h.b16 %v900
        %v1571 = vunpack.c.l.b16 %v901
        %v1572 = vunpack.c.h.b16 %v901
        %v1573 = vunpack.c.l.b16 %v902
        %v1574 = vunpack.c.h.b16 %v902
        %v1575 = vunpack.c.l.b16 %v903
        %v1576 = vunpack.c.h.b16 %v903
        %v1577 = vunpack.c.l.b16 %v904
        %v1578 = vunpack.c.h.b16 %v904
        %v1579 = vunpack.c.l.b16 %v905
        %v1580 = vunpack.c.h.b16 %v905
        %v1581 = vunpack.c.l.b16 %v906
        %v1582 = vunpack.c.h.b16 %v906
        %v1583 = vunpack.c.l.b16 %v907
        %v1584 = vunpack.c.h.b16 %v907
        %v1585 = vunpack.c.l.b16 %v908
        %v1586 = vunpack.c.h.b16 %v908
        %v1587 = vunpack.c.l.b16 %v909
        %v1588 = vunpack.c.h.b16 %v909
        %v1589 = vunpack.c.l.b16 %v910
        %v1590 = vunpack.c.h.b16 %v910
        %v1591 = vunpack.c.l.b16 %v911
        %v1592 = vunpack.c.h.b16 %v911
        %v1593 = vunpack.c.l.b16 %v912
        %v1594 = vunpack.c.h.b16 %v912
        %v1595 = vunpack.c.l.b16 %v913
        %v1596 = vunpack.c.h.b16 %v913
        %v1597 = vunpack.c.l.b16 %v914
        %v1598 = vunpack.c.h.b16 %v914
        %v1599 = vunpack.c.l.b16 %v915
        %v1600 = vunpack.c.h.b16 %v915
        %v1601 = vunpack.c.l.b16 %v916
        %v1602 = vunpack.c.h.b16 %v916
        %v1603 = vunpack.c.l.b16 %v917
        %v1604 = vunpack.c.h.b16 %v917
        %v1605 = vunpack.c.l.b16 %v918
        %v1606 = vunpack.c.h.b16 %v918
        %v1607 = vunpack.c.l.b16 %v919
        %v1608 = vunpack.c.h.b16 %v919
        %v1609 = vunpack.c.l.b16 %v920
        %v1610 = vunpack.c.h.b16 %v920
        %v1611 = vunpack.c.l.b16 %v921
        %v1612 = vunpack.c.h.b16 %v921
        %v1613 = vunpack.c.l.b16 %v922
        %v1614 = vunpack.c.h.b16 %v922
        %v1615 = vunpack.c.l.b16 %v923
        %v1616 = vunpack.c.h.b16 %v923
        %v1617 = vunpack.c.l.b16 %v924
        %v1618 = vunpack.c.h.b16 %v924
        %v1619 = vunpack.c.l.b16 %v925
        %v1620 = vunpack.c.h.b16 %v925
        %v1621 = vunpack.c.l.b16 %v926
        %v1622 = vunpack.c.h.b16 %v926
        %v1623 = vunpack.c.l.b16 %v927
        %v1624 = vunpack.c.h.b16 %v927
        %v1625 = vunpack.c.l.b16 %v928
        %v1626 = vunpack.c.h.b16 %v928
        %v1627 = vunpack.c.l.b16 %v929
        %v1628 = vunpack.c.h.b16 %v929
        %v1629 = vunpack.c.l.b16 %v930
        %v1630 = vunpack.c.h.b16 %v930
        %v1631 = vunpack.c.l.b16 %v931
        %v1632 = vunpack.c.h.b16 %v931
        %v1633 = vunpack.c.l.b16 %v932
        %v1634 = vunpack.c.h.b16 %v932
        %v1635 = vunpack.c.l.b16 %v933
        %v1636 = vunpack.c.h.b16 %v933
        %v1637 = vunpack.c.l.b16 %v934
        %v1638 = vunpack.c.h.b16 %v934
        %v1639 = vunpack.c.l.b16 %v935
        %v1640 = vunpack.c.h.b16 %v935
        %v1641 = vunpack.c.l.b16 %v936
        %v1642 = vunpack.c.h.b16 %v936
        %v1643 = vunpack.c.l.b16 %v937
        %v1644 = vunpack.c.h.b16 %v937
        %v1645 = vunpack.c.l.b16 %v938
        %v1646 = vunpack.c.h.b16 %v938
        %v1647 = vunpack.c.l.b16 %v939
        %v1648 = vunpack.c.h.b16 %v939
        %v1649 = vunpack.c.l.b16 %v940
        %v1650 = vunpack.c.h.b16 %v940
        %v1651 = vunpack.c.l.b16 %v941
        %v1652 = vunpack.c.h.b16 %v941
        %v1653 = vunpack.c.l.b16 %v942
        %v1654 = vunpack.c.h.b16 %v942
        %v1655 = vunpack.c.l.b16 %v943
        %v1656 = vunpack.c.h.b16 %v943
        %v1657 = vunpack.c.l.b16 %v944
        %v1658 = vunpack.c.h.b16 %v944
        %v1659 = vunpack.c.l.b16 %v945
        %v1660 = vunpack.c.h.b16 %v945
        %v1661 = vunpack.c.l.b16 %v946
        %v1662 = vunpack.c.h.b16 %v946
        %v1663 = vunpack.c.l.b16 %v947
        %v1664 = vunpack.c.h.b16 %v947
        %v1665 = vunpack.c.l.b16 %v948
        %v1666 = vunpack.c.h.b16 %v948
        %v1667 = vunpack.c.l.b16 %v949
        %v1668 = vunpack.c.h.b16 %v949
        %v1669 = vunpack.c.l.b16 %v950
        %v1670 = vunpack.c.h.b16 %v950
        %v1671 = vunpack.c.l.b16 %v951
        %v1672 = vunpack.c.h.b16 %v951
        %v1673 = vunpack.c.l.b16 %v952
        %v1674 = vunpack.c.h.b16 %v952
        %v1675 = vunpack.c.l.b16 %v953
        %v1676 = vunpack.c.h.b16 %v953
        %v1677 = vunpack.c.l.b16 %v954
        %v1678 = vunpack.c.h.b16 %v954
        %v1679 = vunpack.c.l.b16 %v955
        %v1680 = vunpack.c.h.b16 %v955
        %v1681 = vunpack.c.l.b16 %v956
        %v1682 = vunpack.c.h.b16 %v956
        %v1683 = vunpack.c.l.b16 %v957
        %v1684 = vunpack.c.h.b16 %v957
        %v1685 = vunpack.c.l.b16 %v958
        %v1686 = vunpack.c.h.b16 %v958
        %v1687 = vunpack.c.l.b16 %v959
        %v1688 = vunpack.c.h.b16 %v959
        %v1689 = vunpack.c.l.b16 %v960
        %v1690 = vunpack.c.h.b16 %v960
        %v1691 = vunpack.c.l.b16 %v961
        %v1692 = vunpack.c.h.b16 %v961
        %v1693 = vunpack.c.l.b16 %v962
        %v1694 = vunpack.c.h.b16 %v962
        %v1695 = vunpack.c.l.b16 %v963
        %v1696 = vunpack.c.h.b16 %v963
        %v1697 = vunpack.c.l.b16 %v964
        %v1698 = vunpack.c.h.b16 %v964
        %v1699 = vunpack.c.l.b16 %v965
        %v1700 = vunpack.c.h.b16 %v965
        %v1701 = vunpack.c.l.b16 %v966
        %v1702 = vunpack.c.h.b16 %v966
        %v1703 = vunpack.c.l.b16 %v967
        %v1704 = vunpack.c.h.b16 %v967
        %v1705 = vunpack.c.l.b16 %v968
        %v1706 = vunpack.c.h.b16 %v968
        %v1707 = vunpack.c.l.b16 %v969
        %v1708 = vunpack.c.h.b16 %v969
        %v1709 = vunpack.c.l.b16 %v970
        %v1710 = vunpack.c.h.b16 %v970
        %v1711 = vunpack.c.l.b16 %v971
        %v1712 = vunpack.c.h.b16 %v971
        %v1713 = vunpack.c.l.b16 %v972
        %v1714 = vunpack.c.h.b16 %v972
        %v1715 = vunpack.c.l.b16 %v973
        %v1716 = vunpack.c.h.b16 %v973
        %v1717 = vunpack.c.l.b16 %v974
        %v1718 = vunpack.c.h.b16 %v974
        %v1719 = vunpack.c.l.b16 %v975
        %v1720 = vunpack.c.h.b16 %v975
        %v1721 = vunpack.c.l.b16 %v976
        %v1722 = vunpack.c.h.b16 %v976
        %v1723 = vunpack.c.l.b16 %v977
        %v1724 = vunpack.c.h.b16 %v977
        %v1725 = vunpack.c.l.b16 %v978
        %v1726 = vunpack.c.h.b16 %v978
        %v1727 = vunpack.c.l.b16 %v979
        %v1728 = vunpack.c.h.b16 %v979
        %v1729 = vunpack.c.l.b16 %v980
        %v1730 = vunpack.c.h.b16 %v980
        %v1731 = vunpack.c.l.b16 %v981
        %v1732 = vunpack.c.h.b16 %v981
        %v1733 = vunpack.c.l.b16 %v982
        %v1734 = vunpack.c.h.b16 %v982
        %v1735 = vunpack.c.l.b16 %v983
        %v1736 = vunpack.c.h.b16 %v983
        %v1737 = vunpack.c.l.b16 %v984
        %v1738 = vunpack.c.h.b16 %v984
        %v1739 = vunpack.c.l.b16 %v985
        %v1740 = vunpack.c.h.b16 %v985
        %v1741 = vunpack.c.l.b16 %v986
        %v1742 = vunpack.c.h.b16 %v986
        %v1743 = vunpack.c.l.b16 %v987
        %v1744 = vunpack.c.h.b16 %v987
        %v1745 = vunpack.c.l.b16 %v988
        %v1746 = vunpack.c.h.b16 %v988
        %v1747 = vunpack.c.l.b16 %v989
        %v1748 = vunpack.c.h.b16 %v989
        %v1749 = vunpack.c.l.b16 %v990
        %v1750 = vunpack.c.h.b16 %v990
        %v1751 = vunpack.c.l.b16 %v991
        %v1752 = vunpack.c.h.b16 %v991
        %v1753 = vunpack.c.l.b16 %v992
        %v1754 = vunpack.c.h.b16 %v992
        %v1755 = vunpack.c.l.b16 %v993
        %v1756 = vunpack.c.h.b16 %v993
        %v1757 = vunpack.c.l.b16 %v994
        %v1758 = vunpack.c.h.b16 %v994
        %v1759 = vunpack.c.l.b16 %v995
        %v1760 = vunpack.c.h.b16 %v995
        %v1761 = vunpack.c.l.b16 %v996
        %v1762 = vunpack.c.h.b16 %v996
        %v1763 = vunpack.c.l.b16 %v997
        %v1764 = vunpack.c.h.b16 %v997
        %v1765 = vunpack.c.l.b16 %v998
        %v1766 = vunpack.c.h.b16 %v998
        %v1767 = vunpack.c.l.b16 %v999
        %v1768 = vunpack.c.h.b16 %v999
        %v1769 = vunpack.c.l.b16 %v1000
        %v1770 = vunpack.c.h.b16 %v1000
        %v1771 = vunpack.c.l.b16 %v1001
        %v1772 = vunpack.c.h.b16 %v1001
        %v1773 = vunpack.c.l.b16 %v1002
        %v1774 = vunpack.c.h.b16 %v1002
        %v1775 = vunpack.c.l.b16 %v1003
        %v1776 = vunpack.c.h.b16 %v1003
        %v1777 = vunpack.c.l.b16 %v1004
        %v1778 = vunpack.c.h.b16 %v1004
        %v1779 = vunpack.c.l.b16 %v1005
        %v1780 = vunpack.c.h.b16 %v1005
        %v1781 = vunpack.c.l.b16 %v1006
        %v1782 = vunpack.c.h.b16 %v1006
        %v1783 = vunpack.c.l.b16 %v1007
        %v1784 = vunpack.c.h.b16 %v1007
        %v1785 = vunpack.c.l.b16 %v1008
        %v1786 = vunpack.c.h.b16 %v1008
        %v1787 = vunpack.c.l.b16 %v1009
        %v1788 = vunpack.c.h.b16 %v1009
        %v1789 = vunpack.c.l.b16 %v1010
        %v1790 = vunpack.c.h.b16 %v1010
        %v1791 = vunpack.c.l.b16 %v1011
        %v1792 = vunpack.c.h.b16 %v1011
        %v1793 = vunpack.c.l.b16 %v1012
        %v1794 = vunpack.c.h.b16 %v1012
        %v1795 = vunpack.c.l.b16 %v1013
        %v1796 = vunpack.c.h.b16 %v1013
        %v1797 = vunpack.c.l.b16 %v1014
        %v1798 = vunpack.c.h.b16 %v1014
        %v1799 = vunpack.c.l.b16 %v1015
        %v1800 = vunpack.c.h.b16 %v1015
        %v1801 = vunpack.c.l.b16 %v1016
        %v1802 = vunpack.c.h.b16 %v1016
        %v1803 = vunpack.c.l.b16 %v1017
        %v1804 = vunpack.c.h.b16 %v1017
        %v1805 = vunpack.c.l.b16 %v1018
        %v1806 = vunpack.c.h.b16 %v1018
        %v1807 = vunpack.c.l.b16 %v1019
        %v1808 = vunpack.c.h.b16 %v1019
        %v1809 = vunpack.c.l.b16 %v1020
        %v1810 = vunpack.c.h.b16 %v1020
        %v1811 = vpack.c.b16 %v1303, %v1299
        %v1812 = vpack.c.b16 %v1304, %v1300
        %v1813 = vpack.c.b16 %v1305, %v1301
        %v1814 = vpack.c.b16 %v1306, %v1302
        %v1815 = vpack.c.b16 %v1311, %v1307
        %v1816 = vpack.c.b16 %v1312, %v1308
        %v1817 = vpack.c.b16 %v1313, %v1309
        %v1818 = vpack.c.b16 %v1314, %v1310
        %v1819 = vpack.c.b16 %v1319, %v1315
        %v1820 = vpack.c.b16 %v1320, %v1316
        %v1821 = vpack.c.b16 %v1321, %v1317
        %v1822 = vpack.c.b16 %v1322, %v1318
        %v1823 = vpack.c.b16 %v1327, %v1323
        %v1824 = vpack.c.b16 %v1328, %v1324
        %v1825 = vpack.c.b16 %v1329, %v1325
        %v1826 = vpack.c.b16 %v1330, %v1326
        %v1827 = vpack.c.b16 %v1335, %v1331
        %v1828 = vpack.c.b16 %v1336, %v1332
        %v1829 = vpack.c.b16 %v1337, %v1333
        %v1830 = vpack.c.b16 %v1338, %v1334
        %v1831 = vpack.c.b16 %v1343, %v1339
        %v1832 = vpack.c.b16 %v1344, %v1340
        %v1833 = vpack.c.b16 %v1345, %v1341
        %v1834 = vpack.c.b16 %v1346, %v1342
        %v1835 = vpack.c.b16 %v1351, %v1347
        %v1836 = vpack.c.b16 %v1352, %v1348
        %v1837 = vpack.c.b16 %v1353, %v1349
        %v1838 = vpack.c.b16 %v1354, %v1350
        %v1839 = vpack.c.b16 %v1359, %v1355
        %v1840 = vpack.c.b16 %v1360, %v1356
        %v1841 = vpack.c.b16 %v1361, %v1357
        %v1842 = vpack.c.b16 %v1362, %v1358
        %v1843 = vpack.c.b16 %v1367, %v1363
        %v1844 = vpack.c.b16 %v1368, %v1364
        %v1845 = vpack.c.b16 %v1369, %v1365
        %v1846 = vpack.c.b16 %v1370, %v1366
        %v1847 = vpack.c.b16 %v1375, %v1371
        %v1848 = vpack.c.b16 %v1376, %v1372
        %v1849 = vpack.c.b16 %v1377, %v1373
        %v1850 = vpack.c.b16 %v1378, %v1374
        %v1851 = vpack.c.b16 %v1383, %v1379
        %v1852 = vpack.c.b16 %v1384, %v1380
        %v1853 = vpack.c.b16 %v1385, %v1381
        %v1854 = vpack.c.b16 %v1386, %v1382
        %v1855 = vpack.c.b16 %v1391, %v1387
        %v1856 = vpack.c.b16 %v1392, %v1388
        %v1857 = vpack.c.b16 %v1393, %v1389
        %v1858 = vpack.c.b16 %v1394, %v1390
        %v1859 = vpack.c.b16 %v1399, %v1395
        %v1860 = vpack.c.b16 %v1400, %v1396
        %v1861 = vpack.c.b16 %v1401, %v1397
        %v1862 = vpack.c.b16 %v1402, %v1398
        %v1863 = vpack.c.b16 %v1407, %v1403
        %v1864 = vpack.c.b16 %v1408, %v1404
        %v1865 = vpack.c.b16 %v1409, %v1405
        %v1866 = vpack.c.b16 %v1410, %v1406
        %v1867 = vpack.c.b16 %v1415, %v1411
        %v1868 = vpack.c.b16 %v1416, %v1412
        %v1869 = vpack.c.b16 %v1417, %v1413
        %v1870 = vpack.c.b16 %v1418, %v1414
        %v1871 = vpack.c.b16 %v1423, %v1419
        %v1872 = vpack.c.b16 %v1424, %v1420
        %v1873 = vpack.c.b16 %v1425, %v1421
        %v1874 = vpack.c.b16 %v1426, %v1422
        %v1875 = vpack.c.b16 %v1431, %v1427
        %v1876 = vpack.c.b16 %v1432, %v1428
        %v1877 = vpack.c.b16 %v1433, %v1429
        %v1878 = vpack.c.b16 %v1434, %v1430
        %v1879 = vpack.c.b16 %v1439, %v1435
        %v1880 = vpack.c.b16 %v1440, %v1436
        %v1881 = vpack.c.b16 %v1441, %v1437
        %v1882 = vpack.c.b16 %v1442, %v1438
        %v1883 = vpack.c.b16 %v1447, %v1443
        %v1884 = vpack.c.b16 %v1448, %v1444
        %v1885 = vpack.c.b16 %v1449, %v1445
        %v1886 = vpack.c.b16 %v1450, %v1446
        %v1887 = vpack.c.b16 %v1455, %v1451
        %v1888 = vpack.c.b16 %v1456, %v1452
        %v1889 = vpack.c.b16 %v1457, %v1453
        %v1890 = vpack.c.b16 %v1458, %v1454
        %v1891 = vpack.c.b16 %v1463, %v1459
        %v1892 = vpack.c.b16 %v1464, %v1460
        %v1893 = vpack.c.b16 %v1465, %v1461
        %v1894 = vpack.c.b16 %v1466, %v1462
        %v1895 = vpack.c.b16 %v1471, %v1467
        %v1896 = vpack.c.b16 %v1472, %v1468
        %v1897 = vpack.c.b16 %v1473, %v1469
        %v1898 = vpack.c.b16 %v1474, %v1470
        %v1899 = vpack.c.b16 %v1479, %v1475
        %v1900 = vpack.c.b16 %v1480, %v1476
        %v1901 = vpack.c.b16 %v1481, %v1477
        %v1902 = vpack.c.b16 %v1482, %v1478
        %v1903 = vpack.c.b16 %v1487, %v1483
        %v1904 = vpack.c.b16 %v1488, %v1484
        %v1905 = vpack.c.b16 %v1489, %v1485
        %v1906 = vpack.c.b16 %v1490, %v1486
        %v1907 = vpack.c.b16 %v1495, %v1491
        %v1908 = vpack.c.b16 %v1496, %v1492
        %v1909 = vpack.c.b16 %v1497, %v1493
        %v1910 = vpack.c.b16 %v1498, %v1494
        %v1911 = vpack.c.b16 %v1503, %v1499
        %v1912 = vpack.c.b16 %v1504, %v1500
        %v1913 = vpack.c.b16 %v1505, %v1501
        %v1914 = vpack.c.b16 %v1506, %v1502
        %v1915 = vpack.c.b16 %v1511, %v1507
        %v1916 = vpack.c.b16 %v1512, %v1508
        %v1917 = vpack.c.b16 %v1513, %v1509
        %v1918 = vpack.c.b16 %v1514, %v1510
        %v1919 = vpack.c.b16 %v1519, %v1515
        %v1920 = vpack.c.b16 %v1520, %v1516
        %v1921 = vpack.c.b16 %v1521, %v1517
        %v1922 = vpack.c.b16 %v1522, %v1518
        %v1923 = vpack.c.b16 %v1527, %v1523
        %v1924 = vpack.c.b16 %v1528, %v1524
        %v1925 = vpack.c.b16 %v1529, %v1525
        %v1926 = vpack.c.b16 %v1530, %v1526
        %v1927 = vpack.c.b16 %v1535, %v1531
        %v1928 = vpack.c.b16 %v1536, %v1532
        %v1929 = vpack.c.b16 %v1537, %v1533
        %v1930 = vpack.c.b16 %v1538, %v1534
        %v1931 = vpack.c.b16 %v1543, %v1539
        %v1932 = vpack.c.b16 %v1544, %v1540
        %v1933 = vpack.c.b16 %v1545, %v1541
        %v1934 = vpack.c.b16 %v1546, %v1542
        %v1935 = vpack.c.b16 %v1551, %v1547
        %v1936 = vpack.c.b16 %v1552, %v1548
        %v1937 = vpack.c.b16 %v1553, %v1549
        %v1938 = vpack.c.b16 %v1554, %v1550
        %v1939 = vpack.c.b16 %v1559, %v1555
        %v1940 = vpack.c.b16 %v1560, %v1556
        %v1941 = vpack.c.b16 %v1561, %v1557
        %v1942 = vpack.c.b16 %v1562, %v1558
        %v1943 = vpack.c.b16 %v1567, %v1563
        %v1944 = vpack.c.b16 %v1568, %v1564
        %v1945 = vpack.c.b16 %v1569, %v1565
        %v1946 = vpack.c.b16 %v1570, %v1566
        %v1947 = vpack.c.b16 %v1575, %v1571
        %v1948 = vpack.c.b16 %v1576, %v1572
        %v1949 = vpack.c.b16 %v1577, %v1573
        %v1950 = vpack.c.b16 %v1578, %v1574
        %v1951 = vpack.c.b16 %v1583, %v1579
        %v1952 = vpack.c.b16 %v1584, %v1580
        %v1953 = vpack.c.b16 %v1585, %v1581
        %v1954 = vpack.c.b16 %v1586, %v1582
        %v1955 = vpack.c.b16 %v1591, %v1587
        %v1956 = vpack.c.b16 %v1592, %v1588
        %v1957 = vpack.c.b16 %v1593, %v1589
        %v1958 = vpack.c.b16 %v1594, %v1590
        %v1959 = vpack.c.b16 %v1599, %v1595
        %v1960 = vpack.c.b16 %v1600, %v1596
        %v1961 = vpack.c.b16 %v1601, %v1597
        %v1962 = vpack.c.b16 %v1602, %v1598
        %v1963 = vpack.c.b16 %v1607, %v1603
        %v1964 = vpack.c.b16 %v1608, %v1604
        %v1965 = vpack.c.b16 %v1609, %v1605
        %v1966 = vpack.c.b16 %v1610, %v1606
        %v1967 = vpack.c.b16 %v1615, %v1611
        %v1968 = vpack.c.b16 %v1616, %v1612
        %v1969 = vpack.c.b16 %v1617, %v1613
        %v1970 = vpack.c.b16 %v1618, %v1614
        %v1971 = vpack.c.b16 %v1623, %v1619
        %v1972 = vpack.c.b16 %v1624, %v1620
        %v1973 = vpack.c.b16 %v1625, %v1621
        %v1974 = vpack.c.b16 %v1626, %v1622
        %v1975 = vpack.c.b16 %v1631, %v1627
        %v1976 = vpack.c.b16 %v1632, %v1628
        %v1977 = vpack.c.b16 %v1633, %v1629
        %v1978 = vpack.c.b16 %v1634, %v1630
        %v1979 = vpack.c.b16 %v1639, %v1635
        %v1980 = vpack.c.b16 %v1640, %v1636
        %v1981 = vpack.c.b16 %v1641, %v1637
        %v1982 = vpack.c.b16 %v1642, %v1638
        %v1983 = vpack.c.b16 %v1647, %v1643
        %v1984 = vpack.c.b16 %v1648, %v1644
        %v1985 = vpack.c.b16 %v1649, %v1645
        %v1986 = vpack.c.b16 %v1650, %v1646
        %v1987 = vpack.c.b16 %v1655, %v1651
        %v1988 = vpack.c.b16 %v1656, %v1652
        %v1989 = vpack.c.b16 %v1657, %v1653
        %v1990 = vpack.c.b16 %v1658, %v1654
        %v1991 = vpack.c.b16 %v1663, %v1659
        %v1992 = vpack.c.b16 %v1664, %v1660
        %v1993 = vpack.c.b16 %v1665, %v1661
        %v1994 = vpack.c.b16 %v1666, %v1662
        %v1995 = vpack.c.b16 %v1671, %v1667
        %v1996 = vpack.c.b16 %v1672, %v1668
        %v1997 = vpack.c.b16 %v1673, %v1669
        %v1998 = vpack.c.b16 %v1674, %v1670
        %v1999 = vpack.c.b16 %v1679, %v1675
        %v2000 = vpack.c.b16 %v1680, %v1676
        %v2001 = vpack.c.b16 %v1681, %v1677
        %v2002 = vpack.c.b16 %v1682, %v1678
        %v2003 = vpack.c.b16 %v1687, %v1683
        %v2004 = vpack.c.b16 %v1688, %v1684
        %v2005 = vpack.c.b16 %v1689, %v1685
        %v2006 = vpack.c.b16 %v1690, %v1686
        %v2007 = vpack.c.b16 %v1695, %v1691
        %v2008 = vpack.c.b16 %v1696, %v1692
        %v2009 = vpack.c.b16 %v1697, %v1693
        %v2010 = vpack.c.b16 %v1698, %v1694
        %v2011 = vpack.c.b16 %v1703, %v1699
        %v2012 = vpack.c.b16 %v1704, %v1700
        %v2013 = vpack.c.b16 %v1705, %v1701
        %v2014 = vpack.c.b16 %v1706, %v1702
        %v2015 = vpack.c.b16 %v1711, %v1707
        %v2016 = vpack.c.b16 %v1712, %v1708
        %v2017 = vpack.c.b16 %v1713, %v1709
        %v2018 = vpack.c.b16 %v1714, %v1710
        %v2019 = vpack.c.b16 %v1719, %v1715
        %v2020 = vpack.c.b16 %v1720, %v1716
        %v2021 = vpack.c.b16 %v1721, %v1717
        %v2022 = vpack.c.b16 %v1722, %v1718
        %v2023 = vpack.c.b16 %v1727, %v1723
        %v2024 = vpack.c.b16 %v1728, %v1724
        %v2025 = vpack.c.b16 %v1729, %v1725
        %v2026 = vpack.c.b16 %v1730, %v1726
        %v2027 = vpack.c.b16 %v1735, %v1731
        %v2028 = vpack.c.b16 %v1736, %v1732
        %v2029 = vpack.c.b16 %v1737, %v1733
        %v2030 = vpack.c.b16 %v1738, %v1734
        %v2031 = vpack.c.b16 %v1743, %v1739
        %v2032 = vpack.c.b16 %v1744, %v1740
        %v2033 = vpack.c.b16 %v1745, %v1741
        %v2034 = vpack.c.b16 %v1746, %v1742
        %v2035 = vpack.c.b16 %v1751, %v1747
        %v2036 = vpack.c.b16 %v1752, %v1748
        %v2037 = vpack.c.b16 %v1753, %v1749
        %v2038 = vpack.c.b16 %v1754, %v1750
        %v2039 = vpack.c.b16 %v1759, %v1755
        %v2040 = vpack.c.b16 %v1760, %v1756
        %v2041 = vpack.c.b16 %v1761, %v1757
        %v2042 = vpack.c.b16 %v1762, %v1758
        %v2043 = vpack.c.b16 %v1767, %v1763
        %v2044 = vpack.c.b16 %v1768, %v1764
        %v2045 = vpack.c.b16 %v1769, %v1765
        %v2046 = vpack.c.b16 %v1770, %v1766
        %v2047 = vpack.c.b16 %v1775, %v1771
        %v2048 = vpack.c.b16 %v1776, %v1772
        %v2049 = vpack.c.b16 %v1777, %v1773
        %v2050 = vpack.c.b16 %v1778, %v1774
        %v2051 = vpack.c.b16 %v1783, %v1779
        %v2052 = vpack.c.b16 %v1784, %v1780
        %v2053 = vpack.c.b16 %v1785, %v1781
        %v2054 = vpack.c.b16 %v1786, %v1782
        %v2055 = vpack.c.b16 %v1791, %v1787
        %v2056 = vpack.c.b16 %v1792, %v1788
        %v2057 = vpack.c.b16 %v1793, %v1789
        %v2058 = vpack.c.b16 %v1794, %v1790
        %v2059 = vpack.c.b16 %v1799, %v1795
        %v2060 = vpack.c.b16 %v1800, %v1796
        %v2061 = vpack.c.b16 %v1801, %v1797
        %v2062 = vpack.c.b16 %v1802, %v1798
        %v2063 = vpack.c.b16 %v1807, %v1803
        %v2064 = vpack.c.b16 %v1808, %v1804
        %v2065 = vpack.c.b16 %v1809, %v1805
        %v2066 = vpack.c.b16 %v1810, %v1806
        %2323 = vmatprep.subr.bf16.mxu0 %v1812
        %2324 = vmatpush1.bf16.msra.mxu0 %v1811
        %2325 = vmatprep.subr.bf16.mxu0 %v1816
        %2326 = vmatpush1.bf16.msra.mxu0 %v1815
        %2327 = vmatprep.subr.bf16.mxu0 %v1820
        %2328 = vmatpush1.bf16.msra.mxu0 %v1819
        %2329 = vmatprep.subr.bf16.mxu0 %v1824
        %2330 = vmatpush1.bf16.msra.mxu0 %v1823
        %2331 = vmatprep.subr.bf16.mxu0 %v1828
        %2332 = vmatpush1.bf16.msra.mxu0 %v1827
        %2333 = vmatprep.subr.bf16.mxu0 %v1832
        %2334 = vmatpush1.bf16.msra.mxu0 %v1831
        %2335 = vmatprep.subr.bf16.mxu0 %v1836
        %2336 = vmatpush1.bf16.msra.mxu0 %v1835
        %2337 = vmatprep.subr.bf16.mxu0 %v1840
        %2338 = vmatpush1.bf16.msra.mxu0 %v1839
        %2339 = vmatprep.subr.bf16.mxu0 %v1844
        %2340 = vmatpush1.bf16.msra.mxu0 %v1843
        %2341 = vmatprep.subr.bf16.mxu0 %v1848
        %2342 = vmatpush1.bf16.msra.mxu0 %v1847
        %2343 = vmatprep.subr.bf16.mxu0 %v1852
        %2344 = vmatpush1.bf16.msra.mxu0 %v1851
        %2345 = vmatprep.subr.bf16.mxu0 %v1856
        %2346 = vmatpush1.bf16.msra.mxu0 %v1855
        %2347 = vmatprep.subr.bf16.mxu0 %v1860
        %2348 = vmatpush1.bf16.msra.mxu0 %v1859
        %2349 = vmatprep.subr.bf16.mxu0 %v1864
        %2350 = vmatpush1.bf16.msra.mxu0 %v1863
        %2351 = vmatprep.subr.bf16.mxu0 %v1868
        %2352 = vmatpush1.bf16.msra.mxu0 %v1867
        %2353 = vmatprep.subr.bf16.mxu0 %v1872
        %2354 = vmatpush1.bf16.msra.mxu0 %v1871
        %2355 = vmatprep.mubr.bf16.mxu0 %v638
        %2356 = vmatmul.mubr.bf16.gmra.mrb[0].mxu0 %v637
        %v2357 = vpop.f32.mrb[0].mxu0
        %v2358 = vadd.f32 %v1026, %v2357
        %v2359 = vpop.f32.mrb[0].mxu0
        %v2360 = vadd.f32 %v1030, %v2359
        %v2361 = vpop.f32.mrb[0].mxu0
        %v2362 = vadd.f32 %v1026, %v2361
        %v2363 = vpop.f32.mrb[0].mxu0
        %v2364 = vadd.f32 %v1030, %v2363
        %2365 = vmatprep.mubr.bf16.mxu0 %v646
        %2366 = vmatmul.mubr.bf16.gmra.mrb[0].mxu0 %v645
        %v2367 = vpop.f32.mrb[0].mxu0
        %v2368 = vadd.f32 %v1026, %v2367
        %v2369 = vpop.f32.mrb[0].mxu0
        %v2370 = vadd.f32 %v1030, %v2369
        %v2371 = vpop.f32.mrb[0].mxu0
        %v2372 = vadd.f32 %v1026, %v2371
        %v2373 = vpop.f32.mrb[0].mxu0
        %v2374 = vadd.f32 %v1030, %v2373
        %2375 = vmatprep.mubr.bf16.mxu0 %v654
        %2376 = vmatmul.mubr.bf16.gmra.mrb[0].mxu0 %v653
        %v2377 = vpop.f32.mrb[0].mxu0
        %v2378 = vadd.f32 %v1026, %v2377
        %v2379 = vpop.f32.mrb[0].mxu0
        %v2380 = vadd.f32 %v1030, %v2379
        %v2381 = vpop.f32.mrb[0].mxu0
        %v2382 = vadd.f32 %v1026, %v2381
        %v2383 = vpop.f32.mrb[0].mxu0
        %v2384 = vadd.f32 %v1030, %v2383
        %2385 = vmatprep.mubr.bf16.mxu0 %v662
        %2386 = vmatmul.mubr.bf16.gmra.mrb[0].mxu0 %v661
        %v2387 = vpop.f32.mrb[0].mxu0
        %v2388 = vadd.f32 %v1026, %v2387
        %v2389 = vpop.f32.mrb[0].mxu0
        %v2390 = vadd.f32 %v1030, %v2389
        %v2391 = vpop.f32.mrb[0].mxu0
        %v2392 = vadd.f32 %v1026, %v2391
        %v2393 = vpop.f32.mrb[0].mxu0
        %v2394 = vadd.f32 %v1030, %v2393
        %2395 = vmatprep.mubr.bf16.mxu0 %v670
        %2396 = vmatmul.mubr.bf16.gmra.mrb[0].mxu0 %v669
        %v2397 = vpop.f32.mrb[0].mxu0
        %v2398 = vadd.f32 %v1026, %v2397
        %v2399 = vpop.f32.mrb[0].mxu0
        %v2400 = vadd.f32 %v1030, %v2399
        %v2401 = vpop.f32.mrb[0].mxu0
        %v2402 = vadd.f32 %v1026, %v2401
        %v2403 = vpop.f32.mrb[0].mxu0
        %v2404 = vadd.f32 %v1030, %v2403
        %2405 = vmatprep.mubr.bf16.mxu0 %v678
        %2406 = vmatmul.mubr.bf16.gmra.mrb[0].mxu0 %v677
        %v2407 = vpop.f32.mrb[0].mxu0
        %v2408 = vadd.f32 %v1026, %v2407
        %v2409 = vpop.f32.mrb[0].mxu0
        %v2410 = vadd.f32 %v1030, %v2409
        %v2411 = vpop.f32.mrb[0].mxu0
        %v2412 = vadd.f32 %v1026, %v2411
        %v2413 = vpop.f32.mrb[0].mxu0
        %v2414 = vadd.f32 %v1030, %v2413
        %2415 = vmatprep.mubr.bf16.mxu0 %v686
        %2416 = vmatmul.mubr.bf16.gmra.mrb[0].mxu0 %v685
        %v2417 = vpop.f32.mrb[0].mxu0
        %v2418 = vadd.f32 %v1026, %v2417
        %v2419 = vpop.f32.mrb[0].mxu0
        %v2420 = vadd.f32 %v1030, %v2419
        %v2421 = vpop.f32.mrb[0].mxu0
        %v2422 = vadd.f32 %v1026, %v2421
        %v2423 = vpop.f32.mrb[0].mxu0
        %v2424 = vadd.f32 %v1030, %v2423
        %2425 = vmatprep.mubr.bf16.mxu0 %v694
        %2426 = vmatmul.mubr.bf16.gmra.mrb[0].mxu0 %v693
        %v2427 = vpop.f32.mrb[0].mxu0
        %v2428 = vadd.f32 %v1026, %v2427
        %v2429 = vpop.f32.mrb[0].mxu0
        %v2430 = vadd.f32 %v1030, %v2429
        %v2431 = vpop.f32.mrb[0].mxu0
        %v2432 = vadd.f32 %v1026, %v2431
        %v2433 = vpop.f32.mrb[0].mxu0
        %v2434 = vadd.f32 %v1030, %v2433
        %2435 = vmatprep.mubr.bf16.mxu0 %v702
        %2436 = vmatmul.mubr.bf16.gmra.mrb[0].mxu0 %v701
        %v2437 = vpop.f32.mrb[0].mxu0
        %v2438 = vadd.f32 %v1026, %v2437
        %v2439 = vpop.f32.mrb[0].mxu0
        %v2440 = vadd.f32 %v1030, %v2439
        %v2441 = vpop.f32.mrb[0].mxu0
        %v2442 = vadd.f32 %v1026, %v2441
        %v2443 = vpop.f32.mrb[0].mxu0
        %v2444 = vadd.f32 %v1030, %v2443
        %2445 = vmatprep.mubr.bf16.mxu0 %v710
        %2446 = vmatmul.mubr.bf16.gmra.mrb[0].mxu0 %v709
        %v2447 = vpop.f32.mrb[0].mxu0
        %v2448 = vadd.f32 %v1026, %v2447
        %v2449 = vpop.f32.mrb[0].mxu0
        %v2450 = vadd.f32 %v1030, %v2449
        %v2451 = vpop.f32.mrb[0].mxu0
        %v2452 = vadd.f32 %v1026, %v2451
        %v2453 = vpop.f32.mrb[0].mxu0
        %v2454 = vadd.f32 %v1030, %v2453
        %2455 = vmatprep.mubr.bf16.mxu0 %v718
        %2456 = vmatmul.mubr.bf16.gmra.mrb[0].mxu0 %v717
        %v2457 = vpop.f32.mrb[0].mxu0
        %v2458 = vadd.f32 %v1026, %v2457
        %v2459 = vpop.f32.mrb[0].mxu0
        %v2460 = vadd.f32 %v1030, %v2459
        %v2461 = vpop.f32.mrb[0].mxu0
        %v2462 = vadd.f32 %v1026, %v2461
        %v2463 = vpop.f32.mrb[0].mxu0
        %v2464 = vadd.f32 %v1030, %v2463
        %2465 = vmatprep.mubr.bf16.mxu0 %v726
        %2466 = vmatmul.mubr.bf16.gmra.mrb[0].mxu0 %v725
        %v2467 = vpop.f32.mrb[0].mxu0
        %v2468 = vadd.f32 %v1026, %v2467
        %v2469 = vpop.f32.mrb[0].mxu0
        %v2470 = vadd.f32 %v1030, %v2469
        %v2471 = vpop.f32.mrb[0].mxu0
        %v2472 = vadd.f32 %v1026, %v2471
        %v2473 = vpop.f32.mrb[0].mxu0
        %v2474 = vadd.f32 %v1030, %v2473
        %2475 = vmatprep.mubr.bf16.mxu0 %v734
        %2476 = vmatmul.mubr.bf16.gmra.mrb[0].mxu0 %v733
        %v2477 = vpop.f32.mrb[0].mxu0
        %v2478 = vadd.f32 %v1026, %v2477
        %v2479 = vpop.f32.mrb[0].mxu0
        %v2480 = vadd.f32 %v1030, %v2479
        %v2481 = vpop.f32.mrb[0].mxu0
        %v2482 = vadd.f32 %v1026, %v2481
        %v2483 = vpop.f32.mrb[0].mxu0
        %v2484 = vadd.f32 %v1030, %v2483
        %2485 = vmatprep.mubr.bf16.mxu0 %v742
        %2486 = vmatmul.mubr.bf16.gmra.mrb[0].mxu0 %v741
        %v2487 = vpop.f32.mrb[0].mxu0
        %v2488 = vadd.f32 %v1026, %v2487
        %v2489 = vpop.f32.mrb[0].mxu0
        %v2490 = vadd.f32 %v1030, %v2489
        %v2491 = vpop.f32.mrb[0].mxu0
        %v2492 = vadd.f32 %v1026, %v2491
        %v2493 = vpop.f32.mrb[0].mxu0
        %v2494 = vadd.f32 %v1030, %v2493
        %2495 = vmatprep.mubr.bf16.mxu0 %v750
        %2496 = vmatmul.mubr.bf16.gmra.mrb[0].mxu0 %v749
        %v2497 = vpop.f32.mrb[0].mxu0
        %v2498 = vadd.f32 %v1026, %v2497
        %v2499 = vpop.f32.mrb[0].mxu0
        %v2500 = vadd.f32 %v1030, %v2499
        %v2501 = vpop.f32.mrb[0].mxu0
        %v2502 = vadd.f32 %v1026, %v2501
        %v2503 = vpop.f32.mrb[0].mxu0
        %v2504 = vadd.f32 %v1030, %v2503
        %2505 = vmatprep.mubr.bf16.mxu0 %v758
        %2506 = vmatmul.mubr.bf16.gmra.mrb[0].mxu0 %v757
        %v2507 = vpop.f32.mrb[0].mxu0
        %v2508 = vadd.f32 %v1026, %v2507
        %v2509 = vpop.f32.mrb[0].mxu0
        %v2510 = vadd.f32 %v1030, %v2509
        %v2511 = vpop.f32.mrb[0].mxu0
        %v2512 = vadd.f32 %v1026, %v2511
        %v2513 = vpop.f32.mrb[0].mxu0
        %v2514 = vadd.f32 %v1030, %v2513
        %2515 = vdwg.mxu0
        %2516 = vmatprep.subr.bf16.mxu0 %v1876
        %2517 = vmatpush1.bf16.msra.mxu0 %v1875
        %2518 = vmatprep.subr.bf16.mxu0 %v1880
        %2519 = vmatpush1.bf16.msra.mxu0 %v1879
        %2520 = vmatprep.subr.bf16.mxu0 %v1884
        %2521 = vmatpush1.bf16.msra.mxu0 %v1883
        %2522 = vmatprep.subr.bf16.mxu0 %v1888
        %2523 = vmatpush1.bf16.msra.mxu0 %v1887
        %2524 = vmatprep.subr.bf16.mxu0 %v1892
        %2525 = vmatpush1.bf16.msra.mxu0 %v1891
        %2526 = vmatprep.subr.bf16.mxu0 %v1896
        %2527 = vmatpush1.bf16.msra.mxu0 %v1895
        %2528 = vmatprep.subr.bf16.mxu0 %v1900
        %2529 = vmatpush1.bf16.msra.mxu0 %v1899
        %2530 = vmatprep.subr.bf16.mxu0 %v1904
        %2531 = vmatpush1.bf16.msra.mxu0 %v1903
        %2532 = vmatprep.subr.bf16.mxu0 %v1908
        %2533 = vmatpush1.bf16.msra.mxu0 %v1907
        %2534 = vmatprep.subr.bf16.mxu0 %v1912
        %2535 = vmatpush1.bf16.msra.mxu0 %v1911
        %2536 = vmatprep.subr.bf16.mxu0 %v1916
        %2537 = vmatpush1.bf16.msra.mxu0 %v1915
        %2538 = vmatprep.subr.bf16.mxu0 %v1920
        %2539 = vmatpush1.bf16.msra.mxu0 %v1919
        %2540 = vmatprep.subr.bf16.mxu0 %v1924
        %2541 = vmatpush1.bf16.msra.mxu0 %v1923
        %2542 = vmatprep.subr.bf16.mxu0 %v1928
        %2543 = vmatpush1.bf16.msra.mxu0 %v1927
        %2544 = vmatprep.subr.bf16.mxu0 %v1932
        %2545 = vmatpush1.bf16.msra.mxu0 %v1931
        %2546 = vmatprep.subr.bf16.mxu0 %v1936
        %2547 = vmatpush1.bf16.msra.mxu0 %v1935
        %2548 = vmatprep.mubr.bf16.mxu0 %v640
        %2549 = vmatmul.mubr.bf16.gmra.mrb[0].mxu0 %v639
        %v2550 = vpop.f32.mrb[0].mxu0
        %v2551 = vadd.f32 %v2358, %v2550
        %v2552 = vpop.f32.mrb[0].mxu0
        %v2553 = vadd.f32 %v2360, %v2552
        %v2554 = vpop.f32.mrb[0].mxu0
        %v2555 = vadd.f32 %v2362, %v2554
        %v2556 = vpop.f32.mrb[0].mxu0
        %v2557 = vadd.f32 %v2364, %v2556
        %2558 = vmatprep.mubr.bf16.mxu0 %v648
        %2559 = vmatmul.mubr.bf16.gmra.mrb[0].mxu0 %v647
        %v2560 = vpop.f32.mrb[0].mxu0
        %v2561 = vadd.f32 %v2368, %v2560
        %v2562 = vpop.f32.mrb[0].mxu0
        %v2563 = vadd.f32 %v2370, %v2562
        %v2564 = vpop.f32.mrb[0].mxu0
        %v2565 = vadd.f32 %v2372, %v2564
        %v2566 = vpop.f32.mrb[0].mxu0
        %v2567 = vadd.f32 %v2374, %v2566
        %2568 = vmatprep.mubr.bf16.mxu0 %v656
        %2569 = vmatmul.mubr.bf16.gmra.mrb[0].mxu0 %v655
        %v2570 = vpop.f32.mrb[0].mxu0
        %v2571 = vadd.f32 %v2378, %v2570
        %v2572 = vpop.f32.mrb[0].mxu0
        %v2573 = vadd.f32 %v2380, %v2572
        %v2574 = vpop.f32.mrb[0].mxu0
        %v2575 = vadd.f32 %v2382, %v2574
        %v2576 = vpop.f32.mrb[0].mxu0
        %v2577 = vadd.f32 %v2384, %v2576
        %2578 = vmatprep.mubr.bf16.mxu0 %v664
        %2579 = vmatmul.mubr.bf16.gmra.mrb[0].mxu0 %v663
        %v2580 = vpop.f32.mrb[0].mxu0
        %v2581 = vadd.f32 %v2388, %v2580
        %v2582 = vpop.f32.mrb[0].mxu0
        %v2583 = vadd.f32 %v2390, %v2582
        %v2584 = vpop.f32.mrb[0].mxu0
        %v2585 = vadd.f32 %v2392, %v2584
        %v2586 = vpop.f32.mrb[0].mxu0
        %v2587 = vadd.f32 %v2394, %v2586
        %2588 = vmatprep.mubr.bf16.mxu0 %v672
        %2589 = vmatmul.mubr.bf16.gmra.mrb[0].mxu0 %v671
        %v2590 = vpop.f32.mrb[0].mxu0
        %v2591 = vadd.f32 %v2398, %v2590
        %v2592 = vpop.f32.mrb[0].mxu0
        %v2593 = vadd.f32 %v2400, %v2592
        %v2594 = vpop.f32.mrb[0].mxu0
        %v2595 = vadd.f32 %v2402, %v2594
        %v2596 = vpop.f32.mrb[0].mxu0
        %v2597 = vadd.f32 %v2404, %v2596
        %2598 = vmatprep.mubr.bf16.mxu0 %v680
        %2599 = vmatmul.mubr.bf16.gmra.mrb[0].mxu0 %v679
        %v2600 = vpop.f32.mrb[0].mxu0
        %v2601 = vadd.f32 %v2408, %v2600
        %v2602 = vpop.f32.mrb[0].mxu0
        %v2603 = vadd.f32 %v2410, %v2602
        %v2604 = vpop.f32.mrb[0].mxu0
        %v2605 = vadd.f32 %v2412, %v2604
        %v2606 = vpop.f32.mrb[0].mxu0
        %v2607 = vadd.f32 %v2414, %v2606
        %2608 = vmatprep.mubr.bf16.mxu0 %v688
        %2609 = vmatmul.mubr.bf16.gmra.mrb[0].mxu0 %v687
        %v2610 = vpop.f32.mrb[0].mxu0
        %v2611 = vadd.f32 %v2418, %v2610
        %v2612 = vpop.f32.mrb[0].mxu0
        %v2613 = vadd.f32 %v2420, %v2612
        %v2614 = vpop.f32.mrb[0].mxu0
        %v2615 = vadd.f32 %v2422, %v2614
        %v2616 = vpop.f32.mrb[0].mxu0
        %v2617 = vadd.f32 %v2424, %v2616
        %2618 = vmatprep.mubr.bf16.mxu0 %v696
        %2619 = vmatmul.mubr.bf16.gmra.mrb[0].mxu0 %v695
        %v2620 = vpop.f32.mrb[0].mxu0
        %v2621 = vadd.f32 %v2428, %v2620
        %v2622 = vpop.f32.mrb[0].mxu0
        %v2623 = vadd.f32 %v2430, %v2622
        %v2624 = vpop.f32.mrb[0].mxu0
        %v2625 = vadd.f32 %v2432, %v2624
        %v2626 = vpop.f32.mrb[0].mxu0
        %v2627 = vadd.f32 %v2434, %v2626
        %2628 = vmatprep.mubr.bf16.mxu0 %v704
        %2629 = vmatmul.mubr.bf16.gmra.mrb[0].mxu0 %v703
        %v2630 = vpop.f32.mrb[0].mxu0
        %v2631 = vadd.f32 %v2438, %v2630
        %v2632 = vpop.f32.mrb[0].mxu0
        %v2633 = vadd.f32 %v2440, %v2632
        %v2634 = vpop.f32.mrb[0].mxu0
        %v2635 = vadd.f32 %v2442, %v2634
        %v2636 = vpop.f32.mrb[0].mxu0
        %v2637 = vadd.f32 %v2444, %v2636
        %2638 = vmatprep.mubr.bf16.mxu0 %v712
        %2639 = vmatmul.mubr.bf16.gmra.mrb[0].mxu0 %v711
        %v2640 = vpop.f32.mrb[0].mxu0
        %v2641 = vadd.f32 %v2448, %v2640
        %v2642 = vpop.f32.mrb[0].mxu0
        %v2643 = vadd.f32 %v2450, %v2642
        %v2644 = vpop.f32.mrb[0].mxu0
        %v2645 = vadd.f32 %v2452, %v2644
        %v2646 = vpop.f32.mrb[0].mxu0
        %v2647 = vadd.f32 %v2454, %v2646
        %2648 = vmatprep.mubr.bf16.mxu0 %v720
        %2649 = vmatmul.mubr.bf16.gmra.mrb[0].mxu0 %v719
        %v2650 = vpop.f32.mrb[0].mxu0
        %v2651 = vadd.f32 %v2458, %v2650
        %v2652 = vpop.f32.mrb[0].mxu0
        %v2653 = vadd.f32 %v2460, %v2652
        %v2654 = vpop.f32.mrb[0].mxu0
        %v2655 = vadd.f32 %v2462, %v2654
        %v2656 = vpop.f32.mrb[0].mxu0
        %v2657 = vadd.f32 %v2464, %v2656
        %2658 = vmatprep.mubr.bf16.mxu0 %v728
        %2659 = vmatmul.mubr.bf16.gmra.mrb[0].mxu0 %v727
        %v2660 = vpop.f32.mrb[0].mxu0
        %v2661 = vadd.f32 %v2468, %v2660
        %v2662 = vpop.f32.mrb[0].mxu0
        %v2663 = vadd.f32 %v2470, %v2662
        %v2664 = vpop.f32.mrb[0].mxu0
        %v2665 = vadd.f32 %v2472, %v2664
        %v2666 = vpop.f32.mrb[0].mxu0
        %v2667 = vadd.f32 %v2474, %v2666
        %2668 = vmatprep.mubr.bf16.mxu0 %v736
        %2669 = vmatmul.mubr.bf16.gmra.mrb[0].mxu0 %v735
        %v2670 = vpop.f32.mrb[0].mxu0
        %v2671 = vadd.f32 %v2478, %v2670
        %v2672 = vpop.f32.mrb[0].mxu0
        %v2673 = vadd.f32 %v2480, %v2672
        %v2674 = vpop.f32.mrb[0].mxu0
        %v2675 = vadd.f32 %v2482, %v2674
        %v2676 = vpop.f32.mrb[0].mxu0
        %v2677 = vadd.f32 %v2484, %v2676
        %2678 = vmatprep.mubr.bf16.mxu0 %v744
        %2679 = vmatmul.mubr.bf16.gmra.mrb[0].mxu0 %v743
        %v2680 = vpop.f32.mrb[0].mxu0
        %v2681 = vadd.f32 %v2488, %v2680
        %v2682 = vpop.f32.mrb[0].mxu0
        %v2683 = vadd.f32 %v2490, %v2682
        %v2684 = vpop.f32.mrb[0].mxu0
        %v2685 = vadd.f32 %v2492, %v2684
        %v2686 = vpop.f32.mrb[0].mxu0
        %v2687 = vadd.f32 %v2494, %v2686
        %2688 = vmatprep.mubr.bf16.mxu0 %v752
        %2689 = vmatmul.mubr.bf16.gmra.mrb[0].mxu0 %v751
        %v2690 = vpop.f32.mrb[0].mxu0
        %v2691 = vadd.f32 %v2498, %v2690
        %v2692 = vpop.f32.mrb[0].mxu0
        %v2693 = vadd.f32 %v2500, %v2692
        %v2694 = vpop.f32.mrb[0].mxu0
        %v2695 = vadd.f32 %v2502, %v2694
        %v2696 = vpop.f32.mrb[0].mxu0
        %v2697 = vadd.f32 %v2504, %v2696
        %2698 = vmatprep.mubr.bf16.mxu0 %v760
        %2699 = vmatmul.mubr.bf16.gmra.mrb[0].mxu0 %v759
        %v2700 = vpop.f32.mrb[0].mxu0
        %v2701 = vadd.f32 %v2508, %v2700
        %v2702 = vpop.f32.mrb[0].mxu0
        %v2703 = vadd.f32 %v2510, %v2702
        %v2704 = vpop.f32.mrb[0].mxu0
        %v2705 = vadd.f32 %v2512, %v2704
        %v2706 = vpop.f32.mrb[0].mxu0
        %v2707 = vadd.f32 %v2514, %v2706
        %2708 = vdwg.mxu0
        %2709 = vmatprep.subr.bf16.mxu0 %v1940
        %2710 = vmatpush1.bf16.msra.mxu0 %v1939
        %2711 = vmatprep.subr.bf16.mxu0 %v1944
        %2712 = vmatpush1.bf16.msra.mxu0 %v1943
        %2713 = vmatprep.subr.bf16.mxu0 %v1948
        %2714 = vmatpush1.bf16.msra.mxu0 %v1947
        %2715 = vmatprep.subr.bf16.mxu0 %v1952
        %2716 = vmatpush1.bf16.msra.mxu0 %v1951
        %2717 = vmatprep.subr.bf16.mxu0 %v1956
        %2718 = vmatpush1.bf16.msra.mxu0 %v1955
        %2719 = vmatprep.subr.bf16.mxu0 %v1960
        %2720 = vmatpush1.bf16.msra.mxu0 %v1959
        %2721 = vmatprep.subr.bf16.mxu0 %v1964
        %2722 = vmatpush1.bf16.msra.mxu0 %v1963
        %2723 = vmatprep.subr.bf16.mxu0 %v1968
        %2724 = vmatpush1.bf16.msra.mxu0 %v1967
        %2725 = vmatprep.subr.bf16.mxu0 %v1972
        %2726 = vmatpush1.bf16.msra.mxu0 %v1971
        %2727 = vmatprep.subr.bf16.mxu0 %v1976
        %2728 = vmatpush1.bf16.msra.mxu0 %v1975
        %2729 = vmatprep.subr.bf16.mxu0 %v1980
        %2730 = vmatpush1.bf16.msra.mxu0 %v1979
        %2731 = vmatprep.subr.bf16.mxu0 %v1984
        %2732 = vmatpush1.bf16.msra.mxu0 %v1983
        %2733 = vmatprep.subr.bf16.mxu0 %v1988
        %2734 = vmatpush1.bf16.msra.mxu0 %v1987
        %2735 = vmatprep.subr.bf16.mxu0 %v1992
        %2736 = vmatpush1.bf16.msra.mxu0 %v1991
        %2737 = vmatprep.subr.bf16.mxu0 %v1996
        %2738 = vmatpush1.bf16.msra.mxu0 %v1995
        %2739 = vmatprep.subr.bf16.mxu0 %v2000
        %2740 = vmatpush1.bf16.msra.mxu0 %v1999
        %2741 = vmatprep.mubr.bf16.mxu0 %v642
        %2742 = vmatmul.mubr.bf16.gmra.mrb[0].mxu0 %v641
        %v2743 = vpop.f32.mrb[0].mxu0
        %v2744 = vadd.f32 %v2551, %v2743
        %v2745 = vpop.f32.mrb[0].mxu0
        %v2746 = vadd.f32 %v2553, %v2745
        %v2747 = vpop.f32.mrb[0].mxu0
        %v2748 = vadd.f32 %v2555, %v2747
        %v2749 = vpop.f32.mrb[0].mxu0
        %v2750 = vadd.f32 %v2557, %v2749
        %2751 = vmatprep.mubr.bf16.mxu0 %v650
        %2752 = vmatmul.mubr.bf16.gmra.mrb[0].mxu0 %v649
        %v2753 = vpop.f32.mrb[0].mxu0
        %v2754 = vadd.f32 %v2561, %v2753
        %v2755 = vpop.f32.mrb[0].mxu0
        %v2756 = vadd.f32 %v2563, %v2755
        %v2757 = vpop.f32.mrb[0].mxu0
        %v2758 = vadd.f32 %v2565, %v2757
        %v2759 = vpop.f32.mrb[0].mxu0
        %v2760 = vadd.f32 %v2567, %v2759
        %2761 = vmatprep.mubr.bf16.mxu0 %v658
        %2762 = vmatmul.mubr.bf16.gmra.mrb[0].mxu0 %v657
        %v2763 = vpop.f32.mrb[0].mxu0
        %v2764 = vadd.f32 %v2571, %v2763
        %v2765 = vpop.f32.mrb[0].mxu0
        %v2766 = vadd.f32 %v2573, %v2765
        %v2767 = vpop.f32.mrb[0].mxu0
        %v2768 = vadd.f32 %v2575, %v2767
        %v2769 = vpop.f32.mrb[0].mxu0
        %v2770 = vadd.f32 %v2577, %v2769
        %2771 = vmatprep.mubr.bf16.mxu0 %v666
        %2772 = vmatmul.mubr.bf16.gmra.mrb[0].mxu0 %v665
        %v2773 = vpop.f32.mrb[0].mxu0
        %v2774 = vadd.f32 %v2581, %v2773
        %v2775 = vpop.f32.mrb[0].mxu0
        %v2776 = vadd.f32 %v2583, %v2775
        %v2777 = vpop.f32.mrb[0].mxu0
        %v2778 = vadd.f32 %v2585, %v2777
        %v2779 = vpop.f32.mrb[0].mxu0
        %v2780 = vadd.f32 %v2587, %v2779
        %2781 = vmatprep.mubr.bf16.mxu0 %v674
        %2782 = vmatmul.mubr.bf16.gmra.mrb[0].mxu0 %v673
        %v2783 = vpop.f32.mrb[0].mxu0
        %v2784 = vadd.f32 %v2591, %v2783
        %v2785 = vpop.f32.mrb[0].mxu0
        %v2786 = vadd.f32 %v2593, %v2785
        %v2787 = vpop.f32.mrb[0].mxu0
        %v2788 = vadd.f32 %v2595, %v2787
        %v2789 = vpop.f32.mrb[0].mxu0
        %v2790 = vadd.f32 %v2597, %v2789
        %2791 = vmatprep.mubr.bf16.mxu0 %v682
        %2792 = vmatmul.mubr.bf16.gmra.mrb[0].mxu0 %v681
        %v2793 = vpop.f32.mrb[0].mxu0
        %v2794 = vadd.f32 %v2601, %v2793
        %v2795 = vpop.f32.mrb[0].mxu0
        %v2796 = vadd.f32 %v2603, %v2795
        %v2797 = vpop.f32.mrb[0].mxu0
        %v2798 = vadd.f32 %v2605, %v2797
        %v2799 = vpop.f32.mrb[0].mxu0
        %v2800 = vadd.f32 %v2607, %v2799
        %2801 = vmatprep.mubr.bf16.mxu0 %v690
        %2802 = vmatmul.mubr.bf16.gmra.mrb[0].mxu0 %v689
        %v2803 = vpop.f32.mrb[0].mxu0
        %v2804 = vadd.f32 %v2611, %v2803
        %v2805 = vpop.f32.mrb[0].mxu0
        %v2806 = vadd.f32 %v2613, %v2805
        %v2807 = vpop.f32.mrb[0].mxu0
        %v2808 = vadd.f32 %v2615, %v2807
        %v2809 = vpop.f32.mrb[0].mxu0
        %v2810 = vadd.f32 %v2617, %v2809
        %2811 = vmatprep.mubr.bf16.mxu0 %v698
        %2812 = vmatmul.mubr.bf16.gmra.mrb[0].mxu0 %v697
        %v2813 = vpop.f32.mrb[0].mxu0
        %v2814 = vadd.f32 %v2621, %v2813
        %v2815 = vpop.f32.mrb[0].mxu0
        %v2816 = vadd.f32 %v2623, %v2815
        %v2817 = vpop.f32.mrb[0].mxu0
        %v2818 = vadd.f32 %v2625, %v2817
        %v2819 = vpop.f32.mrb[0].mxu0
        %v2820 = vadd.f32 %v2627, %v2819
        %2821 = vmatprep.mubr.bf16.mxu0 %v706
        %2822 = vmatmul.mubr.bf16.gmra.mrb[0].mxu0 %v705
        %v2823 = vpop.f32.mrb[0].mxu0
        %v2824 = vadd.f32 %v2631, %v2823
        %v2825 = vpop.f32.mrb[0].mxu0
        %v2826 = vadd.f32 %v2633, %v2825
        %v2827 = vpop.f32.mrb[0].mxu0
        %v2828 = vadd.f32 %v2635, %v2827
        %v2829 = vpop.f32.mrb[0].mxu0
        %v2830 = vadd.f32 %v2637, %v2829
        %2831 = vmatprep.mubr.bf16.mxu0 %v714
        %2832 = vmatmul.mubr.bf16.gmra.mrb[0].mxu0 %v713
        %v2833 = vpop.f32.mrb[0].mxu0
        %v2834 = vadd.f32 %v2641, %v2833
        %v2835 = vpop.f32.mrb[0].mxu0
        %v2836 = vadd.f32 %v2643, %v2835
        %v2837 = vpop.f32.mrb[0].mxu0
        %v2838 = vadd.f32 %v2645, %v2837
        %v2839 = vpop.f32.mrb[0].mxu0
        %v2840 = vadd.f32 %v2647, %v2839
        %2841 = vmatprep.mubr.bf16.mxu0 %v722
        %2842 = vmatmul.mubr.bf16.gmra.mrb[0].mxu0 %v721
        %v2843 = vpop.f32.mrb[0].mxu0
        %v2844 = vadd.f32 %v2651, %v2843
        %v2845 = vpop.f32.mrb[0].mxu0
        %v2846 = vadd.f32 %v2653, %v2845
        %v2847 = vpop.f32.mrb[0].mxu0
        %v2848 = vadd.f32 %v2655, %v2847
        %v2849 = vpop.f32.mrb[0].mxu0
        %v2850 = vadd.f32 %v2657, %v2849
        %2851 = vmatprep.mubr.bf16.mxu0 %v730
        %2852 = vmatmul.mubr.bf16.gmra.mrb[0].mxu0 %v729
        %v2853 = vpop.f32.mrb[0].mxu0
        %v2854 = vadd.f32 %v2661, %v2853
        %v2855 = vpop.f32.mrb[0].mxu0
        %v2856 = vadd.f32 %v2663, %v2855
        %v2857 = vpop.f32.mrb[0].mxu0
        %v2858 = vadd.f32 %v2665, %v2857
        %v2859 = vpop.f32.mrb[0].mxu0
        %v2860 = vadd.f32 %v2667, %v2859
        %2861 = vmatprep.mubr.bf16.mxu0 %v738
        %2862 = vmatmul.mubr.bf16.gmra.mrb[0].mxu0 %v737
        %v2863 = vpop.f32.mrb[0].mxu0
        %v2864 = vadd.f32 %v2671, %v2863
        %v2865 = vpop.f32.mrb[0].mxu0
        %v2866 = vadd.f32 %v2673, %v2865
        %v2867 = vpop.f32.mrb[0].mxu0
        %v2868 = vadd.f32 %v2675, %v2867
        %v2869 = vpop.f32.mrb[0].mxu0
        %v2870 = vadd.f32 %v2677, %v2869
        %2871 = vmatprep.mubr.bf16.mxu0 %v746
        %2872 = vmatmul.mubr.bf16.gmra.mrb[0].mxu0 %v745
        %v2873 = vpop.f32.mrb[0].mxu0
        %v2874 = vadd.f32 %v2681, %v2873
        %v2875 = vpop.f32.mrb[0].mxu0
        %v2876 = vadd.f32 %v2683, %v2875
        %v2877 = vpop.f32.mrb[0].mxu0
        %v2878 = vadd.f32 %v2685, %v2877
        %v2879 = vpop.f32.mrb[0].mxu0
        %v2880 = vadd.f32 %v2687, %v2879
        %2881 = vmatprep.mubr.bf16.mxu0 %v754
        %2882 = vmatmul.mubr.bf16.gmra.mrb[0].mxu0 %v753
        %v2883 = vpop.f32.mrb[0].mxu0
        %v2884 = vadd.f32 %v2691, %v2883
        %v2885 = vpop.f32.mrb[0].mxu0
        %v2886 = vadd.f32 %v2693, %v2885
        %v2887 = vpop.f32.mrb[0].mxu0
        %v2888 = vadd.f32 %v2695, %v2887
        %v2889 = vpop.f32.mrb[0].mxu0
        %v2890 = vadd.f32 %v2697, %v2889
        %2891 = vmatprep.mubr.bf16.mxu0 %v762
        %2892 = vmatmul.mubr.bf16.gmra.mrb[0].mxu0 %v761
        %v2893 = vpop.f32.mrb[0].mxu0
        %v2894 = vadd.f32 %v2701, %v2893
        %v2895 = vpop.f32.mrb[0].mxu0
        %v2896 = vadd.f32 %v2703, %v2895
        %v2897 = vpop.f32.mrb[0].mxu0
        %v2898 = vadd.f32 %v2705, %v2897
        %v2899 = vpop.f32.mrb[0].mxu0
        %v2900 = vadd.f32 %v2707, %v2899
        %2901 = vdwg.mxu0
        %2902 = vmatprep.subr.bf16.mxu0 %v2004
        %2903 = vmatpush1.bf16.msra.mxu0 %v2003
        %2904 = vmatprep.subr.bf16.mxu0 %v2008
        %2905 = vmatpush1.bf16.msra.mxu0 %v2007
        %2906 = vmatprep.subr.bf16.mxu0 %v2012
        %2907 = vmatpush1.bf16.msra.mxu0 %v2011
        %2908 = vmatprep.subr.bf16.mxu0 %v2016
        %2909 = vmatpush1.bf16.msra.mxu0 %v2015
        %2910 = vmatprep.subr.bf16.mxu0 %v2020
        %2911 = vmatpush1.bf16.msra.mxu0 %v2019
        %2912 = vmatprep.subr.bf16.mxu0 %v2024
        %2913 = vmatpush1.bf16.msra.mxu0 %v2023
        %2914 = vmatprep.subr.bf16.mxu0 %v2028
        %2915 = vmatpush1.bf16.msra.mxu0 %v2027
        %2916 = vmatprep.subr.bf16.mxu0 %v2032
        %2917 = vmatpush1.bf16.msra.mxu0 %v2031
        %2918 = vmatprep.subr.bf16.mxu0 %v2036
        %2919 = vmatpush1.bf16.msra.mxu0 %v2035
        %2920 = vmatprep.subr.bf16.mxu0 %v2040
        %2921 = vmatpush1.bf16.msra.mxu0 %v2039
        %2922 = vmatprep.subr.bf16.mxu0 %v2044
        %2923 = vmatpush1.bf16.msra.mxu0 %v2043
        %2924 = vmatprep.subr.bf16.mxu0 %v2048
        %2925 = vmatpush1.bf16.msra.mxu0 %v2047
        %2926 = vmatprep.subr.bf16.mxu0 %v2052
        %2927 = vmatpush1.bf16.msra.mxu0 %v2051
        %2928 = vmatprep.subr.bf16.mxu0 %v2056
        %2929 = vmatpush1.bf16.msra.mxu0 %v2055
        %2930 = vmatprep.subr.bf16.mxu0 %v2060
        %2931 = vmatpush1.bf16.msra.mxu0 %v2059
        %2932 = vmatprep.subr.bf16.mxu0 %v2064
        %2933 = vmatpush1.bf16.msra.mxu0 %v2063
        %2934 = vmatprep.mubr.bf16.mxu0 %v644
        %2935 = vmatmul.mubr.bf16.gmra.mrb[0].mxu0 %v643
        %v2936 = vpop.f32.mrb[0].mxu0
        %v2937 = vadd.f32 %v2744, %v2936
        %v2938 = vpop.f32.mrb[0].mxu0
        %v2939 = vadd.f32 %v2746, %v2938
        %v2940 = vpop.f32.mrb[0].mxu0
        %v2941 = vadd.f32 %v2748, %v2940
        %v2942 = vpop.f32.mrb[0].mxu0
        %v2943 = vadd.f32 %v2750, %v2942
        %2944 = vmatprep.mubr.bf16.mxu0 %v652
        %2945 = vmatmul.mubr.bf16.gmra.mrb[0].mxu0 %v651
        %v2946 = vpop.f32.mrb[0].mxu0
        %v2947 = vadd.f32 %v2754, %v2946
        %v2948 = vpop.f32.mrb[0].mxu0
        %v2949 = vadd.f32 %v2756, %v2948
        %v2950 = vpop.f32.mrb[0].mxu0
        %v2951 = vadd.f32 %v2758, %v2950
        %v2952 = vpop.f32.mrb[0].mxu0
        %v2953 = vadd.f32 %v2760, %v2952
        %2954 = vmatprep.mubr.bf16.mxu0 %v660
        %2955 = vmatmul.mubr.bf16.gmra.mrb[0].mxu0 %v659
        %v2956 = vpop.f32.mrb[0].mxu0
        %v2957 = vadd.f32 %v2764, %v2956
        %v2958 = vpop.f32.mrb[0].mxu0
        %v2959 = vadd.f32 %v2766, %v2958
        %v2960 = vpop.f32.mrb[0].mxu0
        %v2961 = vadd.f32 %v2768, %v2960
        %v2962 = vpop.f32.mrb[0].mxu0
        %v2963 = vadd.f32 %v2770, %v2962
        %2964 = vmatprep.mubr.bf16.mxu0 %v668
        %2965 = vmatmul.mubr.bf16.gmra.mrb[0].mxu0 %v667
        %v2966 = vpop.f32.mrb[0].mxu0
        %v2967 = vadd.f32 %v2774, %v2966
        %v2968 = vpop.f32.mrb[0].mxu0
        %v2969 = vadd.f32 %v2776, %v2968
        %v2970 = vpop.f32.mrb[0].mxu0
        %v2971 = vadd.f32 %v2778, %v2970
        %v2972 = vpop.f32.mrb[0].mxu0
        %v2973 = vadd.f32 %v2780, %v2972
        %2974 = vmatprep.mubr.bf16.mxu0 %v676
        %2975 = vmatmul.mubr.bf16.gmra.mrb[0].mxu0 %v675
        %v2976 = vpop.f32.mrb[0].mxu0
        %v2977 = vadd.f32 %v2784, %v2976
        %v2978 = vpop.f32.mrb[0].mxu0
        %v2979 = vadd.f32 %v2786, %v2978
        %v2980 = vpop.f32.mrb[0].mxu0
        %v2981 = vadd.f32 %v2788, %v2980
        %v2982 = vpop.f32.mrb[0].mxu0
        %v2983 = vadd.f32 %v2790, %v2982
        %2984 = vmatprep.mubr.bf16.mxu0 %v684
        %2985 = vmatmul.mubr.bf16.gmra.mrb[0].mxu0 %v683
        %v2986 = vpop.f32.mrb[0].mxu0
        %v2987 = vadd.f32 %v2794, %v2986
        %v2988 = vpop.f32.mrb[0].mxu0
        %v2989 = vadd.f32 %v2796, %v2988
        %v2990 = vpop.f32.mrb[0].mxu0
        %v2991 = vadd.f32 %v2798, %v2990
        %v2992 = vpop.f32.mrb[0].mxu0
        %v2993 = vadd.f32 %v2800, %v2992
        %2994 = vmatprep.mubr.bf16.mxu0 %v692
        %2995 = vmatmul.mubr.bf16.gmra.mrb[0].mxu0 %v691
        %v2996 = vpop.f32.mrb[0].mxu0
        %v2997 = vadd.f32 %v2804, %v2996
        %v2998 = vpop.f32.mrb[0].mxu0
        %v2999 = vadd.f32 %v2806, %v2998
        %v3000 = vpop.f32.mrb[0].mxu0
        %v3001 = vadd.f32 %v2808, %v3000
        %v3002 = vpop.f32.mrb[0].mxu0
        %v3003 = vadd.f32 %v2810, %v3002
        %3004 = vmatprep.mubr.bf16.mxu0 %v700
        %3005 = vmatmul.mubr.bf16.gmra.mrb[0].mxu0 %v699
        %v3006 = vpop.f32.mrb[0].mxu0
        %v3007 = vadd.f32 %v2814, %v3006
        %v3008 = vpop.f32.mrb[0].mxu0
        %v3009 = vadd.f32 %v2816, %v3008
        %v3010 = vpop.f32.mrb[0].mxu0
        %v3011 = vadd.f32 %v2818, %v3010
        %v3012 = vpop.f32.mrb[0].mxu0
        %v3013 = vadd.f32 %v2820, %v3012
        %3014 = vmatprep.mubr.bf16.mxu0 %v708
        %3015 = vmatmul.mubr.bf16.gmra.mrb[0].mxu0 %v707
        %v3016 = vpop.f32.mrb[0].mxu0
        %v3017 = vadd.f32 %v2824, %v3016
        %v3018 = vpop.f32.mrb[0].mxu0
        %v3019 = vadd.f32 %v2826, %v3018
        %v3020 = vpop.f32.mrb[0].mxu0
        %v3021 = vadd.f32 %v2828, %v3020
        %v3022 = vpop.f32.mrb[0].mxu0
        %v3023 = vadd.f32 %v2830, %v3022
        %3024 = vmatprep.mubr.bf16.mxu0 %v716
        %3025 = vmatmul.mubr.bf16.gmra.mrb[0].mxu0 %v715
        %v3026 = vpop.f32.mrb[0].mxu0
        %v3027 = vadd.f32 %v2834, %v3026
        %v3028 = vpop.f32.mrb[0].mxu0
        %v3029 = vadd.f32 %v2836, %v3028
        %v3030 = vpop.f32.mrb[0].mxu0
        %v3031 = vadd.f32 %v2838, %v3030
        %v3032 = vpop.f32.mrb[0].mxu0
        %v3033 = vadd.f32 %v2840, %v3032
        %3034 = vmatprep.mubr.bf16.mxu0 %v724
        %3035 = vmatmul.mubr.bf16.gmra.mrb[0].mxu0 %v723
        %v3036 = vpop.f32.mrb[0].mxu0
        %v3037 = vadd.f32 %v2844, %v3036
        %v3038 = vpop.f32.mrb[0].mxu0
        %v3039 = vadd.f32 %v2846, %v3038
        %v3040 = vpop.f32.mrb[0].mxu0
        %v3041 = vadd.f32 %v2848, %v3040
        %v3042 = vpop.f32.mrb[0].mxu0
        %v3043 = vadd.f32 %v2850, %v3042
        %3044 = vmatprep.mubr.bf16.mxu0 %v732
        %3045 = vmatmul.mubr.bf16.gmra.mrb[0].mxu0 %v731
        %v3046 = vpop.f32.mrb[0].mxu0
        %v3047 = vadd.f32 %v2854, %v3046
        %v3048 = vpop.f32.mrb[0].mxu0
        %v3049 = vadd.f32 %v2856, %v3048
        %v3050 = vpop.f32.mrb[0].mxu0
        %v3051 = vadd.f32 %v2858, %v3050
        %v3052 = vpop.f32.mrb[0].mxu0
        %v3053 = vadd.f32 %v2860, %v3052
        %3054 = vmatprep.mubr.bf16.mxu0 %v740
        %3055 = vmatmul.mubr.bf16.gmra.mrb[0].mxu0 %v739
        %v3056 = vpop.f32.mrb[0].mxu0
        %v3057 = vadd.f32 %v2864, %v3056
        %v3058 = vpop.f32.mrb[0].mxu0
        %v3059 = vadd.f32 %v2866, %v3058
        %v3060 = vpop.f32.mrb[0].mxu0
        %v3061 = vadd.f32 %v2868, %v3060
        %v3062 = vpop.f32.mrb[0].mxu0
        %v3063 = vadd.f32 %v2870, %v3062
        %3064 = vmatprep.mubr.bf16.mxu0 %v748
        %3065 = vmatmul.mubr.bf16.gmra.mrb[0].mxu0 %v747
        %v3066 = vpop.f32.mrb[0].mxu0
        %v3067 = vadd.f32 %v2874, %v3066
        %v3068 = vpop.f32.mrb[0].mxu0
        %v3069 = vadd.f32 %v2876, %v3068
        %v3070 = vpop.f32.mrb[0].mxu0
        %v3071 = vadd.f32 %v2878, %v3070
        %v3072 = vpop.f32.mrb[0].mxu0
        %v3073 = vadd.f32 %v2880, %v3072
        %3074 = vmatprep.mubr.bf16.mxu0 %v756
        %3075 = vmatmul.mubr.bf16.gmra.mrb[0].mxu0 %v755
        %v3076 = vpop.f32.mrb[0].mxu0
        %v3077 = vadd.f32 %v2884, %v3076
        %v3078 = vpop.f32.mrb[0].mxu0
        %v3079 = vadd.f32 %v2886, %v3078
        %v3080 = vpop.f32.mrb[0].mxu0
        %v3081 = vadd.f32 %v2888, %v3080
        %v3082 = vpop.f32.mrb[0].mxu0
        %v3083 = vadd.f32 %v2890, %v3082
        %3084 = vmatprep.mubr.bf16.mxu0 %v764
        %3085 = vmatmul.mubr.bf16.gmra.mrb[0].mxu0 %v763
        %v3086 = vpop.f32.mrb[0].mxu0
        %v3087 = vadd.f32 %v2894, %v3086
        %v3088 = vpop.f32.mrb[0].mxu0
        %v3089 = vadd.f32 %v2896, %v3088
        %v3090 = vpop.f32.mrb[0].mxu0
        %v3091 = vadd.f32 %v2898, %v3090
        %v3092 = vpop.f32.mrb[0].mxu0
        %v3093 = vadd.f32 %v2900, %v3092
        %3094 = vdwg.mxu0
        %3095 = vmatprep.subr.bf16.mxu0 %v1814
        %3096 = vmatpush1.bf16.msra.mxu0 %v1813
        %3097 = vmatprep.subr.bf16.mxu0 %v1818
        %3098 = vmatpush1.bf16.msra.mxu0 %v1817
        %3099 = vmatprep.subr.bf16.mxu0 %v1822
        %3100 = vmatpush1.bf16.msra.mxu0 %v1821
        %3101 = vmatprep.subr.bf16.mxu0 %v1826
        %3102 = vmatpush1.bf16.msra.mxu0 %v1825
        %3103 = vmatprep.subr.bf16.mxu0 %v1830
        %3104 = vmatpush1.bf16.msra.mxu0 %v1829
        %3105 = vmatprep.subr.bf16.mxu0 %v1834
        %3106 = vmatpush1.bf16.msra.mxu0 %v1833
        %3107 = vmatprep.subr.bf16.mxu0 %v1838
        %3108 = vmatpush1.bf16.msra.mxu0 %v1837
        %3109 = vmatprep.subr.bf16.mxu0 %v1842
        %3110 = vmatpush1.bf16.msra.mxu0 %v1841
        %3111 = vmatprep.subr.bf16.mxu0 %v1846
        %3112 = vmatpush1.bf16.msra.mxu0 %v1845
        %3113 = vmatprep.subr.bf16.mxu0 %v1850
        %3114 = vmatpush1.bf16.msra.mxu0 %v1849
        %3115 = vmatprep.subr.bf16.mxu0 %v1854
        %3116 = vmatpush1.bf16.msra.mxu0 %v1853
        %3117 = vmatprep.subr.bf16.mxu0 %v1858
        %3118 = vmatpush1.bf16.msra.mxu0 %v1857
        %3119 = vmatprep.subr.bf16.mxu0 %v1862
        %3120 = vmatpush1.bf16.msra.mxu0 %v1861
        %3121 = vmatprep.subr.bf16.mxu0 %v1866
        %3122 = vmatpush1.bf16.msra.mxu0 %v1865
        %3123 = vmatprep.subr.bf16.mxu0 %v1870
        %3124 = vmatpush1.bf16.msra.mxu0 %v1869
        %3125 = vmatprep.subr.bf16.mxu0 %v1874
        %3126 = vmatpush1.bf16.msra.mxu0 %v1873
        %3127 = vmatprep.mubr.bf16.mxu0 %v638
        %3128 = vmatmul.mubr.bf16.gmra.mrb[0].mxu0 %v637
        %v3129 = vpop.f32.mrb[0].mxu0
        %v3130 = vadd.f32 %v1034, %v3129
        %v3131 = vpop.f32.mrb[0].mxu0
        %v3132 = vadd.f32 %v1038, %v3131
        %v3133 = vpop.f32.mrb[0].mxu0
        %v3134 = vadd.f32 %v1034, %v3133
        %v3135 = vpop.f32.mrb[0].mxu0
        %v3136 = vadd.f32 %v1038, %v3135
        %3137 = vmatprep.mubr.bf16.mxu0 %v646
        %3138 = vmatmul.mubr.bf16.gmra.mrb[0].mxu0 %v645
        %v3139 = vpop.f32.mrb[0].mxu0
        %v3140 = vadd.f32 %v1034, %v3139
        %v3141 = vpop.f32.mrb[0].mxu0
        %v3142 = vadd.f32 %v1038, %v3141
        %v3143 = vpop.f32.mrb[0].mxu0
        %v3144 = vadd.f32 %v1034, %v3143
        %v3145 = vpop.f32.mrb[0].mxu0
        %v3146 = vadd.f32 %v1038, %v3145
        %3147 = vmatprep.mubr.bf16.mxu0 %v654
        %3148 = vmatmul.mubr.bf16.gmra.mrb[0].mxu0 %v653
        %v3149 = vpop.f32.mrb[0].mxu0
        %v3150 = vadd.f32 %v1034, %v3149
        %v3151 = vpop.f32.mrb[0].mxu0
        %v3152 = vadd.f32 %v1038, %v3151
        %v3153 = vpop.f32.mrb[0].mxu0
        %v3154 = vadd.f32 %v1034, %v3153
        %v3155 = vpop.f32.mrb[0].mxu0
        %v3156 = vadd.f32 %v1038, %v3155
        %3157 = vmatprep.mubr.bf16.mxu0 %v662
        %3158 = vmatmul.mubr.bf16.gmra.mrb[0].mxu0 %v661
        %v3159 = vpop.f32.mrb[0].mxu0
        %v3160 = vadd.f32 %v1034, %v3159
        %v3161 = vpop.f32.mrb[0].mxu0
        %v3162 = vadd.f32 %v1038, %v3161
        %v3163 = vpop.f32.mrb[0].mxu0
        %v3164 = vadd.f32 %v1034, %v3163
        %v3165 = vpop.f32.mrb[0].mxu0
        %v3166 = vadd.f32 %v1038, %v3165
        %3167 = vmatprep.mubr.bf16.mxu0 %v670
        %3168 = vmatmul.mubr.bf16.gmra.mrb[0].mxu0 %v669
        %v3169 = vpop.f32.mrb[0].mxu0
        %v3170 = vadd.f32 %v1034, %v3169
        %v3171 = vpop.f32.mrb[0].mxu0
        %v3172 = vadd.f32 %v1038, %v3171
        %v3173 = vpop.f32.mrb[0].mxu0
        %v3174 = vadd.f32 %v1034, %v3173
        %v3175 = vpop.f32.mrb[0].mxu0
        %v3176 = vadd.f32 %v1038, %v3175
        %3177 = vmatprep.mubr.bf16.mxu0 %v678
        %3178 = vmatmul.mubr.bf16.gmra.mrb[0].mxu0 %v677
        %v3179 = vpop.f32.mrb[0].mxu0
        %v3180 = vadd.f32 %v1034, %v3179
        %v3181 = vpop.f32.mrb[0].mxu0
        %v3182 = vadd.f32 %v1038, %v3181
        %v3183 = vpop.f32.mrb[0].mxu0
        %v3184 = vadd.f32 %v1034, %v3183
        %v3185 = vpop.f32.mrb[0].mxu0
        %v3186 = vadd.f32 %v1038, %v3185
        %3187 = vmatprep.mubr.bf16.mxu0 %v686
        %3188 = vmatmul.mubr.bf16.gmra.mrb[0].mxu0 %v685
        %v3189 = vpop.f32.mrb[0].mxu0
        %v3190 = vadd.f32 %v1034, %v3189
        %v3191 = vpop.f32.mrb[0].mxu0
        %v3192 = vadd.f32 %v1038, %v3191
        %v3193 = vpop.f32.mrb[0].mxu0
        %v3194 = vadd.f32 %v1034, %v3193
        %v3195 = vpop.f32.mrb[0].mxu0
        %v3196 = vadd.f32 %v1038, %v3195
        %3197 = vmatprep.mubr.bf16.mxu0 %v694
        %3198 = vmatmul.mubr.bf16.gmra.mrb[0].mxu0 %v693
        %v3199 = vpop.f32.mrb[0].mxu0
        %v3200 = vadd.f32 %v1034, %v3199
        %v3201 = vpop.f32.mrb[0].mxu0
        %v3202 = vadd.f32 %v1038, %v3201
        %v3203 = vpop.f32.mrb[0].mxu0
        %v3204 = vadd.f32 %v1034, %v3203
        %v3205 = vpop.f32.mrb[0].mxu0
        %v3206 = vadd.f32 %v1038, %v3205
        %3207 = vmatprep.mubr.bf16.mxu0 %v702
        %3208 = vmatmul.mubr.bf16.gmra.mrb[0].mxu0 %v701
        %v3209 = vpop.f32.mrb[0].mxu0
        %v3210 = vadd.f32 %v1034, %v3209
        %v3211 = vpop.f32.mrb[0].mxu0
        %v3212 = vadd.f32 %v1038, %v3211
        %v3213 = vpop.f32.mrb[0].mxu0
        %v3214 = vadd.f32 %v1034, %v3213
        %v3215 = vpop.f32.mrb[0].mxu0
        %v3216 = vadd.f32 %v1038, %v3215
        %3217 = vmatprep.mubr.bf16.mxu0 %v710
        %3218 = vmatmul.mubr.bf16.gmra.mrb[0].mxu0 %v709
        %v3219 = vpop.f32.mrb[0].mxu0
        %v3220 = vadd.f32 %v1034, %v3219
        %v3221 = vpop.f32.mrb[0].mxu0
        %v3222 = vadd.f32 %v1038, %v3221
        %v3223 = vpop.f32.mrb[0].mxu0
        %v3224 = vadd.f32 %v1034, %v3223
        %v3225 = vpop.f32.mrb[0].mxu0
        %v3226 = vadd.f32 %v1038, %v3225
        %3227 = vmatprep.mubr.bf16.mxu0 %v718
        %3228 = vmatmul.mubr.bf16.gmra.mrb[0].mxu0 %v717
        %v3229 = vpop.f32.mrb[0].mxu0
        %v3230 = vadd.f32 %v1034, %v3229
        %v3231 = vpop.f32.mrb[0].mxu0
        %v3232 = vadd.f32 %v1038, %v3231
        %v3233 = vpop.f32.mrb[0].mxu0
        %v3234 = vadd.f32 %v1034, %v3233
        %v3235 = vpop.f32.mrb[0].mxu0
        %v3236 = vadd.f32 %v1038, %v3235
        %3237 = vmatprep.mubr.bf16.mxu0 %v726
        %3238 = vmatmul.mubr.bf16.gmra.mrb[0].mxu0 %v725
        %v3239 = vpop.f32.mrb[0].mxu0
        %v3240 = vadd.f32 %v1034, %v3239
        %v3241 = vpop.f32.mrb[0].mxu0
        %v3242 = vadd.f32 %v1038, %v3241
        %v3243 = vpop.f32.mrb[0].mxu0
        %v3244 = vadd.f32 %v1034, %v3243
        %v3245 = vpop.f32.mrb[0].mxu0
        %v3246 = vadd.f32 %v1038, %v3245
        %3247 = vmatprep.mubr.bf16.mxu0 %v734
        %3248 = vmatmul.mubr.bf16.gmra.mrb[0].mxu0 %v733
        %v3249 = vpop.f32.mrb[0].mxu0
        %v3250 = vadd.f32 %v1034, %v3249
        %v3251 = vpop.f32.mrb[0].mxu0
        %v3252 = vadd.f32 %v1038, %v3251
        %v3253 = vpop.f32.mrb[0].mxu0
        %v3254 = vadd.f32 %v1034, %v3253
        %v3255 = vpop.f32.mrb[0].mxu0
        %v3256 = vadd.f32 %v1038, %v3255
        %3257 = vmatprep.mubr.bf16.mxu0 %v742
        %3258 = vmatmul.mubr.bf16.gmra.mrb[0].mxu0 %v741
        %v3259 = vpop.f32.mrb[0].mxu0
        %v3260 = vadd.f32 %v1034, %v3259
        %v3261 = vpop.f32.mrb[0].mxu0
        %v3262 = vadd.f32 %v1038, %v3261
        %v3263 = vpop.f32.mrb[0].mxu0
        %v3264 = vadd.f32 %v1034, %v3263
        %v3265 = vpop.f32.mrb[0].mxu0
        %v3266 = vadd.f32 %v1038, %v3265
        %3267 = vmatprep.mubr.bf16.mxu0 %v750
        %3268 = vmatmul.mubr.bf16.gmra.mrb[0].mxu0 %v749
        %v3269 = vpop.f32.mrb[0].mxu0
        %v3270 = vadd.f32 %v1034, %v3269
        %v3271 = vpop.f32.mrb[0].mxu0
        %v3272 = vadd.f32 %v1038, %v3271
        %v3273 = vpop.f32.mrb[0].mxu0
        %v3274 = vadd.f32 %v1034, %v3273
        %v3275 = vpop.f32.mrb[0].mxu0
        %v3276 = vadd.f32 %v1038, %v3275
        %3277 = vmatprep.mubr.bf16.mxu0 %v758
        %3278 = vmatmul.mubr.bf16.gmra.mrb[0].mxu0 %v757
        %v3279 = vpop.f32.mrb[0].mxu0
        %v3280 = vadd.f32 %v1034, %v3279
        %v3281 = vpop.f32.mrb[0].mxu0
        %v3282 = vadd.f32 %v1038, %v3281
        %v3283 = vpop.f32.mrb[0].mxu0
        %v3284 = vadd.f32 %v1034, %v3283
        %v3285 = vpop.f32.mrb[0].mxu0
        %v3286 = vadd.f32 %v1038, %v3285
        %3287 = vdwg.mxu0
        %3288 = vmatprep.subr.bf16.mxu0 %v1878
        %3289 = vmatpush1.bf16.msra.mxu0 %v1877
        %3290 = vmatprep.subr.bf16.mxu0 %v1882
        %3291 = vmatpush1.bf16.msra.mxu0 %v1881
        %3292 = vmatprep.subr.bf16.mxu0 %v1886
        %3293 = vmatpush1.bf16.msra.mxu0 %v1885
        %3294 = vmatprep.subr.bf16.mxu0 %v1890
        %3295 = vmatpush1.bf16.msra.mxu0 %v1889
        %3296 = vmatprep.subr.bf16.mxu0 %v1894
        %3297 = vmatpush1.bf16.msra.mxu0 %v1893
        %3298 = vmatprep.subr.bf16.mxu0 %v1898
        %3299 = vmatpush1.bf16.msra.mxu0 %v1897
        %3300 = vmatprep.subr.bf16.mxu0 %v1902
        %3301 = vmatpush1.bf16.msra.mxu0 %v1901
        %3302 = vmatprep.subr.bf16.mxu0 %v1906
        %3303 = vmatpush1.bf16.msra.mxu0 %v1905
        %3304 = vmatprep.subr.bf16.mxu0 %v1910
        %3305 = vmatpush1.bf16.msra.mxu0 %v1909
        %3306 = vmatprep.subr.bf16.mxu0 %v1914
        %3307 = vmatpush1.bf16.msra.mxu0 %v1913
        %3308 = vmatprep.subr.bf16.mxu0 %v1918
        %3309 = vmatpush1.bf16.msra.mxu0 %v1917
        %3310 = vmatprep.subr.bf16.mxu0 %v1922
        %3311 = vmatpush1.bf16.msra.mxu0 %v1921
        %3312 = vmatprep.subr.bf16.mxu0 %v1926
        %3313 = vmatpush1.bf16.msra.mxu0 %v1925
        %3314 = vmatprep.subr.bf16.mxu0 %v1930
        %3315 = vmatpush1.bf16.msra.mxu0 %v1929
        %3316 = vmatprep.subr.bf16.mxu0 %v1934
        %3317 = vmatpush1.bf16.msra.mxu0 %v1933
        %3318 = vmatprep.subr.bf16.mxu0 %v1938
        %3319 = vmatpush1.bf16.msra.mxu0 %v1937
        %3320 = vmatprep.mubr.bf16.mxu0 %v640
        %3321 = vmatmul.mubr.bf16.gmra.mrb[0].mxu0 %v639
        %v3322 = vpop.f32.mrb[0].mxu0
        %v3323 = vadd.f32 %v3130, %v3322
        %v3324 = vpop.f32.mrb[0].mxu0
        %v3325 = vadd.f32 %v3132, %v3324
        %v3326 = vpop.f32.mrb[0].mxu0
        %v3327 = vadd.f32 %v3134, %v3326
        %v3328 = vpop.f32.mrb[0].mxu0
        %v3329 = vadd.f32 %v3136, %v3328
        %3330 = vmatprep.mubr.bf16.mxu0 %v648
        %3331 = vmatmul.mubr.bf16.gmra.mrb[0].mxu0 %v647
        %v3332 = vpop.f32.mrb[0].mxu0
        %v3333 = vadd.f32 %v3140, %v3332
        %v3334 = vpop.f32.mrb[0].mxu0
        %v3335 = vadd.f32 %v3142, %v3334
        %v3336 = vpop.f32.mrb[0].mxu0
        %v3337 = vadd.f32 %v3144, %v3336
        %v3338 = vpop.f32.mrb[0].mxu0
        %v3339 = vadd.f32 %v3146, %v3338
        %3340 = vmatprep.mubr.bf16.mxu0 %v656
        %3341 = vmatmul.mubr.bf16.gmra.mrb[0].mxu0 %v655
        %v3342 = vpop.f32.mrb[0].mxu0
        %v3343 = vadd.f32 %v3150, %v3342
        %v3344 = vpop.f32.mrb[0].mxu0
        %v3345 = vadd.f32 %v3152, %v3344
        %v3346 = vpop.f32.mrb[0].mxu0
        %v3347 = vadd.f32 %v3154, %v3346
        %v3348 = vpop.f32.mrb[0].mxu0
        %v3349 = vadd.f32 %v3156, %v3348
        %3350 = vmatprep.mubr.bf16.mxu0 %v664
        %3351 = vmatmul.mubr.bf16.gmra.mrb[0].mxu0 %v663
        %v3352 = vpop.f32.mrb[0].mxu0
        %v3353 = vadd.f32 %v3160, %v3352
        %v3354 = vpop.f32.mrb[0].mxu0
        %v3355 = vadd.f32 %v3162, %v3354
        %v3356 = vpop.f32.mrb[0].mxu0
        %v3357 = vadd.f32 %v3164, %v3356
        %v3358 = vpop.f32.mrb[0].mxu0
        %v3359 = vadd.f32 %v3166, %v3358
        %3360 = vmatprep.mubr.bf16.mxu0 %v672
        %3361 = vmatmul.mubr.bf16.gmra.mrb[0].mxu0 %v671
        %v3362 = vpop.f32.mrb[0].mxu0
        %v3363 = vadd.f32 %v3170, %v3362
        %v3364 = vpop.f32.mrb[0].mxu0
        %v3365 = vadd.f32 %v3172, %v3364
        %v3366 = vpop.f32.mrb[0].mxu0
        %v3367 = vadd.f32 %v3174, %v3366
        %v3368 = vpop.f32.mrb[0].mxu0
        %v3369 = vadd.f32 %v3176, %v3368
        %3370 = vmatprep.mubr.bf16.mxu0 %v680
        %3371 = vmatmul.mubr.bf16.gmra.mrb[0].mxu0 %v679
        %v3372 = vpop.f32.mrb[0].mxu0
        %v3373 = vadd.f32 %v3180, %v3372
        %v3374 = vpop.f32.mrb[0].mxu0
        %v3375 = vadd.f32 %v3182, %v3374
        %v3376 = vpop.f32.mrb[0].mxu0
        %v3377 = vadd.f32 %v3184, %v3376
        %v3378 = vpop.f32.mrb[0].mxu0
        %v3379 = vadd.f32 %v3186, %v3378
        %3380 = vmatprep.mubr.bf16.mxu0 %v688
        %3381 = vmatmul.mubr.bf16.gmra.mrb[0].mxu0 %v687
        %v3382 = vpop.f32.mrb[0].mxu0
        %v3383 = vadd.f32 %v3190, %v3382
        %v3384 = vpop.f32.mrb[0].mxu0
        %v3385 = vadd.f32 %v3192, %v3384
        %v3386 = vpop.f32.mrb[0].mxu0
        %v3387 = vadd.f32 %v3194, %v3386
        %v3388 = vpop.f32.mrb[0].mxu0
        %v3389 = vadd.f32 %v3196, %v3388
        %3390 = vmatprep.mubr.bf16.mxu0 %v696
        %3391 = vmatmul.mubr.bf16.gmra.mrb[0].mxu0 %v695
        %v3392 = vpop.f32.mrb[0].mxu0
        %v3393 = vadd.f32 %v3200, %v3392
        %v3394 = vpop.f32.mrb[0].mxu0
        %v3395 = vadd.f32 %v3202, %v3394
        %v3396 = vpop.f32.mrb[0].mxu0
        %v3397 = vadd.f32 %v3204, %v3396
        %v3398 = vpop.f32.mrb[0].mxu0
        %v3399 = vadd.f32 %v3206, %v3398
        %3400 = vmatprep.mubr.bf16.mxu0 %v704
        %3401 = vmatmul.mubr.bf16.gmra.mrb[0].mxu0 %v703
        %v3402 = vpop.f32.mrb[0].mxu0
        %v3403 = vadd.f32 %v3210, %v3402
        %v3404 = vpop.f32.mrb[0].mxu0
        %v3405 = vadd.f32 %v3212, %v3404
        %v3406 = vpop.f32.mrb[0].mxu0
        %v3407 = vadd.f32 %v3214, %v3406
        %v3408 = vpop.f32.mrb[0].mxu0
        %v3409 = vadd.f32 %v3216, %v3408
        %3410 = vmatprep.mubr.bf16.mxu0 %v712
        %3411 = vmatmul.mubr.bf16.gmra.mrb[0].mxu0 %v711
        %v3412 = vpop.f32.mrb[0].mxu0
        %v3413 = vadd.f32 %v3220, %v3412
        %v3414 = vpop.f32.mrb[0].mxu0
        %v3415 = vadd.f32 %v3222, %v3414
        %v3416 = vpop.f32.mrb[0].mxu0
        %v3417 = vadd.f32 %v3224, %v3416
        %v3418 = vpop.f32.mrb[0].mxu0
        %v3419 = vadd.f32 %v3226, %v3418
        %3420 = vmatprep.mubr.bf16.mxu0 %v720
        %3421 = vmatmul.mubr.bf16.gmra.mrb[0].mxu0 %v719
        %v3422 = vpop.f32.mrb[0].mxu0
        %v3423 = vadd.f32 %v3230, %v3422
        %v3424 = vpop.f32.mrb[0].mxu0
        %v3425 = vadd.f32 %v3232, %v3424
        %v3426 = vpop.f32.mrb[0].mxu0
        %v3427 = vadd.f32 %v3234, %v3426
        %v3428 = vpop.f32.mrb[0].mxu0
        %v3429 = vadd.f32 %v3236, %v3428
        %3430 = vmatprep.mubr.bf16.mxu0 %v728
        %3431 = vmatmul.mubr.bf16.gmra.mrb[0].mxu0 %v727
        %v3432 = vpop.f32.mrb[0].mxu0
        %v3433 = vadd.f32 %v3240, %v3432
        %v3434 = vpop.f32.mrb[0].mxu0
        %v3435 = vadd.f32 %v3242, %v3434
        %v3436 = vpop.f32.mrb[0].mxu0
        %v3437 = vadd.f32 %v3244, %v3436
        %v3438 = vpop.f32.mrb[0].mxu0
        %v3439 = vadd.f32 %v3246, %v3438
        %3440 = vmatprep.mubr.bf16.mxu0 %v736
        %3441 = vmatmul.mubr.bf16.gmra.mrb[0].mxu0 %v735
        %v3442 = vpop.f32.mrb[0].mxu0
        %v3443 = vadd.f32 %v3250, %v3442
        %v3444 = vpop.f32.mrb[0].mxu0
        %v3445 = vadd.f32 %v3252, %v3444
        %v3446 = vpop.f32.mrb[0].mxu0
        %v3447 = vadd.f32 %v3254, %v3446
        %v3448 = vpop.f32.mrb[0].mxu0
        %v3449 = vadd.f32 %v3256, %v3448
        %3450 = vmatprep.mubr.bf16.mxu0 %v744
        %3451 = vmatmul.mubr.bf16.gmra.mrb[0].mxu0 %v743
        %v3452 = vpop.f32.mrb[0].mxu0
        %v3453 = vadd.f32 %v3260, %v3452
        %v3454 = vpop.f32.mrb[0].mxu0
        %v3455 = vadd.f32 %v3262, %v3454
        %v3456 = vpop.f32.mrb[0].mxu0
        %v3457 = vadd.f32 %v3264, %v3456
        %v3458 = vpop.f32.mrb[0].mxu0
        %v3459 = vadd.f32 %v3266, %v3458
        %3460 = vmatprep.mubr.bf16.mxu0 %v752
        %3461 = vmatmul.mubr.bf16.gmra.mrb[0].mxu0 %v751
        %v3462 = vpop.f32.mrb[0].mxu0
        %v3463 = vadd.f32 %v3270, %v3462
        %v3464 = vpop.f32.mrb[0].mxu0
        %v3465 = vadd.f32 %v3272, %v3464
        %v3466 = vpop.f32.mrb[0].mxu0
        %v3467 = vadd.f32 %v3274, %v3466
        %v3468 = vpop.f32.mrb[0].mxu0
        %v3469 = vadd.f32 %v3276, %v3468
        %3470 = vmatprep.mubr.bf16.mxu0 %v760
        %3471 = vmatmul.mubr.bf16.gmra.mrb[0].mxu0 %v759
        %v3472 = vpop.f32.mrb[0].mxu0
        %v3473 = vadd.f32 %v3280, %v3472
        %v3474 = vpop.f32.mrb[0].mxu0
        %v3475 = vadd.f32 %v3282, %v3474
        %v3476 = vpop.f32.mrb[0].mxu0
        %v3477 = vadd.f32 %v3284, %v3476
        %v3478 = vpop.f32.mrb[0].mxu0
        %v3479 = vadd.f32 %v3286, %v3478
        %3480 = vdwg.mxu0
        %3481 = vmatprep.subr.bf16.mxu0 %v1942
        %3482 = vmatpush1.bf16.msra.mxu0 %v1941
        %3483 = vmatprep.subr.bf16.mxu0 %v1946
        %3484 = vmatpush1.bf16.msra.mxu0 %v1945
        %3485 = vmatprep.subr.bf16.mxu0 %v1950
        %3486 = vmatpush1.bf16.msra.mxu0 %v1949
        %3487 = vmatprep.subr.bf16.mxu0 %v1954
        %3488 = vmatpush1.bf16.msra.mxu0 %v1953
        %3489 = vmatprep.subr.bf16.mxu0 %v1958
        %3490 = vmatpush1.bf16.msra.mxu0 %v1957
        %3491 = vmatprep.subr.bf16.mxu0 %v1962
        %3492 = vmatpush1.bf16.msra.mxu0 %v1961
        %3493 = vmatprep.subr.bf16.mxu0 %v1966
        %3494 = vmatpush1.bf16.msra.mxu0 %v1965
        %3495 = vmatprep.subr.bf16.mxu0 %v1970
        %3496 = vmatpush1.bf16.msra.mxu0 %v1969
        %3497 = vmatprep.subr.bf16.mxu0 %v1974
        %3498 = vmatpush1.bf16.msra.mxu0 %v1973
        %3499 = vmatprep.subr.bf16.mxu0 %v1978
        %3500 = vmatpush1.bf16.msra.mxu0 %v1977
        %3501 = vmatprep.subr.bf16.mxu0 %v1982
        %3502 = vmatpush1.bf16.msra.mxu0 %v1981
        %3503 = vmatprep.subr.bf16.mxu0 %v1986
        %3504 = vmatpush1.bf16.msra.mxu0 %v1985
        %3505 = vmatprep.subr.bf16.mxu0 %v1990
        %3506 = vmatpush1.bf16.msra.mxu0 %v1989
        %3507 = vmatprep.subr.bf16.mxu0 %v1994
        %3508 = vmatpush1.bf16.msra.mxu0 %v1993
        %3509 = vmatprep.subr.bf16.mxu0 %v1998
        %3510 = vmatpush1.bf16.msra.mxu0 %v1997
        %3511 = vmatprep.subr.bf16.mxu0 %v2002
        %3512 = vmatpush1.bf16.msra.mxu0 %v2001
        %3513 = vmatprep.mubr.bf16.mxu0 %v642
        %3514 = vmatmul.mubr.bf16.gmra.mrb[0].mxu0 %v641
        %v3515 = vpop.f32.mrb[0].mxu0
        %v3516 = vadd.f32 %v3323, %v3515
        %v3517 = vpop.f32.mrb[0].mxu0
        %v3518 = vadd.f32 %v3325, %v3517
        %v3519 = vpop.f32.mrb[0].mxu0
        %v3520 = vadd.f32 %v3327, %v3519
        %v3521 = vpop.f32.mrb[0].mxu0
        %v3522 = vadd.f32 %v3329, %v3521
        %3523 = vmatprep.mubr.bf16.mxu0 %v650
        %3524 = vmatmul.mubr.bf16.gmra.mrb[0].mxu0 %v649
        %v3525 = vpop.f32.mrb[0].mxu0
        %v3526 = vadd.f32 %v3333, %v3525
        %v3527 = vpop.f32.mrb[0].mxu0
        %v3528 = vadd.f32 %v3335, %v3527
        %v3529 = vpop.f32.mrb[0].mxu0
        %v3530 = vadd.f32 %v3337, %v3529
        %v3531 = vpop.f32.mrb[0].mxu0
        %v3532 = vadd.f32 %v3339, %v3531
        %3533 = vmatprep.mubr.bf16.mxu0 %v658
        %3534 = vmatmul.mubr.bf16.gmra.mrb[0].mxu0 %v657
        %v3535 = vpop.f32.mrb[0].mxu0
        %v3536 = vadd.f32 %v3343, %v3535
        %v3537 = vpop.f32.mrb[0].mxu0
        %v3538 = vadd.f32 %v3345, %v3537
        %v3539 = vpop.f32.mrb[0].mxu0
        %v3540 = vadd.f32 %v3347, %v3539
        %v3541 = vpop.f32.mrb[0].mxu0
        %v3542 = vadd.f32 %v3349, %v3541
        %3543 = vmatprep.mubr.bf16.mxu0 %v666
        %3544 = vmatmul.mubr.bf16.gmra.mrb[0].mxu0 %v665
        %v3545 = vpop.f32.mrb[0].mxu0
        %v3546 = vadd.f32 %v3353, %v3545
        %v3547 = vpop.f32.mrb[0].mxu0
        %v3548 = vadd.f32 %v3355, %v3547
        %v3549 = vpop.f32.mrb[0].mxu0
        %v3550 = vadd.f32 %v3357, %v3549
        %v3551 = vpop.f32.mrb[0].mxu0
        %v3552 = vadd.f32 %v3359, %v3551
        %3553 = vmatprep.mubr.bf16.mxu0 %v674
        %3554 = vmatmul.mubr.bf16.gmra.mrb[0].mxu0 %v673
        %v3555 = vpop.f32.mrb[0].mxu0
        %v3556 = vadd.f32 %v3363, %v3555
        %v3557 = vpop.f32.mrb[0].mxu0
        %v3558 = vadd.f32 %v3365, %v3557
        %v3559 = vpop.f32.mrb[0].mxu0
        %v3560 = vadd.f32 %v3367, %v3559
        %v3561 = vpop.f32.mrb[0].mxu0
        %v3562 = vadd.f32 %v3369, %v3561
        %3563 = vmatprep.mubr.bf16.mxu0 %v682
        %3564 = vmatmul.mubr.bf16.gmra.mrb[0].mxu0 %v681
        %v3565 = vpop.f32.mrb[0].mxu0
        %v3566 = vadd.f32 %v3373, %v3565
        %v3567 = vpop.f32.mrb[0].mxu0
        %v3568 = vadd.f32 %v3375, %v3567
        %v3569 = vpop.f32.mrb[0].mxu0
        %v3570 = vadd.f32 %v3377, %v3569
        %v3571 = vpop.f32.mrb[0].mxu0
        %v3572 = vadd.f32 %v3379, %v3571
        %3573 = vmatprep.mubr.bf16.mxu0 %v690
        %3574 = vmatmul.mubr.bf16.gmra.mrb[0].mxu0 %v689
        %v3575 = vpop.f32.mrb[0].mxu0
        %v3576 = vadd.f32 %v3383, %v3575
        %v3577 = vpop.f32.mrb[0].mxu0
        %v3578 = vadd.f32 %v3385, %v3577
        %v3579 = vpop.f32.mrb[0].mxu0
        %v3580 = vadd.f32 %v3387, %v3579
        %v3581 = vpop.f32.mrb[0].mxu0
        %v3582 = vadd.f32 %v3389, %v3581
        %3583 = vmatprep.mubr.bf16.mxu0 %v698
        %3584 = vmatmul.mubr.bf16.gmra.mrb[0].mxu0 %v697
        %v3585 = vpop.f32.mrb[0].mxu0
        %v3586 = vadd.f32 %v3393, %v3585
        %v3587 = vpop.f32.mrb[0].mxu0
        %v3588 = vadd.f32 %v3395, %v3587
        %v3589 = vpop.f32.mrb[0].mxu0
        %v3590 = vadd.f32 %v3397, %v3589
        %v3591 = vpop.f32.mrb[0].mxu0
        %v3592 = vadd.f32 %v3399, %v3591
        %3593 = vmatprep.mubr.bf16.mxu0 %v706
        %3594 = vmatmul.mubr.bf16.gmra.mrb[0].mxu0 %v705
        %v3595 = vpop.f32.mrb[0].mxu0
        %v3596 = vadd.f32 %v3403, %v3595
        %v3597 = vpop.f32.mrb[0].mxu0
        %v3598 = vadd.f32 %v3405, %v3597
        %v3599 = vpop.f32.mrb[0].mxu0
        %v3600 = vadd.f32 %v3407, %v3599
        %v3601 = vpop.f32.mrb[0].mxu0
        %v3602 = vadd.f32 %v3409, %v3601
        %3603 = vmatprep.mubr.bf16.mxu0 %v714
        %3604 = vmatmul.mubr.bf16.gmra.mrb[0].mxu0 %v713
        %v3605 = vpop.f32.mrb[0].mxu0
        %v3606 = vadd.f32 %v3413, %v3605
        %v3607 = vpop.f32.mrb[0].mxu0
        %v3608 = vadd.f32 %v3415, %v3607
        %v3609 = vpop.f32.mrb[0].mxu0
        %v3610 = vadd.f32 %v3417, %v3609
        %v3611 = vpop.f32.mrb[0].mxu0
        %v3612 = vadd.f32 %v3419, %v3611
        %3613 = vmatprep.mubr.bf16.mxu0 %v722
        %3614 = vmatmul.mubr.bf16.gmra.mrb[0].mxu0 %v721
        %v3615 = vpop.f32.mrb[0].mxu0
        %v3616 = vadd.f32 %v3423, %v3615
        %v3617 = vpop.f32.mrb[0].mxu0
        %v3618 = vadd.f32 %v3425, %v3617
        %v3619 = vpop.f32.mrb[0].mxu0
        %v3620 = vadd.f32 %v3427, %v3619
        %v3621 = vpop.f32.mrb[0].mxu0
        %v3622 = vadd.f32 %v3429, %v3621
        %3623 = vmatprep.mubr.bf16.mxu0 %v730
        %3624 = vmatmul.mubr.bf16.gmra.mrb[0].mxu0 %v729
        %v3625 = vpop.f32.mrb[0].mxu0
        %v3626 = vadd.f32 %v3433, %v3625
        %v3627 = vpop.f32.mrb[0].mxu0
        %v3628 = vadd.f32 %v3435, %v3627
        %v3629 = vpop.f32.mrb[0].mxu0
        %v3630 = vadd.f32 %v3437, %v3629
        %v3631 = vpop.f32.mrb[0].mxu0
        %v3632 = vadd.f32 %v3439, %v3631
        %3633 = vmatprep.mubr.bf16.mxu0 %v738
        %3634 = vmatmul.mubr.bf16.gmra.mrb[0].mxu0 %v737
        %v3635 = vpop.f32.mrb[0].mxu0
        %v3636 = vadd.f32 %v3443, %v3635
        %v3637 = vpop.f32.mrb[0].mxu0
        %v3638 = vadd.f32 %v3445, %v3637
        %v3639 = vpop.f32.mrb[0].mxu0
        %v3640 = vadd.f32 %v3447, %v3639
        %v3641 = vpop.f32.mrb[0].mxu0
        %v3642 = vadd.f32 %v3449, %v3641
        %3643 = vmatprep.mubr.bf16.mxu0 %v746
        %3644 = vmatmul.mubr.bf16.gmra.mrb[0].mxu0 %v745
        %v3645 = vpop.f32.mrb[0].mxu0
        %v3646 = vadd.f32 %v3453, %v3645
        %v3647 = vpop.f32.mrb[0].mxu0
        %v3648 = vadd.f32 %v3455, %v3647
        %v3649 = vpop.f32.mrb[0].mxu0
        %v3650 = vadd.f32 %v3457, %v3649
        %v3651 = vpop.f32.mrb[0].mxu0
        %v3652 = vadd.f32 %v3459, %v3651
        %3653 = vmatprep.mubr.bf16.mxu0 %v754
        %3654 = vmatmul.mubr.bf16.gmra.mrb[0].mxu0 %v753
        %v3655 = vpop.f32.mrb[0].mxu0
        %v3656 = vadd.f32 %v3463, %v3655
        %v3657 = vpop.f32.mrb[0].mxu0
        %v3658 = vadd.f32 %v3465, %v3657
        %v3659 = vpop.f32.mrb[0].mxu0
        %v3660 = vadd.f32 %v3467, %v3659
        %v3661 = vpop.f32.mrb[0].mxu0
        %v3662 = vadd.f32 %v3469, %v3661
        %3663 = vmatprep.mubr.bf16.mxu0 %v762
        %3664 = vmatmul.mubr.bf16.gmra.mrb[0].mxu0 %v761
        %v3665 = vpop.f32.mrb[0].mxu0
        %v3666 = vadd.f32 %v3473, %v3665
        %v3667 = vpop.f32.mrb[0].mxu0
        %v3668 = vadd.f32 %v3475, %v3667
        %v3669 = vpop.f32.mrb[0].mxu0
        %v3670 = vadd.f32 %v3477, %v3669
        %v3671 = vpop.f32.mrb[0].mxu0
        %v3672 = vadd.f32 %v3479, %v3671
        %3673 = vdwg.mxu0
        %3674 = vmatprep.subr.bf16.mxu0 %v2006
        %3675 = vmatpush1.bf16.msra.mxu0 %v2005
        %3676 = vmatprep.subr.bf16.mxu0 %v2010
        %3677 = vmatpush1.bf16.msra.mxu0 %v2009
        %3678 = vmatprep.subr.bf16.mxu0 %v2014
        %3679 = vmatpush1.bf16.msra.mxu0 %v2013
        %3680 = vmatprep.subr.bf16.mxu0 %v2018
        %3681 = vmatpush1.bf16.msra.mxu0 %v2017
        %3682 = vmatprep.subr.bf16.mxu0 %v2022
        %3683 = vmatpush1.bf16.msra.mxu0 %v2021
        %3684 = vmatprep.subr.bf16.mxu0 %v2026
        %3685 = vmatpush1.bf16.msra.mxu0 %v2025
        %3686 = vmatprep.subr.bf16.mxu0 %v2030
        %3687 = vmatpush1.bf16.msra.mxu0 %v2029
        %3688 = vmatprep.subr.bf16.mxu0 %v2034
        %3689 = vmatpush1.bf16.msra.mxu0 %v2033
        %3690 = vmatprep.subr.bf16.mxu0 %v2038
        %3691 = vmatpush1.bf16.msra.mxu0 %v2037
        %3692 = vmatprep.subr.bf16.mxu0 %v2042
        %3693 = vmatpush1.bf16.msra.mxu0 %v2041
        %3694 = vmatprep.subr.bf16.mxu0 %v2046
        %3695 = vmatpush1.bf16.msra.mxu0 %v2045
        %3696 = vmatprep.subr.bf16.mxu0 %v2050
        %3697 = vmatpush1.bf16.msra.mxu0 %v2049
        %3698 = vmatprep.subr.bf16.mxu0 %v2054
        %3699 = vmatpush1.bf16.msra.mxu0 %v2053
        %3700 = vmatprep.subr.bf16.mxu0 %v2058
        %3701 = vmatpush1.bf16.msra.mxu0 %v2057
        %3702 = vmatprep.subr.bf16.mxu0 %v2062
        %3703 = vmatpush1.bf16.msra.mxu0 %v2061
        %3704 = vmatprep.subr.bf16.mxu0 %v2066
        %3705 = vmatpush1.bf16.msra.mxu0 %v2065
        %3706 = vmatprep.mubr.bf16.mxu0 %v644
        %3707 = vmatmul.mubr.bf16.gmra.mrb[0].mxu0 %v643
        %v3708 = vpop.f32.mrb[0].mxu0
        %v3709 = vadd.f32 %v3516, %v3708
        %v3710 = vpop.f32.mrb[0].mxu0
        %v3711 = vadd.f32 %v3518, %v3710
        %v3712 = vpop.f32.mrb[0].mxu0
        %v3713 = vadd.f32 %v3520, %v3712
        %v3714 = vpop.f32.mrb[0].mxu0
        %v3715 = vadd.f32 %v3522, %v3714
        %3716 = vmatprep.mubr.bf16.mxu0 %v652
        %3717 = vmatmul.mubr.bf16.gmra.mrb[0].mxu0 %v651
        %v3718 = vpop.f32.mrb[0].mxu0
        %v3719 = vadd.f32 %v3526, %v3718
        %v3720 = vpop.f32.mrb[0].mxu0
        %v3721 = vadd.f32 %v3528, %v3720
        %v3722 = vpop.f32.mrb[0].mxu0
        %v3723 = vadd.f32 %v3530, %v3722
        %v3724 = vpop.f32.mrb[0].mxu0
        %v3725 = vadd.f32 %v3532, %v3724
        %3726 = vmatprep.mubr.bf16.mxu0 %v660
        %3727 = vmatmul.mubr.bf16.gmra.mrb[0].mxu0 %v659
        %v3728 = vpop.f32.mrb[0].mxu0
        %v3729 = vadd.f32 %v3536, %v3728
        %v3730 = vpop.f32.mrb[0].mxu0
        %v3731 = vadd.f32 %v3538, %v3730
        %v3732 = vpop.f32.mrb[0].mxu0
        %v3733 = vadd.f32 %v3540, %v3732
        %v3734 = vpop.f32.mrb[0].mxu0
        %v3735 = vadd.f32 %v3542, %v3734
        %3736 = vmatprep.mubr.bf16.mxu0 %v668
        %3737 = vmatmul.mubr.bf16.gmra.mrb[0].mxu0 %v667
        %v3738 = vpop.f32.mrb[0].mxu0
        %v3739 = vadd.f32 %v3546, %v3738
        %v3740 = vpop.f32.mrb[0].mxu0
        %v3741 = vadd.f32 %v3548, %v3740
        %v3742 = vpop.f32.mrb[0].mxu0
        %v3743 = vadd.f32 %v3550, %v3742
        %v3744 = vpop.f32.mrb[0].mxu0
        %v3745 = vadd.f32 %v3552, %v3744
        %3746 = vmatprep.mubr.bf16.mxu0 %v676
        %3747 = vmatmul.mubr.bf16.gmra.mrb[0].mxu0 %v675
        %v3748 = vpop.f32.mrb[0].mxu0
        %v3749 = vadd.f32 %v3556, %v3748
        %v3750 = vpop.f32.mrb[0].mxu0
        %v3751 = vadd.f32 %v3558, %v3750
        %v3752 = vpop.f32.mrb[0].mxu0
        %v3753 = vadd.f32 %v3560, %v3752
        %v3754 = vpop.f32.mrb[0].mxu0
        %v3755 = vadd.f32 %v3562, %v3754
        %3756 = vmatprep.mubr.bf16.mxu0 %v684
        %3757 = vmatmul.mubr.bf16.gmra.mrb[0].mxu0 %v683
        %v3758 = vpop.f32.mrb[0].mxu0
        %v3759 = vadd.f32 %v3566, %v3758
        %v3760 = vpop.f32.mrb[0].mxu0
        %v3761 = vadd.f32 %v3568, %v3760
        %v3762 = vpop.f32.mrb[0].mxu0
        %v3763 = vadd.f32 %v3570, %v3762
        %v3764 = vpop.f32.mrb[0].mxu0
        %v3765 = vadd.f32 %v3572, %v3764
        %3766 = vmatprep.mubr.bf16.mxu0 %v692
        %3767 = vmatmul.mubr.bf16.gmra.mrb[0].mxu0 %v691
        %v3768 = vpop.f32.mrb[0].mxu0
        %v3769 = vadd.f32 %v3576, %v3768
        %v3770 = vpop.f32.mrb[0].mxu0
        %v3771 = vadd.f32 %v3578, %v3770
        %v3772 = vpop.f32.mrb[0].mxu0
        %v3773 = vadd.f32 %v3580, %v3772
        %v3774 = vpop.f32.mrb[0].mxu0
        %v3775 = vadd.f32 %v3582, %v3774
        %3776 = vmatprep.mubr.bf16.mxu0 %v700
        %3777 = vmatmul.mubr.bf16.gmra.mrb[0].mxu0 %v699
        %v3778 = vpop.f32.mrb[0].mxu0
        %v3779 = vadd.f32 %v3586, %v3778
        %v3780 = vpop.f32.mrb[0].mxu0
        %v3781 = vadd.f32 %v3588, %v3780
        %v3782 = vpop.f32.mrb[0].mxu0
        %v3783 = vadd.f32 %v3590, %v3782
        %v3784 = vpop.f32.mrb[0].mxu0
        %v3785 = vadd.f32 %v3592, %v3784
        %3786 = vmatprep.mubr.bf16.mxu0 %v708
        %3787 = vmatmul.mubr.bf16.gmra.mrb[0].mxu0 %v707
        %v3788 = vpop.f32.mrb[0].mxu0
        %v3789 = vadd.f32 %v3596, %v3788
        %v3790 = vpop.f32.mrb[0].mxu0
        %v3791 = vadd.f32 %v3598, %v3790
        %v3792 = vpop.f32.mrb[0].mxu0
        %v3793 = vadd.f32 %v3600, %v3792
        %v3794 = vpop.f32.mrb[0].mxu0
        %v3795 = vadd.f32 %v3602, %v3794
        %3796 = vmatprep.mubr.bf16.mxu0 %v716
        %3797 = vmatmul.mubr.bf16.gmra.mrb[0].mxu0 %v715
        %v3798 = vpop.f32.mrb[0].mxu0
        %v3799 = vadd.f32 %v3606, %v3798
        %v3800 = vpop.f32.mrb[0].mxu0
        %v3801 = vadd.f32 %v3608, %v3800
        %v3802 = vpop.f32.mrb[0].mxu0
        %v3803 = vadd.f32 %v3610, %v3802
        %v3804 = vpop.f32.mrb[0].mxu0
        %v3805 = vadd.f32 %v3612, %v3804
        %3806 = vmatprep.mubr.bf16.mxu0 %v724
        %3807 = vmatmul.mubr.bf16.gmra.mrb[0].mxu0 %v723
        %v3808 = vpop.f32.mrb[0].mxu0
        %v3809 = vadd.f32 %v3616, %v3808
        %v3810 = vpop.f32.mrb[0].mxu0
        %v3811 = vadd.f32 %v3618, %v3810
        %v3812 = vpop.f32.mrb[0].mxu0
        %v3813 = vadd.f32 %v3620, %v3812
        %v3814 = vpop.f32.mrb[0].mxu0
        %v3815 = vadd.f32 %v3622, %v3814
        %3816 = vmatprep.mubr.bf16.mxu0 %v732
        %3817 = vmatmul.mubr.bf16.gmra.mrb[0].mxu0 %v731
        %v3818 = vpop.f32.mrb[0].mxu0
        %v3819 = vadd.f32 %v3626, %v3818
        %v3820 = vpop.f32.mrb[0].mxu0
        %v3821 = vadd.f32 %v3628, %v3820
        %v3822 = vpop.f32.mrb[0].mxu0
        %v3823 = vadd.f32 %v3630, %v3822
        %v3824 = vpop.f32.mrb[0].mxu0
        %v3825 = vadd.f32 %v3632, %v3824
        %3826 = vmatprep.mubr.bf16.mxu0 %v740
        %3827 = vmatmul.mubr.bf16.gmra.mrb[0].mxu0 %v739
        %v3828 = vpop.f32.mrb[0].mxu0
        %v3829 = vadd.f32 %v3636, %v3828
        %v3830 = vpop.f32.mrb[0].mxu0
        %v3831 = vadd.f32 %v3638, %v3830
        %v3832 = vpop.f32.mrb[0].mxu0
        %v3833 = vadd.f32 %v3640, %v3832
        %v3834 = vpop.f32.mrb[0].mxu0
        %v3835 = vadd.f32 %v3642, %v3834
        %3836 = vmatprep.mubr.bf16.mxu0 %v748
        %3837 = vmatmul.mubr.bf16.gmra.mrb[0].mxu0 %v747
        %v3838 = vpop.f32.mrb[0].mxu0
        %v3839 = vadd.f32 %v3646, %v3838
        %v3840 = vpop.f32.mrb[0].mxu0
        %v3841 = vadd.f32 %v3648, %v3840
        %v3842 = vpop.f32.mrb[0].mxu0
        %v3843 = vadd.f32 %v3650, %v3842
        %v3844 = vpop.f32.mrb[0].mxu0
        %v3845 = vadd.f32 %v3652, %v3844
        %3846 = vmatprep.mubr.bf16.mxu0 %v756
        %3847 = vmatmul.mubr.bf16.gmra.mrb[0].mxu0 %v755
        %v3848 = vpop.f32.mrb[0].mxu0
        %v3849 = vadd.f32 %v3656, %v3848
        %v3850 = vpop.f32.mrb[0].mxu0
        %v3851 = vadd.f32 %v3658, %v3850
        %v3852 = vpop.f32.mrb[0].mxu0
        %v3853 = vadd.f32 %v3660, %v3852
        %v3854 = vpop.f32.mrb[0].mxu0
        %v3855 = vadd.f32 %v3662, %v3854
        %3856 = vmatprep.mubr.bf16.mxu0 %v764
        %3857 = vmatmul.mubr.bf16.gmra.mrb[0].mxu0 %v763
        %v3858 = vpop.f32.mrb[0].mxu0
        %v3859 = vadd.f32 %v3666, %v3858
        %v3860 = vpop.f32.mrb[0].mxu0
        %v3861 = vadd.f32 %v3668, %v3860
        %v3862 = vpop.f32.mrb[0].mxu0
        %v3863 = vadd.f32 %v3670, %v3862
        %v3864 = vpop.f32.mrb[0].mxu0
        %v3865 = vadd.f32 %v3672, %v3864
        %3866 = vdwg.mxu0
        %v3867 = vmax.f32 %v2937, 0.0
        %v3868 = vmax.f32 %v2939, 0.0
        %v3869 = vmax.f32 %v3709, 0.0
        %v3870 = vmax.f32 %v3711, 0.0
        %v3871 = vmax.f32 %v2941, 0.0
        %v3872 = vmax.f32 %v2943, 0.0
        %v3873 = vmax.f32 %v3713, 0.0
        %v3874 = vmax.f32 %v3715, 0.0
        %v3875 = vmax.f32 %v2947, 0.0
        %v3876 = vmax.f32 %v2949, 0.0
        %v3877 = vmax.f32 %v3719, 0.0
        %v3878 = vmax.f32 %v3721, 0.0
        %v3879 = vmax.f32 %v2951, 0.0
        %v3880 = vmax.f32 %v2953, 0.0
        %v3881 = vmax.f32 %v3723, 0.0
        %v3882 = vmax.f32 %v3725, 0.0
        %v3883 = vmax.f32 %v2957, 0.0
        %v3884 = vmax.f32 %v2959, 0.0
        %v3885 = vmax.f32 %v3729, 0.0
        %v3886 = vmax.f32 %v3731, 0.0
        %v3887 = vmax.f32 %v2961, 0.0
        %v3888 = vmax.f32 %v2963, 0.0
        %v3889 = vmax.f32 %v3733, 0.0
        %v3890 = vmax.f32 %v3735, 0.0
        %v3891 = vmax.f32 %v2967, 0.0
        %v3892 = vmax.f32 %v2969, 0.0
        %v3893 = vmax.f32 %v3739, 0.0
        %v3894 = vmax.f32 %v3741, 0.0
        %v3895 = vmax.f32 %v2971, 0.0
        %v3896 = vmax.f32 %v2973, 0.0
        %v3897 = vmax.f32 %v3743, 0.0
        %v3898 = vmax.f32 %v3745, 0.0
        %v3899 = vmax.f32 %v2977, 0.0
        %v3900 = vmax.f32 %v2979, 0.0
        %v3901 = vmax.f32 %v3749, 0.0
        %v3902 = vmax.f32 %v3751, 0.0
        %v3903 = vmax.f32 %v2981, 0.0
        %v3904 = vmax.f32 %v2983, 0.0
        %v3905 = vmax.f32 %v3753, 0.0
        %v3906 = vmax.f32 %v3755, 0.0
        %v3907 = vmax.f32 %v2987, 0.0
        %v3908 = vmax.f32 %v2989, 0.0
        %v3909 = vmax.f32 %v3759, 0.0
        %v3910 = vmax.f32 %v3761, 0.0
        %v3911 = vmax.f32 %v2991, 0.0
        %v3912 = vmax.f32 %v2993, 0.0
        %v3913 = vmax.f32 %v3763, 0.0
        %v3914 = vmax.f32 %v3765, 0.0
        %v3915 = vmax.f32 %v2997, 0.0
        %v3916 = vmax.f32 %v2999, 0.0
        %v3917 = vmax.f32 %v3769, 0.0
        %v3918 = vmax.f32 %v3771, 0.0
        %v3919 = vmax.f32 %v3001, 0.0
        %v3920 = vmax.f32 %v3003, 0.0
        %v3921 = vmax.f32 %v3773, 0.0
        %v3922 = vmax.f32 %v3775, 0.0
        %v3923 = vmax.f32 %v3007, 0.0
        %v3924 = vmax.f32 %v3009, 0.0
        %v3925 = vmax.f32 %v3779, 0.0
        %v3926 = vmax.f32 %v3781, 0.0
        %v3927 = vmax.f32 %v3011, 0.0
        %v3928 = vmax.f32 %v3013, 0.0
        %v3929 = vmax.f32 %v3783, 0.0
        %v3930 = vmax.f32 %v3785, 0.0
        %v3931 = vmax.f32 %v3017, 0.0
        %v3932 = vmax.f32 %v3019, 0.0
        %v3933 = vmax.f32 %v3789, 0.0
        %v3934 = vmax.f32 %v3791, 0.0
        %v3935 = vmax.f32 %v3021, 0.0
        %v3936 = vmax.f32 %v3023, 0.0
        %v3937 = vmax.f32 %v3793, 0.0
        %v3938 = vmax.f32 %v3795, 0.0
        %v3939 = vmax.f32 %v3027, 0.0
        %v3940 = vmax.f32 %v3029, 0.0
        %v3941 = vmax.f32 %v3799, 0.0
        %v3942 = vmax.f32 %v3801, 0.0
        %v3943 = vmax.f32 %v3031, 0.0
        %v3944 = vmax.f32 %v3033, 0.0
        %v3945 = vmax.f32 %v3803, 0.0
        %v3946 = vmax.f32 %v3805, 0.0
        %v3947 = vmax.f32 %v3037, 0.0
        %v3948 = vmax.f32 %v3039, 0.0
        %v3949 = vmax.f32 %v3809, 0.0
        %v3950 = vmax.f32 %v3811, 0.0
        %v3951 = vmax.f32 %v3041, 0.0
        %v3952 = vmax.f32 %v3043, 0.0
        %v3953 = vmax.f32 %v3813, 0.0
        %v3954 = vmax.f32 %v3815, 0.0
        %v3955 = vmax.f32 %v3047, 0.0
        %v3956 = vmax.f32 %v3049, 0.0
        %v3957 = vmax.f32 %v3819, 0.0
        %v3958 = vmax.f32 %v3821, 0.0
        %v3959 = vmax.f32 %v3051, 0.0
        %v3960 = vmax.f32 %v3053, 0.0
        %v3961 = vmax.f32 %v3823, 0.0
        %v3962 = vmax.f32 %v3825, 0.0
        %v3963 = vmax.f32 %v3057, 0.0
        %v3964 = vmax.f32 %v3059, 0.0
        %v3965 = vmax.f32 %v3829, 0.0
        %v3966 = vmax.f32 %v3831, 0.0
        %v3967 = vmax.f32 %v3061, 0.0
        %v3968 = vmax.f32 %v3063, 0.0
        %v3969 = vmax.f32 %v3833, 0.0
        %v3970 = vmax.f32 %v3835, 0.0
        %v3971 = vmax.f32 %v3067, 0.0
        %v3972 = vmax.f32 %v3069, 0.0
        %v3973 = vmax.f32 %v3839, 0.0
        %v3974 = vmax.f32 %v3841, 0.0
        %v3975 = vmax.f32 %v3071, 0.0
        %v3976 = vmax.f32 %v3073, 0.0
        %v3977 = vmax.f32 %v3843, 0.0
        %v3978 = vmax.f32 %v3845, 0.0
        %v3979 = vmax.f32 %v3077, 0.0
        %v3980 = vmax.f32 %v3079, 0.0
        %v3981 = vmax.f32 %v3849, 0.0
        %v3982 = vmax.f32 %v3851, 0.0
        %v3983 = vmax.f32 %v3081, 0.0
        %v3984 = vmax.f32 %v3083, 0.0
        %v3985 = vmax.f32 %v3853, 0.0
        %v3986 = vmax.f32 %v3855, 0.0
        %v3987 = vmax.f32 %v3087, 0.0
        %v3988 = vmax.f32 %v3089, 0.0
        %v3989 = vmax.f32 %v3859, 0.0
        %v3990 = vmax.f32 %v3861, 0.0
        %v3991 = vmax.f32 %v3091, 0.0
        %v3992 = vmax.f32 %v3093, 0.0
        %v3993 = vmax.f32 %v3863, 0.0
        %v3994 = vmax.f32 %v3865, 0.0
        %v3995 = vpack.c.bf16 %v3871, %v3867
        %v3996 = vpack.c.bf16 %v3872, %v3868
        %v3997 = vpack.c.bf16 %v3873, %v3869
        %v3998 = vpack.c.bf16 %v3874, %v3870
        %v3999 = vpack.c.bf16 %v3879, %v3875
        %v4000 = vpack.c.bf16 %v3880, %v3876
        %v4001 = vpack.c.bf16 %v3881, %v3877
        %v4002 = vpack.c.bf16 %v3882, %v3878
        %v4003 = vpack.c.bf16 %v3887, %v3883
        %v4004 = vpack.c.bf16 %v3888, %v3884
        %v4005 = vpack.c.bf16 %v3889, %v3885
        %v4006 = vpack.c.bf16 %v3890, %v3886
        %v4007 = vpack.c.bf16 %v3895, %v3891
        %v4008 = vpack.c.bf16 %v3896, %v3892
        %v4009 = vpack.c.bf16 %v3897, %v3893
        %v4010 = vpack.c.bf16 %v3898, %v3894
        %v4011 = vpack.c.bf16 %v3903, %v3899
        %v4012 = vpack.c.bf16 %v3904, %v3900
        %v4013 = vpack.c.bf16 %v3905, %v3901
        %v4014 = vpack.c.bf16 %v3906, %v3902
        %v4015 = vpack.c.bf16 %v3911, %v3907
        %v4016 = vpack.c.bf16 %v3912, %v3908
        %v4017 = vpack.c.bf16 %v3913, %v3909
        %v4018 = vpack.c.bf16 %v3914, %v3910
        %v4019 = vpack.c.bf16 %v3919, %v3915
        %v4020 = vpack.c.bf16 %v3920, %v3916
        %v4021 = vpack.c.bf16 %v3921, %v3917
        %v4022 = vpack.c.bf16 %v3922, %v3918
        %v4023 = vpack.c.bf16 %v3927, %v3923
        %v4024 = vpack.c.bf16 %v3928, %v3924
        %v4025 = vpack.c.bf16 %v3929, %v3925
        %v4026 = vpack.c.bf16 %v3930, %v3926
        %v4027 = vpack.c.bf16 %v3935, %v3931
        %v4028 = vpack.c.bf16 %v3936, %v3932
        %v4029 = vpack.c.bf16 %v3937, %v3933
        %v4030 = vpack.c.bf16 %v3938, %v3934
        %v4031 = vpack.c.bf16 %v3943, %v3939
        %v4032 = vpack.c.bf16 %v3944, %v3940
        %v4033 = vpack.c.bf16 %v3945, %v3941
        %v4034 = vpack.c.bf16 %v3946, %v3942
        %v4035 = vpack.c.bf16 %v3951, %v3947
        %v4036 = vpack.c.bf16 %v3952, %v3948
        %v4037 = vpack.c.bf16 %v3953, %v3949
        %v4038 = vpack.c.bf16 %v3954, %v3950
        %v4039 = vpack.c.bf16 %v3959, %v3955
        %v4040 = vpack.c.bf16 %v3960, %v3956
        %v4041 = vpack.c.bf16 %v3961, %v3957
        %v4042 = vpack.c.bf16 %v3962, %v3958
        %v4043 = vpack.c.bf16 %v3967, %v3963
        %v4044 = vpack.c.bf16 %v3968, %v3964
        %v4045 = vpack.c.bf16 %v3969, %v3965
        %v4046 = vpack.c.bf16 %v3970, %v3966
        %v4047 = vpack.c.bf16 %v3975, %v3971
        %v4048 = vpack.c.bf16 %v3976, %v3972
        %v4049 = vpack.c.bf16 %v3977, %v3973
        %v4050 = vpack.c.bf16 %v3978, %v3974
        %v4051 = vpack.c.bf16 %v3983, %v3979
        %v4052 = vpack.c.bf16 %v3984, %v3980
        %v4053 = vpack.c.bf16 %v3985, %v3981
        %v4054 = vpack.c.bf16 %v3986, %v3982
        %v4055 = vpack.c.bf16 %v3991, %v3987
        %v4056 = vpack.c.bf16 %v3992, %v3988
        %v4057 = vpack.c.bf16 %v3993, %v3989
        %v4058 = vpack.c.bf16 %v3994, %v3990
        %v4059 = vld [vmem:[#allocation8] sm:$0xff]
        %v4060 = vld [vmem:[#allocation8 + $0x8] sm:$0xff]
        %v4061 = vld [vmem:[#allocation8 + $0x10] sm:$0xff]
        %v4062 = vld [vmem:[#allocation8 + $0x18] sm:$0xff]
        %v4063 = vld [vmem:[#allocation8 + $0x20] sm:$0xff]
        %v4064 = vld [vmem:[#allocation8 + $0x28] sm:$0xff]
        %v4065 = vld [vmem:[#allocation8 + $0x30] sm:$0xff]
        %v4066 = vld [vmem:[#allocation8 + $0x38] sm:$0xff]
        %v4067 = vld [vmem:[#allocation8 + $0x40] sm:$0xff]
        %v4068 = vld [vmem:[#allocation8 + $0x48] sm:$0xff]
        %v4069 = vld [vmem:[#allocation8 + $0x50] sm:$0xff]
        %v4070 = vld [vmem:[#allocation8 + $0x58] sm:$0xff]
        %v4071 = vld [vmem:[#allocation8 + $0x60] sm:$0xff]
        %v4072 = vld [vmem:[#allocation8 + $0x68] sm:$0xff]
        %v4073 = vld [vmem:[#allocation8 + $0x70] sm:$0xff]
        %v4074 = vld [vmem:[#allocation8 + $0x78] sm:$0xff]
        %v4075 = vld [vmem:[#allocation8 + $0x80] sm:$0xff]
        %v4076 = vld [vmem:[#allocation8 + $0x88] sm:$0xff]
        %v4077 = vld [vmem:[#allocation8 + $0x90] sm:$0xff]
        %v4078 = vld [vmem:[#allocation8 + $0x98] sm:$0xff]
        %v4079 = vld [vmem:[#allocation8 + $0xa0] sm:$0xff]
        %v4080 = vld [vmem:[#allocation8 + $0xa8] sm:$0xff]
        %v4081 = vld [vmem:[#allocation8 + $0xb0] sm:$0xff]
        %v4082 = vld [vmem:[#allocation8 + $0xb8] sm:$0xff]
        %v4083 = vld [vmem:[#allocation8 + $0xc0] sm:$0xff]
        %v4084 = vld [vmem:[#allocation8 + $0xc8] sm:$0xff]
        %v4085 = vld [vmem:[#allocation8 + $0xd0] sm:$0xff]
        %v4086 = vld [vmem:[#allocation8 + $0xd8] sm:$0xff]
        %v4087 = vld [vmem:[#allocation8 + $0xe0] sm:$0xff]
        %v4088 = vld [vmem:[#allocation8 + $0xe8] sm:$0xff]
        %v4089 = vld [vmem:[#allocation8 + $0xf0] sm:$0xff]
        %v4090 = vld [vmem:[#allocation8 + $0xf8] sm:$0xff]
        %v4091 = vld [vmem:[#allocation8 + $0x100] sm:$0xff]
        %v4092 = vld [vmem:[#allocation8 + $0x108] sm:$0xff]
        %v4093 = vld [vmem:[#allocation8 + $0x110] sm:$0xff]
        %v4094 = vld [vmem:[#allocation8 + $0x118] sm:$0xff]
        %v4095 = vld [vmem:[#allocation8 + $0x120] sm:$0xff]
        %v4096 = vld [vmem:[#allocation8 + $0x128] sm:$0xff]
        %v4097 = vld [vmem:[#allocation8 + $0x130] sm:$0xff]
        %v4098 = vld [vmem:[#allocation8 + $0x138] sm:$0xff]
        %v4099 = vld [vmem:[#allocation8 + $0x140] sm:$0xff]
        %v4100 = vld [vmem:[#allocation8 + $0x148] sm:$0xff]
        %v4101 = vld [vmem:[#allocation8 + $0x150] sm:$0xff]
        %v4102 = vld [vmem:[#allocation8 + $0x158] sm:$0xff]
        %v4103 = vld [vmem:[#allocation8 + $0x160] sm:$0xff]
        %v4104 = vld [vmem:[#allocation8 + $0x168] sm:$0xff]
        %v4105 = vld [vmem:[#allocation8 + $0x170] sm:$0xff]
        %v4106 = vld [vmem:[#allocation8 + $0x178] sm:$0xff]
        %v4107 = vld [vmem:[#allocation8 + $0x180] sm:$0xff]
        %v4108 = vld [vmem:[#allocation8 + $0x188] sm:$0xff]
        %v4109 = vld [vmem:[#allocation8 + $0x190] sm:$0xff]
        %v4110 = vld [vmem:[#allocation8 + $0x198] sm:$0xff]
        %v4111 = vld [vmem:[#allocation8 + $0x1a0] sm:$0xff]
        %v4112 = vld [vmem:[#allocation8 + $0x1a8] sm:$0xff]
        %v4113 = vld [vmem:[#allocation8 + $0x1b0] sm:$0xff]
        %v4114 = vld [vmem:[#allocation8 + $0x1b8] sm:$0xff]
        %v4115 = vld [vmem:[#allocation8 + $0x1c0] sm:$0xff]
        %v4116 = vld [vmem:[#allocation8 + $0x1c8] sm:$0xff]
        %v4117 = vld [vmem:[#allocation8 + $0x1d0] sm:$0xff]
        %v4118 = vld [vmem:[#allocation8 + $0x1d8] sm:$0xff]
        %v4119 = vld [vmem:[#allocation8 + $0x1e0] sm:$0xff]
        %v4120 = vld [vmem:[#allocation8 + $0x1e8] sm:$0xff]
        %v4121 = vld [vmem:[#allocation8 + $0x1f0] sm:$0xff]
        %v4122 = vld [vmem:[#allocation8 + $0x1f8] sm:$0xff]
        %v4123 = vld [vmem:[#allocation10] sm:$0x3]
        %v4125 = vlaneseq
        %v4126 = vshrl.u32 %v4125, 7
        %v4127 = vsub.s32 0, %v4126
        %v4128 = vrot.slane %v4123, %v4127
        %v4129 = vlaneseq
        %v4130 = vshrl.u32 %v4129, 7
        %v4131 = vsub.s32 1, %v4130
        %v4132 = vrot.slane %v4123, %v4131
        %v4199 = vunpack.c.l.b16 %v4059
        %v4200 = vunpack.c.h.b16 %v4059
        %v4201 = vunpack.c.l.b16 %v4060
        %v4202 = vunpack.c.h.b16 %v4060
        %v4203 = vunpack.c.l.b16 %v4061
        %v4204 = vunpack.c.h.b16 %v4061
        %v4205 = vunpack.c.l.b16 %v4062
        %v4206 = vunpack.c.h.b16 %v4062
        %v4207 = vunpack.c.l.b16 %v4063
        %v4208 = vunpack.c.h.b16 %v4063
        %v4209 = vunpack.c.l.b16 %v4064
        %v4210 = vunpack.c.h.b16 %v4064
        %v4211 = vunpack.c.l.b16 %v4065
        %v4212 = vunpack.c.h.b16 %v4065
        %v4213 = vunpack.c.l.b16 %v4066
        %v4214 = vunpack.c.h.b16 %v4066
        %v4215 = vunpack.c.l.b16 %v4067
        %v4216 = vunpack.c.h.b16 %v4067
        %v4217 = vunpack.c.l.b16 %v4068
        %v4218 = vunpack.c.h.b16 %v4068
        %v4219 = vunpack.c.l.b16 %v4069
        %v4220 = vunpack.c.h.b16 %v4069
        %v4221 = vunpack.c.l.b16 %v4070
        %v4222 = vunpack.c.h.b16 %v4070
        %v4223 = vunpack.c.l.b16 %v4071
        %v4224 = vunpack.c.h.b16 %v4071
        %v4225 = vunpack.c.l.b16 %v4072
        %v4226 = vunpack.c.h.b16 %v4072
        %v4227 = vunpack.c.l.b16 %v4073
        %v4228 = vunpack.c.h.b16 %v4073
        %v4229 = vunpack.c.l.b16 %v4074
        %v4230 = vunpack.c.h.b16 %v4074
        %v4231 = vunpack.c.l.b16 %v4075
        %v4232 = vunpack.c.h.b16 %v4075
        %v4233 = vunpack.c.l.b16 %v4076
        %v4234 = vunpack.c.h.b16 %v4076
        %v4235 = vunpack.c.l.b16 %v4077
        %v4236 = vunpack.c.h.b16 %v4077
        %v4237 = vunpack.c.l.b16 %v4078
        %v4238 = vunpack.c.h.b16 %v4078
        %v4239 = vunpack.c.l.b16 %v4079
        %v4240 = vunpack.c.h.b16 %v4079
        %v4241 = vunpack.c.l.b16 %v4080
        %v4242 = vunpack.c.h.b16 %v4080
        %v4243 = vunpack.c.l.b16 %v4081
        %v4244 = vunpack.c.h.b16 %v4081
        %v4245 = vunpack.c.l.b16 %v4082
        %v4246 = vunpack.c.h.b16 %v4082
        %v4247 = vunpack.c.l.b16 %v4083
        %v4248 = vunpack.c.h.b16 %v4083
        %v4249 = vunpack.c.l.b16 %v4084
        %v4250 = vunpack.c.h.b16 %v4084
        %v4251 = vunpack.c.l.b16 %v4085
        %v4252 = vunpack.c.h.b16 %v4085
        %v4253 = vunpack.c.l.b16 %v4086
        %v4254 = vunpack.c.h.b16 %v4086
        %v4255 = vunpack.c.l.b16 %v4087
        %v4256 = vunpack.c.h.b16 %v4087
        %v4257 = vunpack.c.l.b16 %v4088
        %v4258 = vunpack.c.h.b16 %v4088
        %v4259 = vunpack.c.l.b16 %v4089
        %v4260 = vunpack.c.h.b16 %v4089
        %v4261 = vunpack.c.l.b16 %v4090
        %v4262 = vunpack.c.h.b16 %v4090
        %v4263 = vunpack.c.l.b16 %v4091
        %v4264 = vunpack.c.h.b16 %v4091
        %v4265 = vunpack.c.l.b16 %v4092
        %v4266 = vunpack.c.h.b16 %v4092
        %v4267 = vunpack.c.l.b16 %v4093
        %v4268 = vunpack.c.h.b16 %v4093
        %v4269 = vunpack.c.l.b16 %v4094
        %v4270 = vunpack.c.h.b16 %v4094
        %v4271 = vunpack.c.l.b16 %v4095
        %v4272 = vunpack.c.h.b16 %v4095
        %v4273 = vunpack.c.l.b16 %v4096
        %v4274 = vunpack.c.h.b16 %v4096
        %v4275 = vunpack.c.l.b16 %v4097
        %v4276 = vunpack.c.h.b16 %v4097
        %v4277 = vunpack.c.l.b16 %v4098
        %v4278 = vunpack.c.h.b16 %v4098
        %v4279 = vunpack.c.l.b16 %v4099
        %v4280 = vunpack.c.h.b16 %v4099
        %v4281 = vunpack.c.l.b16 %v4100
        %v4282 = vunpack.c.h.b16 %v4100
        %v4283 = vunpack.c.l.b16 %v4101
        %v4284 = vunpack.c.h.b16 %v4101
        %v4285 = vunpack.c.l.b16 %v4102
        %v4286 = vunpack.c.h.b16 %v4102
        %v4287 = vunpack.c.l.b16 %v4103
        %v4288 = vunpack.c.h.b16 %v4103
        %v4289 = vunpack.c.l.b16 %v4104
        %v4290 = vunpack.c.h.b16 %v4104
        %v4291 = vunpack.c.l.b16 %v4105
        %v4292 = vunpack.c.h.b16 %v4105
        %v4293 = vunpack.c.l.b16 %v4106
        %v4294 = vunpack.c.h.b16 %v4106
        %v4295 = vunpack.c.l.b16 %v4107
        %v4296 = vunpack.c.h.b16 %v4107
        %v4297 = vunpack.c.l.b16 %v4108
        %v4298 = vunpack.c.h.b16 %v4108
        %v4299 = vunpack.c.l.b16 %v4109
        %v4300 = vunpack.c.h.b16 %v4109
        %v4301 = vunpack.c.l.b16 %v4110
        %v4302 = vunpack.c.h.b16 %v4110
        %v4303 = vunpack.c.l.b16 %v4111
        %v4304 = vunpack.c.h.b16 %v4111
        %v4305 = vunpack.c.l.b16 %v4112
        %v4306 = vunpack.c.h.b16 %v4112
        %v4307 = vunpack.c.l.b16 %v4113
        %v4308 = vunpack.c.h.b16 %v4113
        %v4309 = vunpack.c.l.b16 %v4114
        %v4310 = vunpack.c.h.b16 %v4114
        %v4311 = vunpack.c.l.b16 %v4115
        %v4312 = vunpack.c.h.b16 %v4115
        %v4313 = vunpack.c.l.b16 %v4116
        %v4314 = vunpack.c.h.b16 %v4116
        %v4315 = vunpack.c.l.b16 %v4117
        %v4316 = vunpack.c.h.b16 %v4117
        %v4317 = vunpack.c.l.b16 %v4118
        %v4318 = vunpack.c.h.b16 %v4118
        %v4319 = vunpack.c.l.b16 %v4119
        %v4320 = vunpack.c.h.b16 %v4119
        %v4321 = vunpack.c.l.b16 %v4120
        %v4322 = vunpack.c.h.b16 %v4120
        %v4323 = vunpack.c.l.b16 %v4121
        %v4324 = vunpack.c.h.b16 %v4121
        %v4325 = vunpack.c.l.b16 %v4122
        %v4326 = vunpack.c.h.b16 %v4122
        %v4327 = vpack.c.b16 %v4201, %v4199
        %v4328 = vpack.c.b16 %v4202, %v4200
        %v4329 = vpack.c.b16 %v4205, %v4203
        %v4330 = vpack.c.b16 %v4206, %v4204
        %v4331 = vpack.c.b16 %v4209, %v4207
        %v4332 = vpack.c.b16 %v4210, %v4208
        %v4333 = vpack.c.b16 %v4213, %v4211
        %v4334 = vpack.c.b16 %v4214, %v4212
        %v4335 = vpack.c.b16 %v4217, %v4215
        %v4336 = vpack.c.b16 %v4218, %v4216
        %v4337 = vpack.c.b16 %v4221, %v4219
        %v4338 = vpack.c.b16 %v4222, %v4220
        %v4339 = vpack.c.b16 %v4225, %v4223
        %v4340 = vpack.c.b16 %v4226, %v4224
        %v4341 = vpack.c.b16 %v4229, %v4227
        %v4342 = vpack.c.b16 %v4230, %v4228
        %v4343 = vpack.c.b16 %v4233, %v4231
        %v4344 = vpack.c.b16 %v4234, %v4232
        %v4345 = vpack.c.b16 %v4237, %v4235
        %v4346 = vpack.c.b16 %v4238, %v4236
        %v4347 = vpack.c.b16 %v4241, %v4239
        %v4348 = vpack.c.b16 %v4242, %v4240
        %v4349 = vpack.c.b16 %v4245, %v4243
        %v4350 = vpack.c.b16 %v4246, %v4244
        %v4351 = vpack.c.b16 %v4249, %v4247
        %v4352 = vpack.c.b16 %v4250, %v4248
        %v4353 = vpack.c.b16 %v4253, %v4251
        %v4354 = vpack.c.b16 %v4254, %v4252
        %v4355 = vpack.c.b16 %v4257, %v4255
        %v4356 = vpack.c.b16 %v4258, %v4256
        %v4357 = vpack.c.b16 %v4261, %v4259
        %v4358 = vpack.c.b16 %v4262, %v4260
        %v4359 = vpack.c.b16 %v4265, %v4263
        %v4360 = vpack.c.b16 %v4266, %v4264
        %v4361 = vpack.c.b16 %v4269, %v4267
        %v4362 = vpack.c.b16 %v4270, %v4268
        %v4363 = vpack.c.b16 %v4273, %v4271
        %v4364 = vpack.c.b16 %v4274, %v4272
        %v4365 = vpack.c.b16 %v4277, %v4275
        %v4366 = vpack.c.b16 %v4278, %v4276
        %v4367 = vpack.c.b16 %v4281, %v4279
        %v4368 = vpack.c.b16 %v4282, %v4280
        %v4369 = vpack.c.b16 %v4285, %v4283
        %v4370 = vpack.c.b16 %v4286, %v4284
        %v4371 = vpack.c.b16 %v4289, %v4287
        %v4372 = vpack.c.b16 %v4290, %v4288
        %v4373 = vpack.c.b16 %v4293, %v4291
        %v4374 = vpack.c.b16 %v4294, %v4292
        %v4375 = vpack.c.b16 %v4297, %v4295
        %v4376 = vpack.c.b16 %v4298, %v4296
        %v4377 = vpack.c.b16 %v4301, %v4299
        %v4378 = vpack.c.b16 %v4302, %v4300
        %v4379 = vpack.c.b16 %v4305, %v4303
        %v4380 = vpack.c.b16 %v4306, %v4304
        %v4381 = vpack.c.b16 %v4309, %v4307
        %v4382 = vpack.c.b16 %v4310, %v4308
        %v4383 = vpack.c.b16 %v4313, %v4311
        %v4384 = vpack.c.b16 %v4314, %v4312
        %v4385 = vpack.c.b16 %v4317, %v4315
        %v4386 = vpack.c.b16 %v4318, %v4316
        %v4387 = vpack.c.b16 %v4321, %v4319
        %v4388 = vpack.c.b16 %v4322, %v4320
        %v4389 = vpack.c.b16 %v4325, %v4323
        %v4390 = vpack.c.b16 %v4326, %v4324
        %4455 = vmatprep.subr.bf16.mxu0 %v4328
        %4456 = vmatpush1.bf16.msra.mxu0 %v4327
        %4457 = vmatprep.subr.bf16.mxu0 %v4330
        %4458 = vmatpush1.bf16.msra.mxu0 %v4329
        %4459 = vmatprep.subr.bf16.mxu0 %v4332
        %4460 = vmatpush1.bf16.msra.mxu0 %v4331
        %4461 = vmatprep.subr.bf16.mxu0 %v4334
        %4462 = vmatpush1.bf16.msra.mxu0 %v4333
        %4463 = vmatprep.subr.bf16.mxu0 %v4336
        %4464 = vmatpush1.bf16.msra.mxu0 %v4335
        %4465 = vmatprep.subr.bf16.mxu0 %v4338
        %4466 = vmatpush1.bf16.msra.mxu0 %v4337
        %4467 = vmatprep.subr.bf16.mxu0 %v4340
        %4468 = vmatpush1.bf16.msra.mxu0 %v4339
        %4469 = vmatprep.subr.bf16.mxu0 %v4342
        %4470 = vmatpush1.bf16.msra.mxu0 %v4341
        %4471 = vmatprep.subr.bf16.mxu0 %v4344
        %4472 = vmatpush1.bf16.msra.mxu0 %v4343
        %4473 = vmatprep.subr.bf16.mxu0 %v4346
        %4474 = vmatpush1.bf16.msra.mxu0 %v4345
        %4475 = vmatprep.subr.bf16.mxu0 %v4348
        %4476 = vmatpush1.bf16.msra.mxu0 %v4347
        %4477 = vmatprep.subr.bf16.mxu0 %v4350
        %4478 = vmatpush1.bf16.msra.mxu0 %v4349
        %4479 = vmatprep.subr.bf16.mxu0 %v4352
        %4480 = vmatpush1.bf16.msra.mxu0 %v4351
        %4481 = vmatprep.subr.bf16.mxu0 %v4354
        %4482 = vmatpush1.bf16.msra.mxu0 %v4353
        %4483 = vmatprep.subr.bf16.mxu0 %v4356
        %4484 = vmatpush1.bf16.msra.mxu0 %v4355
        %4485 = vmatprep.subr.bf16.mxu0 %v4358
        %4486 = vmatpush1.bf16.msra.mxu0 %v4357
        %4487 = vmatprep.mubr.bf16.mxu0 %v3996
        %4488 = vmatmul.mubr.bf16.gmra.mrb[0].mxu0 %v3995
        %v4489 = vpop.f32.mrb[0].mxu0
        %v4490 = vadd.f32 %v4128, %v4489
        %v4491 = vpop.f32.mrb[0].mxu0
        %v4492 = vadd.f32 %v4132, %v4491
        %v4493 = vpop.f32.mrb[0].mxu0
        %v4494 = vadd.f32 %v4128, %v4493
        %v4495 = vpop.f32.mrb[0].mxu0
        %v4496 = vadd.f32 %v4132, %v4495
        %4497 = vmatprep.mubr.bf16.mxu0 %v4000
        %4498 = vmatmul.mubr.bf16.gmra.mrb[0].mxu0 %v3999
        %v4499 = vpop.f32.mrb[0].mxu0
        %v4500 = vadd.f32 %v4128, %v4499
        %v4501 = vpop.f32.mrb[0].mxu0
        %v4502 = vadd.f32 %v4132, %v4501
        %v4503 = vpop.f32.mrb[0].mxu0
        %v4504 = vadd.f32 %v4128, %v4503
        %v4505 = vpop.f32.mrb[0].mxu0
        %v4506 = vadd.f32 %v4132, %v4505
        %4507 = vmatprep.mubr.bf16.mxu0 %v4004
        %4508 = vmatmul.mubr.bf16.gmra.mrb[0].mxu0 %v4003
        %v4509 = vpop.f32.mrb[0].mxu0
        %v4510 = vadd.f32 %v4128, %v4509
        %v4511 = vpop.f32.mrb[0].mxu0
        %v4512 = vadd.f32 %v4132, %v4511
        %v4513 = vpop.f32.mrb[0].mxu0
        %v4514 = vadd.f32 %v4128, %v4513
        %v4515 = vpop.f32.mrb[0].mxu0
        %v4516 = vadd.f32 %v4132, %v4515
        %4517 = vmatprep.mubr.bf16.mxu0 %v4008
        %4518 = vmatmul.mubr.bf16.gmra.mrb[0].mxu0 %v4007
        %v4519 = vpop.f32.mrb[0].mxu0
        %v4520 = vadd.f32 %v4128, %v4519
        %v4521 = vpop.f32.mrb[0].mxu0
        %v4522 = vadd.f32 %v4132, %v4521
        %v4523 = vpop.f32.mrb[0].mxu0
        %v4524 = vadd.f32 %v4128, %v4523
        %v4525 = vpop.f32.mrb[0].mxu0
        %v4526 = vadd.f32 %v4132, %v4525
        %4527 = vmatprep.mubr.bf16.mxu0 %v4012
        %4528 = vmatmul.mubr.bf16.gmra.mrb[0].mxu0 %v4011
        %v4529 = vpop.f32.mrb[0].mxu0
        %v4530 = vadd.f32 %v4128, %v4529
        %v4531 = vpop.f32.mrb[0].mxu0
        %v4532 = vadd.f32 %v4132, %v4531
        %v4533 = vpop.f32.mrb[0].mxu0
        %v4534 = vadd.f32 %v4128, %v4533
        %v4535 = vpop.f32.mrb[0].mxu0
        %v4536 = vadd.f32 %v4132, %v4535
        %4537 = vmatprep.mubr.bf16.mxu0 %v4016
        %4538 = vmatmul.mubr.bf16.gmra.mrb[0].mxu0 %v4015
        %v4539 = vpop.f32.mrb[0].mxu0
        %v4540 = vadd.f32 %v4128, %v4539
        %v4541 = vpop.f32.mrb[0].mxu0
        %v4542 = vadd.f32 %v4132, %v4541
        %v4543 = vpop.f32.mrb[0].mxu0
        %v4544 = vadd.f32 %v4128, %v4543
        %v4545 = vpop.f32.mrb[0].mxu0
        %v4546 = vadd.f32 %v4132, %v4545
        %4547 = vmatprep.mubr.bf16.mxu0 %v4020
        %4548 = vmatmul.mubr.bf16.gmra.mrb[0].mxu0 %v4019
        %v4549 = vpop.f32.mrb[0].mxu0
        %v4550 = vadd.f32 %v4128, %v4549
        %v4551 = vpop.f32.mrb[0].mxu0
        %v4552 = vadd.f32 %v4132, %v4551
        %v4553 = vpop.f32.mrb[0].mxu0
        %v4554 = vadd.f32 %v4128, %v4553
        %v4555 = vpop.f32.mrb[0].mxu0
        %v4556 = vadd.f32 %v4132, %v4555
        %4557 = vmatprep.mubr.bf16.mxu0 %v4024
        %4558 = vmatmul.mubr.bf16.gmra.mrb[0].mxu0 %v4023
        %v4559 = vpop.f32.mrb[0].mxu0
        %v4560 = vadd.f32 %v4128, %v4559
        %v4561 = vpop.f32.mrb[0].mxu0
        %v4562 = vadd.f32 %v4132, %v4561
        %v4563 = vpop.f32.mrb[0].mxu0
        %v4564 = vadd.f32 %v4128, %v4563
        %v4565 = vpop.f32.mrb[0].mxu0
        %v4566 = vadd.f32 %v4132, %v4565
        %4567 = vmatprep.mubr.bf16.mxu0 %v4028
        %4568 = vmatmul.mubr.bf16.gmra.mrb[0].mxu0 %v4027
        %v4569 = vpop.f32.mrb[0].mxu0
        %v4570 = vadd.f32 %v4128, %v4569
        %v4571 = vpop.f32.mrb[0].mxu0
        %v4572 = vadd.f32 %v4132, %v4571
        %v4573 = vpop.f32.mrb[0].mxu0
        %v4574 = vadd.f32 %v4128, %v4573
        %v4575 = vpop.f32.mrb[0].mxu0
        %v4576 = vadd.f32 %v4132, %v4575
        %4577 = vmatprep.mubr.bf16.mxu0 %v4032
        %4578 = vmatmul.mubr.bf16.gmra.mrb[0].mxu0 %v4031
        %v4579 = vpop.f32.mrb[0].mxu0
        %v4580 = vadd.f32 %v4128, %v4579
        %v4581 = vpop.f32.mrb[0].mxu0
        %v4582 = vadd.f32 %v4132, %v4581
        %v4583 = vpop.f32.mrb[0].mxu0
        %v4584 = vadd.f32 %v4128, %v4583
        %v4585 = vpop.f32.mrb[0].mxu0
        %v4586 = vadd.f32 %v4132, %v4585
        %4587 = vmatprep.mubr.bf16.mxu0 %v4036
        %4588 = vmatmul.mubr.bf16.gmra.mrb[0].mxu0 %v4035
        %v4589 = vpop.f32.mrb[0].mxu0
        %v4590 = vadd.f32 %v4128, %v4589
        %v4591 = vpop.f32.mrb[0].mxu0
        %v4592 = vadd.f32 %v4132, %v4591
        %v4593 = vpop.f32.mrb[0].mxu0
        %v4594 = vadd.f32 %v4128, %v4593
        %v4595 = vpop.f32.mrb[0].mxu0
        %v4596 = vadd.f32 %v4132, %v4595
        %4597 = vmatprep.mubr.bf16.mxu0 %v4040
        %4598 = vmatmul.mubr.bf16.gmra.mrb[0].mxu0 %v4039
        %v4599 = vpop.f32.mrb[0].mxu0
        %v4600 = vadd.f32 %v4128, %v4599
        %v4601 = vpop.f32.mrb[0].mxu0
        %v4602 = vadd.f32 %v4132, %v4601
        %v4603 = vpop.f32.mrb[0].mxu0
        %v4604 = vadd.f32 %v4128, %v4603
        %v4605 = vpop.f32.mrb[0].mxu0
        %v4606 = vadd.f32 %v4132, %v4605
        %4607 = vmatprep.mubr.bf16.mxu0 %v4044
        %4608 = vmatmul.mubr.bf16.gmra.mrb[0].mxu0 %v4043
        %v4609 = vpop.f32.mrb[0].mxu0
        %v4610 = vadd.f32 %v4128, %v4609
        %v4611 = vpop.f32.mrb[0].mxu0
        %v4612 = vadd.f32 %v4132, %v4611
        %v4613 = vpop.f32.mrb[0].mxu0
        %v4614 = vadd.f32 %v4128, %v4613
        %v4615 = vpop.f32.mrb[0].mxu0
        %v4616 = vadd.f32 %v4132, %v4615
        %4617 = vmatprep.mubr.bf16.mxu0 %v4048
        %4618 = vmatmul.mubr.bf16.gmra.mrb[0].mxu0 %v4047
        %v4619 = vpop.f32.mrb[0].mxu0
        %v4620 = vadd.f32 %v4128, %v4619
        %v4621 = vpop.f32.mrb[0].mxu0
        %v4622 = vadd.f32 %v4132, %v4621
        %v4623 = vpop.f32.mrb[0].mxu0
        %v4624 = vadd.f32 %v4128, %v4623
        %v4625 = vpop.f32.mrb[0].mxu0
        %v4626 = vadd.f32 %v4132, %v4625
        %4627 = vmatprep.mubr.bf16.mxu0 %v4052
        %4628 = vmatmul.mubr.bf16.gmra.mrb[0].mxu0 %v4051
        %v4629 = vpop.f32.mrb[0].mxu0
        %v4630 = vadd.f32 %v4128, %v4629
        %v4631 = vpop.f32.mrb[0].mxu0
        %v4632 = vadd.f32 %v4132, %v4631
        %v4633 = vpop.f32.mrb[0].mxu0
        %v4634 = vadd.f32 %v4128, %v4633
        %v4635 = vpop.f32.mrb[0].mxu0
        %v4636 = vadd.f32 %v4132, %v4635
        %4637 = vmatprep.mubr.bf16.mxu0 %v4056
        %4638 = vmatmul.mubr.bf16.gmra.mrb[0].mxu0 %v4055
        %v4639 = vpop.f32.mrb[0].mxu0
        %v4640 = vadd.f32 %v4128, %v4639
        %v4641 = vpop.f32.mrb[0].mxu0
        %v4642 = vadd.f32 %v4132, %v4641
        %v4643 = vpop.f32.mrb[0].mxu0
        %v4644 = vadd.f32 %v4128, %v4643
        %v4645 = vpop.f32.mrb[0].mxu0
        %v4646 = vadd.f32 %v4132, %v4645
        %4647 = vdwg.mxu0
        %4648 = vmatprep.subr.bf16.mxu0 %v4360
        %4649 = vmatpush1.bf16.msra.mxu0 %v4359
        %4650 = vmatprep.subr.bf16.mxu0 %v4362
        %4651 = vmatpush1.bf16.msra.mxu0 %v4361
        %4652 = vmatprep.subr.bf16.mxu0 %v4364
        %4653 = vmatpush1.bf16.msra.mxu0 %v4363
        %4654 = vmatprep.subr.bf16.mxu0 %v4366
        %4655 = vmatpush1.bf16.msra.mxu0 %v4365
        %4656 = vmatprep.subr.bf16.mxu0 %v4368
        %4657 = vmatpush1.bf16.msra.mxu0 %v4367
        %4658 = vmatprep.subr.bf16.mxu0 %v4370
        %4659 = vmatpush1.bf16.msra.mxu0 %v4369
        %4660 = vmatprep.subr.bf16.mxu0 %v4372
        %4661 = vmatpush1.bf16.msra.mxu0 %v4371
        %4662 = vmatprep.subr.bf16.mxu0 %v4374
        %4663 = vmatpush1.bf16.msra.mxu0 %v4373
        %4664 = vmatprep.subr.bf16.mxu0 %v4376
        %4665 = vmatpush1.bf16.msra.mxu0 %v4375
        %4666 = vmatprep.subr.bf16.mxu0 %v4378
        %4667 = vmatpush1.bf16.msra.mxu0 %v4377
        %4668 = vmatprep.subr.bf16.mxu0 %v4380
        %4669 = vmatpush1.bf16.msra.mxu0 %v4379
        %4670 = vmatprep.subr.bf16.mxu0 %v4382
        %4671 = vmatpush1.bf16.msra.mxu0 %v4381
        %4672 = vmatprep.subr.bf16.mxu0 %v4384
        %4673 = vmatpush1.bf16.msra.mxu0 %v4383
        %4674 = vmatprep.subr.bf16.mxu0 %v4386
        %4675 = vmatpush1.bf16.msra.mxu0 %v4385
        %4676 = vmatprep.subr.bf16.mxu0 %v4388
        %4677 = vmatpush1.bf16.msra.mxu0 %v4387
        %4678 = vmatprep.subr.bf16.mxu0 %v4390
        %4679 = vmatpush1.bf16.msra.mxu0 %v4389
        %4680 = vmatprep.mubr.bf16.mxu0 %v3998
        %4681 = vmatmul.mubr.bf16.gmra.mrb[0].mxu0 %v3997
        %v4682 = vpop.f32.mrb[0].mxu0
        %v4683 = vadd.f32 %v4490, %v4682
        %v4684 = vpop.f32.mrb[0].mxu0
        %v4685 = vadd.f32 %v4492, %v4684
        %v4686 = vpop.f32.mrb[0].mxu0
        %v4687 = vadd.f32 %v4494, %v4686
        %v4688 = vpop.f32.mrb[0].mxu0
        %v4689 = vadd.f32 %v4496, %v4688
        %4690 = vmatprep.mubr.bf16.mxu0 %v4002
        %4691 = vmatmul.mubr.bf16.gmra.mrb[0].mxu0 %v4001
        %v4692 = vpop.f32.mrb[0].mxu0
        %v4693 = vadd.f32 %v4500, %v4692
        %v4694 = vpop.f32.mrb[0].mxu0
        %v4695 = vadd.f32 %v4502, %v4694
        %v4696 = vpop.f32.mrb[0].mxu0
        %v4697 = vadd.f32 %v4504, %v4696
        %v4698 = vpop.f32.mrb[0].mxu0
        %v4699 = vadd.f32 %v4506, %v4698
        %4700 = vmatprep.mubr.bf16.mxu0 %v4006
        %4701 = vmatmul.mubr.bf16.gmra.mrb[0].mxu0 %v4005
        %v4702 = vpop.f32.mrb[0].mxu0
        %v4703 = vadd.f32 %v4510, %v4702
        %v4704 = vpop.f32.mrb[0].mxu0
        %v4705 = vadd.f32 %v4512, %v4704
        %v4706 = vpop.f32.mrb[0].mxu0
        %v4707 = vadd.f32 %v4514, %v4706
        %v4708 = vpop.f32.mrb[0].mxu0
        %v4709 = vadd.f32 %v4516, %v4708
        %4710 = vmatprep.mubr.bf16.mxu0 %v4010
        %4711 = vmatmul.mubr.bf16.gmra.mrb[0].mxu0 %v4009
        %v4712 = vpop.f32.mrb[0].mxu0
        %v4713 = vadd.f32 %v4520, %v4712
        %v4714 = vpop.f32.mrb[0].mxu0
        %v4715 = vadd.f32 %v4522, %v4714
        %v4716 = vpop.f32.mrb[0].mxu0
        %v4717 = vadd.f32 %v4524, %v4716
        %v4718 = vpop.f32.mrb[0].mxu0
        %v4719 = vadd.f32 %v4526, %v4718
        %4720 = vmatprep.mubr.bf16.mxu0 %v4014
        %4721 = vmatmul.mubr.bf16.gmra.mrb[0].mxu0 %v4013
        %v4722 = vpop.f32.mrb[0].mxu0
        %v4723 = vadd.f32 %v4530, %v4722
        %v4724 = vpop.f32.mrb[0].mxu0
        %v4725 = vadd.f32 %v4532, %v4724
        %v4726 = vpop.f32.mrb[0].mxu0
        %v4727 = vadd.f32 %v4534, %v4726
        %v4728 = vpop.f32.mrb[0].mxu0
        %v4729 = vadd.f32 %v4536, %v4728
        %4730 = vmatprep.mubr.bf16.mxu0 %v4018
        %4731 = vmatmul.mubr.bf16.gmra.mrb[0].mxu0 %v4017
        %v4732 = vpop.f32.mrb[0].mxu0
        %v4733 = vadd.f32 %v4540, %v4732
        %v4734 = vpop.f32.mrb[0].mxu0
        %v4735 = vadd.f32 %v4542, %v4734
        %v4736 = vpop.f32.mrb[0].mxu0
        %v4737 = vadd.f32 %v4544, %v4736
        %v4738 = vpop.f32.mrb[0].mxu0
        %v4739 = vadd.f32 %v4546, %v4738
        %4740 = vmatprep.mubr.bf16.mxu0 %v4022
        %4741 = vmatmul.mubr.bf16.gmra.mrb[0].mxu0 %v4021
        %v4742 = vpop.f32.mrb[0].mxu0
        %v4743 = vadd.f32 %v4550, %v4742
        %v4744 = vpop.f32.mrb[0].mxu0
        %v4745 = vadd.f32 %v4552, %v4744
        %v4746 = vpop.f32.mrb[0].mxu0
        %v4747 = vadd.f32 %v4554, %v4746
        %v4748 = vpop.f32.mrb[0].mxu0
        %v4749 = vadd.f32 %v4556, %v4748
        %4750 = vmatprep.mubr.bf16.mxu0 %v4026
        %4751 = vmatmul.mubr.bf16.gmra.mrb[0].mxu0 %v4025
        %v4752 = vpop.f32.mrb[0].mxu0
        %v4753 = vadd.f32 %v4560, %v4752
        %v4754 = vpop.f32.mrb[0].mxu0
        %v4755 = vadd.f32 %v4562, %v4754
        %v4756 = vpop.f32.mrb[0].mxu0
        %v4757 = vadd.f32 %v4564, %v4756
        %v4758 = vpop.f32.mrb[0].mxu0
        %v4759 = vadd.f32 %v4566, %v4758
        %4760 = vmatprep.mubr.bf16.mxu0 %v4030
        %4761 = vmatmul.mubr.bf16.gmra.mrb[0].mxu0 %v4029
        %v4762 = vpop.f32.mrb[0].mxu0
        %v4763 = vadd.f32 %v4570, %v4762
        %v4764 = vpop.f32.mrb[0].mxu0
        %v4765 = vadd.f32 %v4572, %v4764
        %v4766 = vpop.f32.mrb[0].mxu0
        %v4767 = vadd.f32 %v4574, %v4766
        %v4768 = vpop.f32.mrb[0].mxu0
        %v4769 = vadd.f32 %v4576, %v4768
        %4770 = vmatprep.mubr.bf16.mxu0 %v4034
        %4771 = vmatmul.mubr.bf16.gmra.mrb[0].mxu0 %v4033
        %v4772 = vpop.f32.mrb[0].mxu0
        %v4773 = vadd.f32 %v4580, %v4772
        %v4774 = vpop.f32.mrb[0].mxu0
        %v4775 = vadd.f32 %v4582, %v4774
        %v4776 = vpop.f32.mrb[0].mxu0
        %v4777 = vadd.f32 %v4584, %v4776
        %v4778 = vpop.f32.mrb[0].mxu0
        %v4779 = vadd.f32 %v4586, %v4778
        %4780 = vmatprep.mubr.bf16.mxu0 %v4038
        %4781 = vmatmul.mubr.bf16.gmra.mrb[0].mxu0 %v4037
        %v4782 = vpop.f32.mrb[0].mxu0
        %v4783 = vadd.f32 %v4590, %v4782
        %v4784 = vpop.f32.mrb[0].mxu0
        %v4785 = vadd.f32 %v4592, %v4784
        %v4786 = vpop.f32.mrb[0].mxu0
        %v4787 = vadd.f32 %v4594, %v4786
        %v4788 = vpop.f32.mrb[0].mxu0
        %v4789 = vadd.f32 %v4596, %v4788
        %4790 = vmatprep.mubr.bf16.mxu0 %v4042
        %4791 = vmatmul.mubr.bf16.gmra.mrb[0].mxu0 %v4041
        %v4792 = vpop.f32.mrb[0].mxu0
        %v4793 = vadd.f32 %v4600, %v4792
        %v4794 = vpop.f32.mrb[0].mxu0
        %v4795 = vadd.f32 %v4602, %v4794
        %v4796 = vpop.f32.mrb[0].mxu0
        %v4797 = vadd.f32 %v4604, %v4796
        %v4798 = vpop.f32.mrb[0].mxu0
        %v4799 = vadd.f32 %v4606, %v4798
        %4800 = vmatprep.mubr.bf16.mxu0 %v4046
        %4801 = vmatmul.mubr.bf16.gmra.mrb[0].mxu0 %v4045
        %v4802 = vpop.f32.mrb[0].mxu0
        %v4803 = vadd.f32 %v4610, %v4802
        %v4804 = vpop.f32.mrb[0].mxu0
        %v4805 = vadd.f32 %v4612, %v4804
        %v4806 = vpop.f32.mrb[0].mxu0
        %v4807 = vadd.f32 %v4614, %v4806
        %v4808 = vpop.f32.mrb[0].mxu0
        %v4809 = vadd.f32 %v4616, %v4808
        %4810 = vmatprep.mubr.bf16.mxu0 %v4050
        %4811 = vmatmul.mubr.bf16.gmra.mrb[0].mxu0 %v4049
        %v4812 = vpop.f32.mrb[0].mxu0
        %v4813 = vadd.f32 %v4620, %v4812
        %v4814 = vpop.f32.mrb[0].mxu0
        %v4815 = vadd.f32 %v4622, %v4814
        %v4816 = vpop.f32.mrb[0].mxu0
        %v4817 = vadd.f32 %v4624, %v4816
        %v4818 = vpop.f32.mrb[0].mxu0
        %v4819 = vadd.f32 %v4626, %v4818
        %4820 = vmatprep.mubr.bf16.mxu0 %v4054
        %4821 = vmatmul.mubr.bf16.gmra.mrb[0].mxu0 %v4053
        %v4822 = vpop.f32.mrb[0].mxu0
        %v4823 = vadd.f32 %v4630, %v4822
        %v4824 = vpop.f32.mrb[0].mxu0
        %v4825 = vadd.f32 %v4632, %v4824
        %v4826 = vpop.f32.mrb[0].mxu0
        %v4827 = vadd.f32 %v4634, %v4826
        %v4828 = vpop.f32.mrb[0].mxu0
        %v4829 = vadd.f32 %v4636, %v4828
        %4830 = vmatprep.mubr.bf16.mxu0 %v4058
        %4831 = vmatmul.mubr.bf16.gmra.mrb[0].mxu0 %v4057
        %v4832 = vpop.f32.mrb[0].mxu0
        %v4833 = vadd.f32 %v4640, %v4832
        %v4834 = vpop.f32.mrb[0].mxu0
        %v4835 = vadd.f32 %v4642, %v4834
        %v4836 = vpop.f32.mrb[0].mxu0
        %v4837 = vadd.f32 %v4644, %v4836
        %v4838 = vpop.f32.mrb[0].mxu0
        %v4839 = vadd.f32 %v4646, %v4838
        %4840 = vdwg.mxu0
        %v4841 = vmax.f32 %v4683, 0.0
        %v4842 = vmax.f32 %v4685, 0.0
        %v4843 = vmax.f32 %v4687, 0.0
        %v4844 = vmax.f32 %v4689, 0.0
        %v4845 = vmax.f32 %v4693, 0.0
        %v4846 = vmax.f32 %v4695, 0.0
        %v4847 = vmax.f32 %v4697, 0.0
        %v4848 = vmax.f32 %v4699, 0.0
        %v4849 = vmax.f32 %v4703, 0.0
        %v4850 = vmax.f32 %v4705, 0.0
        %v4851 = vmax.f32 %v4707, 0.0
        %v4852 = vmax.f32 %v4709, 0.0
        %v4853 = vmax.f32 %v4713, 0.0
        %v4854 = vmax.f32 %v4715, 0.0
        %v4855 = vmax.f32 %v4717, 0.0
        %v4856 = vmax.f32 %v4719, 0.0
        %v4857 = vmax.f32 %v4723, 0.0
        %v4858 = vmax.f32 %v4725, 0.0
        %v4859 = vmax.f32 %v4727, 0.0
        %v4860 = vmax.f32 %v4729, 0.0
        %v4861 = vmax.f32 %v4733, 0.0
        %v4862 = vmax.f32 %v4735, 0.0
        %v4863 = vmax.f32 %v4737, 0.0
        %v4864 = vmax.f32 %v4739, 0.0
        %v4865 = vmax.f32 %v4743, 0.0
        %v4866 = vmax.f32 %v4745, 0.0
        %v4867 = vmax.f32 %v4747, 0.0
        %v4868 = vmax.f32 %v4749, 0.0
        %v4869 = vmax.f32 %v4753, 0.0
        %v4870 = vmax.f32 %v4755, 0.0
        %v4871 = vmax.f32 %v4757, 0.0
        %v4872 = vmax.f32 %v4759, 0.0
        %v4873 = vmax.f32 %v4763, 0.0
        %v4874 = vmax.f32 %v4765, 0.0
        %v4875 = vmax.f32 %v4767, 0.0
        %v4876 = vmax.f32 %v4769, 0.0
        %v4877 = vmax.f32 %v4773, 0.0
        %v4878 = vmax.f32 %v4775, 0.0
        %v4879 = vmax.f32 %v4777, 0.0
        %v4880 = vmax.f32 %v4779, 0.0
        %v4881 = vmax.f32 %v4783, 0.0
        %v4882 = vmax.f32 %v4785, 0.0
        %v4883 = vmax.f32 %v4787, 0.0
        %v4884 = vmax.f32 %v4789, 0.0
        %v4885 = vmax.f32 %v4793, 0.0
        %v4886 = vmax.f32 %v4795, 0.0
        %v4887 = vmax.f32 %v4797, 0.0
        %v4888 = vmax.f32 %v4799, 0.0
        %v4889 = vmax.f32 %v4803, 0.0
        %v4890 = vmax.f32 %v4805, 0.0
        %v4891 = vmax.f32 %v4807, 0.0
        %v4892 = vmax.f32 %v4809, 0.0
        %v4893 = vmax.f32 %v4813, 0.0
        %v4894 = vmax.f32 %v4815, 0.0
        %v4895 = vmax.f32 %v4817, 0.0
        %v4896 = vmax.f32 %v4819, 0.0
        %v4897 = vmax.f32 %v4823, 0.0
        %v4898 = vmax.f32 %v4825, 0.0
        %v4899 = vmax.f32 %v4827, 0.0
        %v4900 = vmax.f32 %v4829, 0.0
        %v4901 = vmax.f32 %v4833, 0.0
        %v4902 = vmax.f32 %v4835, 0.0
        %v4903 = vmax.f32 %v4837, 0.0
        %v4904 = vmax.f32 %v4839, 0.0
        %v4905 = vld [vmem:[#allocation11] sm:$0x3]
        %v4907 = vlaneseq
        %v4908 = vshrl.u32 %v4907, 7
        %v4909 = vsub.s32 0, %v4908
        %v4910 = vrot.slane %v4905, %v4909
        %v4911 = vlaneseq
        %v4912 = vshrl.u32 %v4911, 7
        %v4913 = vsub.s32 1, %v4912
        %v4914 = vrot.slane %v4905, %v4913
        %v4917 = vmul.f32 %v4841, %v4910
        %v4918 = vmul.f32 %v4842, %v4914
        %v4919 = vmul.f32 %v4843, %v4910
        %v4920 = vmul.f32 %v4844, %v4914
        %v4921 = vmul.f32 %v4845, %v4910
        %v4922 = vmul.f32 %v4846, %v4914
        %v4923 = vmul.f32 %v4847, %v4910
        %v4924 = vmul.f32 %v4848, %v4914
        %v4925 = vmul.f32 %v4849, %v4910
        %v4926 = vmul.f32 %v4850, %v4914
        %v4927 = vmul.f32 %v4851, %v4910
        %v4928 = vmul.f32 %v4852, %v4914
        %v4929 = vmul.f32 %v4853, %v4910
        %v4930 = vmul.f32 %v4854, %v4914
        %v4931 = vmul.f32 %v4855, %v4910
        %v4932 = vmul.f32 %v4856, %v4914
        %v4933 = vmul.f32 %v4857, %v4910
        %v4934 = vmul.f32 %v4858, %v4914
        %v4935 = vmul.f32 %v4859, %v4910
        %v4936 = vmul.f32 %v4860, %v4914
        %v4937 = vmul.f32 %v4861, %v4910
        %v4938 = vmul.f32 %v4862, %v4914
        %v4939 = vmul.f32 %v4863, %v4910
        %v4940 = vmul.f32 %v4864, %v4914
        %v4941 = vmul.f32 %v4865, %v4910
        %v4942 = vmul.f32 %v4866, %v4914
        %v4943 = vmul.f32 %v4867, %v4910
        %v4944 = vmul.f32 %v4868, %v4914
        %v4945 = vmul.f32 %v4869, %v4910
        %v4946 = vmul.f32 %v4870, %v4914
        %v4947 = vmul.f32 %v4871, %v4910
        %v4948 = vmul.f32 %v4872, %v4914
        %v4949 = vmul.f32 %v4873, %v4910
        %v4950 = vmul.f32 %v4874, %v4914
        %v4951 = vmul.f32 %v4875, %v4910
        %v4952 = vmul.f32 %v4876, %v4914
        %v4953 = vmul.f32 %v4877, %v4910
        %v4954 = vmul.f32 %v4878, %v4914
        %v4955 = vmul.f32 %v4879, %v4910
        %v4956 = vmul.f32 %v4880, %v4914
        %v4957 = vmul.f32 %v4881, %v4910
        %v4958 = vmul.f32 %v4882, %v4914
        %v4959 = vmul.f32 %v4883, %v4910
        %v4960 = vmul.f32 %v4884, %v4914
        %v4961 = vmul.f32 %v4885, %v4910
        %v4962 = vmul.f32 %v4886, %v4914
        %v4963 = vmul.f32 %v4887, %v4910
        %v4964 = vmul.f32 %v4888, %v4914
        %v4965 = vmul.f32 %v4889, %v4910
        %v4966 = vmul.f32 %v4890, %v4914
        %v4967 = vmul.f32 %v4891, %v4910
        %v4968 = vmul.f32 %v4892, %v4914
        %v4969 = vmul.f32 %v4893, %v4910
        %v4970 = vmul.f32 %v4894, %v4914
        %v4971 = vmul.f32 %v4895, %v4910
        %v4972 = vmul.f32 %v4896, %v4914
        %v4973 = vmul.f32 %v4897, %v4910
        %v4974 = vmul.f32 %v4898, %v4914
        %v4975 = vmul.f32 %v4899, %v4910
        %v4976 = vmul.f32 %v4900, %v4914
        %v4977 = vmul.f32 %v4901, %v4910
        %v4978 = vmul.f32 %v4902, %v4914
        %v4979 = vmul.f32 %v4903, %v4910
        %v4980 = vmul.f32 %v4904, %v4914
        %v4981 = vadd.f32 %v4917, %v4918
        %4982 = vadd.xlane.f32.xlu0 %v4981
        %v4983 = vpop.xlane.xlu0 %4982
        %v4984 = vadd.f32 %v4919, %v4920
        %4985 = vadd.xlane.f32.xlu0 %v4984
        %v4986 = vpop.xlane.xlu0 %4985
        %v4987 = vadd.f32 %v4921, %v4922
        %4988 = vadd.xlane.f32.xlu0 %v4987
        %v4989 = vpop.xlane.xlu0 %4988
        %v4990 = vadd.f32 %v4923, %v4924
        %4991 = vadd.xlane.f32.xlu0 %v4990
        %v4992 = vpop.xlane.xlu0 %4991
        %v4993 = vadd.f32 %v4925, %v4926
        %4994 = vadd.xlane.f32.xlu0 %v4993
        %v4995 = vpop.xlane.xlu0 %4994
        %v4996 = vadd.f32 %v4927, %v4928
        %4997 = vadd.xlane.f32.xlu0 %v4996
        %v4998 = vpop.xlane.xlu0 %4997
        %v4999 = vadd.f32 %v4929, %v4930
        %5000 = vadd.xlane.f32.xlu0 %v4999
        %v5001 = vpop.xlane.xlu0 %5000
        %v5002 = vadd.f32 %v4931, %v4932
        %5003 = vadd.xlane.f32.xlu0 %v5002
        %v5004 = vpop.xlane.xlu0 %5003
        %v5005 = vadd.f32 %v4933, %v4934
        %5006 = vadd.xlane.f32.xlu0 %v5005
        %v5007 = vpop.xlane.xlu0 %5006
        %v5008 = vadd.f32 %v4935, %v4936
        %5009 = vadd.xlane.f32.xlu0 %v5008
        %v5010 = vpop.xlane.xlu0 %5009
        %v5011 = vadd.f32 %v4937, %v4938
        %5012 = vadd.xlane.f32.xlu0 %v5011
        %v5013 = vpop.xlane.xlu0 %5012
        %v5014 = vadd.f32 %v4939, %v4940
        %5015 = vadd.xlane.f32.xlu0 %v5014
        %v5016 = vpop.xlane.xlu0 %5015
        %v5017 = vadd.f32 %v4941, %v4942
        %5018 = vadd.xlane.f32.xlu0 %v5017
        %v5019 = vpop.xlane.xlu0 %5018
        %v5020 = vadd.f32 %v4943, %v4944
        %5021 = vadd.xlane.f32.xlu0 %v5020
        %v5022 = vpop.xlane.xlu0 %5021
        %v5023 = vadd.f32 %v4945, %v4946
        %5024 = vadd.xlane.f32.xlu0 %v5023
        %v5025 = vpop.xlane.xlu0 %5024
        %v5026 = vadd.f32 %v4947, %v4948
        %5027 = vadd.xlane.f32.xlu0 %v5026
        %v5028 = vpop.xlane.xlu0 %5027
        %v5029 = vadd.f32 %v4949, %v4950
        %5030 = vadd.xlane.f32.xlu0 %v5029
        %v5031 = vpop.xlane.xlu0 %5030
        %v5032 = vadd.f32 %v4951, %v4952
        %5033 = vadd.xlane.f32.xlu0 %v5032
        %v5034 = vpop.xlane.xlu0 %5033
        %v5035 = vadd.f32 %v4953, %v4954
        %5036 = vadd.xlane.f32.xlu0 %v5035
        %v5037 = vpop.xlane.xlu0 %5036
        %v5038 = vadd.f32 %v4955, %v4956
        %5039 = vadd.xlane.f32.xlu0 %v5038
        %v5040 = vpop.xlane.xlu0 %5039
        %v5041 = vadd.f32 %v4957, %v4958
        %5042 = vadd.xlane.f32.xlu0 %v5041
        %v5043 = vpop.xlane.xlu0 %5042
        %v5044 = vadd.f32 %v4959, %v4960
        %5045 = vadd.xlane.f32.xlu0 %v5044
        %v5046 = vpop.xlane.xlu0 %5045
        %v5047 = vadd.f32 %v4961, %v4962
        %5048 = vadd.xlane.f32.xlu0 %v5047
        %v5049 = vpop.xlane.xlu0 %5048
        %v5050 = vadd.f32 %v4963, %v4964
        %5051 = vadd.xlane.f32.xlu0 %v5050
        %v5052 = vpop.xlane.xlu0 %5051
        %v5053 = vadd.f32 %v4965, %v4966
        %5054 = vadd.xlane.f32.xlu0 %v5053
        %v5055 = vpop.xlane.xlu0 %5054
        %v5056 = vadd.f32 %v4967, %v4968
        %5057 = vadd.xlane.f32.xlu0 %v5056
        %v5058 = vpop.xlane.xlu0 %5057
        %v5059 = vadd.f32 %v4969, %v4970
        %5060 = vadd.xlane.f32.xlu0 %v5059
        %v5061 = vpop.xlane.xlu0 %5060
        %v5062 = vadd.f32 %v4971, %v4972
        %5063 = vadd.xlane.f32.xlu0 %v5062
        %v5064 = vpop.xlane.xlu0 %5063
        %v5065 = vadd.f32 %v4973, %v4974
        %5066 = vadd.xlane.f32.xlu0 %v5065
        %v5067 = vpop.xlane.xlu0 %5066
        %v5068 = vadd.f32 %v4975, %v4976
        %5069 = vadd.xlane.f32.xlu0 %v5068
        %v5070 = vpop.xlane.xlu0 %5069
        %v5071 = vadd.f32 %v4977, %v4978
        %5072 = vadd.xlane.f32.xlu0 %v5071
        %v5073 = vpop.xlane.xlu0 %5072
        %v5074 = vadd.f32 %v4979, %v4980
        %5075 = vadd.xlane.f32.xlu0 %v5074
        %v5076 = vpop.xlane.xlu0 %5075
        %v5077 = vld [vmem:[#allocation2] sm:$0x1]
        %v5079 = vlaneseq
        %v5080 = vshrl.u32 %v5079, 7
        %v5081 = vsub.s32 0, %v5080
        %v5082 = vrot.slane %v5077, %v5081
        %v5084 = vadd.f32 %v4983, %v5082
        %v5085 = vadd.f32 %v4986, %v5082
        %v5086 = vadd.f32 %v4989, %v5082
        %v5087 = vadd.f32 %v4992, %v5082
        %v5088 = vadd.f32 %v4995, %v5082
        %v5089 = vadd.f32 %v4998, %v5082
        %v5090 = vadd.f32 %v5001, %v5082
        %v5091 = vadd.f32 %v5004, %v5082
        %v5092 = vadd.f32 %v5007, %v5082
        %v5093 = vadd.f32 %v5010, %v5082
        %v5094 = vadd.f32 %v5013, %v5082
        %v5095 = vadd.f32 %v5016, %v5082
        %v5096 = vadd.f32 %v5019, %v5082
        %v5097 = vadd.f32 %v5022, %v5082
        %v5098 = vadd.f32 %v5025, %v5082
        %v5099 = vadd.f32 %v5028, %v5082
        %v5100 = vadd.f32 %v5031, %v5082
        %v5101 = vadd.f32 %v5034, %v5082
        %v5102 = vadd.f32 %v5037, %v5082
        %v5103 = vadd.f32 %v5040, %v5082
        %v5104 = vadd.f32 %v5043, %v5082
        %v5105 = vadd.f32 %v5046, %v5082
        %v5106 = vadd.f32 %v5049, %v5082
        %v5107 = vadd.f32 %v5052, %v5082
        %v5108 = vadd.f32 %v5055, %v5082
        %v5109 = vadd.f32 %v5058, %v5082
        %v5110 = vadd.f32 %v5061, %v5082
        %v5111 = vadd.f32 %v5064, %v5082
        %v5112 = vadd.f32 %v5067, %v5082
        %v5113 = vadd.f32 %v5070, %v5082
        %v5114 = vadd.f32 %v5073, %v5082
        %v5115 = vadd.f32 %v5076, %v5082
        %v5116 = vsub.f32 0.0, %v5084
        %v5117 = vsub.f32 0.0, %v5085
        %v5118 = vsub.f32 0.0, %v5086
        %v5119 = vsub.f32 0.0, %v5087
        %v5120 = vsub.f32 0.0, %v5088
        %v5121 = vsub.f32 0.0, %v5089
        %v5122 = vsub.f32 0.0, %v5090
        %v5123 = vsub.f32 0.0, %v5091
        %v5124 = vsub.f32 0.0, %v5092
        %v5125 = vsub.f32 0.0, %v5093
        %v5126 = vsub.f32 0.0, %v5094
        %v5127 = vsub.f32 0.0, %v5095
        %v5128 = vsub.f32 0.0, %v5096
        %v5129 = vsub.f32 0.0, %v5097
        %v5130 = vsub.f32 0.0, %v5098
        %v5131 = vsub.f32 0.0, %v5099
        %v5132 = vsub.f32 0.0, %v5100
        %v5133 = vsub.f32 0.0, %v5101
        %v5134 = vsub.f32 0.0, %v5102
        %v5135 = vsub.f32 0.0, %v5103
        %v5136 = vsub.f32 0.0, %v5104
        %v5137 = vsub.f32 0.0, %v5105
        %v5138 = vsub.f32 0.0, %v5106
        %v5139 = vsub.f32 0.0, %v5107
        %v5140 = vsub.f32 0.0, %v5108
        %v5141 = vsub.f32 0.0, %v5109
        %v5142 = vsub.f32 0.0, %v5110
        %v5143 = vsub.f32 0.0, %v5111
        %v5144 = vsub.f32 0.0, %v5112
        %v5145 = vsub.f32 0.0, %v5113
        %v5146 = vsub.f32 0.0, %v5114
        %v5147 = vsub.f32 0.0, %v5115
        %v5148 = vmul.f32 %v5116, 1.442695
        %v5149 = vpow.pop %v5148
        %v5150 = vmul.f32 %v5117, 1.442695
        %v5151 = vpow.pop %v5150
        %v5152 = vmul.f32 %v5118, 1.442695
        %v5153 = vpow.pop %v5152
        %v5154 = vmul.f32 %v5119, 1.442695
        %v5155 = vpow.pop %v5154
        %v5156 = vmul.f32 %v5120, 1.442695
        %v5157 = vpow.pop %v5156
        %v5158 = vmul.f32 %v5121, 1.442695
        %v5159 = vpow.pop %v5158
        %v5160 = vmul.f32 %v5122, 1.442695
        %v5161 = vpow.pop %v5160
        %v5162 = vmul.f32 %v5123, 1.442695
        %v5163 = vpow.pop %v5162
        %v5164 = vmul.f32 %v5124, 1.442695
        %v5165 = vpow.pop %v5164
        %v5166 = vmul.f32 %v5125, 1.442695
        %v5167 = vpow.pop %v5166
        %v5168 = vmul.f32 %v5126, 1.442695
        %v5169 = vpow.pop %v5168
        %v5170 = vmul.f32 %v5127, 1.442695
        %v5171 = vpow.pop %v5170
        %v5172 = vmul.f32 %v5128, 1.442695
        %v5173 = vpow.pop %v5172
        %v5174 = vmul.f32 %v5129, 1.442695
        %v5175 = vpow.pop %v5174
        %v5176 = vmul.f32 %v5130, 1.442695
        %v5177 = vpow.pop %v5176
        %v5178 = vmul.f32 %v5131, 1.442695
        %v5179 = vpow.pop %v5178
        %v5180 = vmul.f32 %v5132, 1.442695
        %v5181 = vpow.pop %v5180
        %v5182 = vmul.f32 %v5133, 1.442695
        %v5183 = vpow.pop %v5182
        %v5184 = vmul.f32 %v5134, 1.442695
        %v5185 = vpow.pop %v5184
        %v5186 = vmul.f32 %v5135, 1.442695
        %v5187 = vpow.pop %v5186
        %v5188 = vmul.f32 %v5136, 1.442695
        %v5189 = vpow.pop %v5188
        %v5190 = vmul.f32 %v5137, 1.442695
        %v5191 = vpow.pop %v5190
        %v5192 = vmul.f32 %v5138, 1.442695
        %v5193 = vpow.pop %v5192
        %v5194 = vmul.f32 %v5139, 1.442695
        %v5195 = vpow.pop %v5194
        %v5196 = vmul.f32 %v5140, 1.442695
        %v5197 = vpow.pop %v5196
        %v5198 = vmul.f32 %v5141, 1.442695
        %v5199 = vpow.pop %v5198
        %v5200 = vmul.f32 %v5142, 1.442695
        %v5201 = vpow.pop %v5200
        %v5202 = vmul.f32 %v5143, 1.442695
        %v5203 = vpow.pop %v5202
        %v5204 = vmul.f32 %v5144, 1.442695
        %v5205 = vpow.pop %v5204
        %v5206 = vmul.f32 %v5145, 1.442695
        %v5207 = vpow.pop %v5206
        %v5208 = vmul.f32 %v5146, 1.442695
        %v5209 = vpow.pop %v5208
        %v5210 = vmul.f32 %v5147, 1.442695
        %v5211 = vpow.pop %v5210
        %v5212 = vadd.f32 %v5149, 1.0
        %v5213 = vadd.f32 %v5151, 1.0
        %v5214 = vadd.f32 %v5153, 1.0
        %v5215 = vadd.f32 %v5155, 1.0
        %v5216 = vadd.f32 %v5157, 1.0
        %v5217 = vadd.f32 %v5159, 1.0
        %v5218 = vadd.f32 %v5161, 1.0
        %v5219 = vadd.f32 %v5163, 1.0
        %v5220 = vadd.f32 %v5165, 1.0
        %v5221 = vadd.f32 %v5167, 1.0
        %v5222 = vadd.f32 %v5169, 1.0
        %v5223 = vadd.f32 %v5171, 1.0
        %v5224 = vadd.f32 %v5173, 1.0
        %v5225 = vadd.f32 %v5175, 1.0
        %v5226 = vadd.f32 %v5177, 1.0
        %v5227 = vadd.f32 %v5179, 1.0
        %v5228 = vadd.f32 %v5181, 1.0
        %v5229 = vadd.f32 %v5183, 1.0
        %v5230 = vadd.f32 %v5185, 1.0
        %v5231 = vadd.f32 %v5187, 1.0
        %v5232 = vadd.f32 %v5189, 1.0
        %v5233 = vadd.f32 %v5191, 1.0
        %v5234 = vadd.f32 %v5193, 1.0
        %v5235 = vadd.f32 %v5195, 1.0
        %v5236 = vadd.f32 %v5197, 1.0
        %v5237 = vadd.f32 %v5199, 1.0
        %v5238 = vadd.f32 %v5201, 1.0
        %v5239 = vadd.f32 %v5203, 1.0
        %v5240 = vadd.f32 %v5205, 1.0
        %v5241 = vadd.f32 %v5207, 1.0
        %v5242 = vadd.f32 %v5209, 1.0
        %v5243 = vadd.f32 %v5211, 1.0
        %v5244 = vrcp.pop %v5212
        %v5245 = vrcp.pop %v5213
        %v5246 = vrcp.pop %v5214
        %v5247 = vrcp.pop %v5215
        %v5248 = vrcp.pop %v5216
        %v5249 = vrcp.pop %v5217
        %v5250 = vrcp.pop %v5218
        %v5251 = vrcp.pop %v5219
        %v5252 = vrcp.pop %v5220
        %v5253 = vrcp.pop %v5221
        %v5254 = vrcp.pop %v5222
        %v5255 = vrcp.pop %v5223
        %v5256 = vrcp.pop %v5224
        %v5257 = vrcp.pop %v5225
        %v5258 = vrcp.pop %v5226
        %v5259 = vrcp.pop %v5227
        %v5260 = vrcp.pop %v5228
        %v5261 = vrcp.pop %v5229
        %v5262 = vrcp.pop %v5230
        %v5263 = vrcp.pop %v5231
        %v5264 = vrcp.pop %v5232
        %v5265 = vrcp.pop %v5233
        %v5266 = vrcp.pop %v5234
        %v5267 = vrcp.pop %v5235
        %v5268 = vrcp.pop %v5236
        %v5269 = vrcp.pop %v5237
        %v5270 = vrcp.pop %v5238
        %v5271 = vrcp.pop %v5239
        %v5272 = vrcp.pop %v5240
        %v5273 = vrcp.pop %v5241
        %v5274 = vrcp.pop %v5242
        %v5275 = vrcp.pop %v5243
        %vm5276 = vcmask 7168
        %5277 = vst.msk [vmem:[%s369] sm:$0xff] %vm5276, %v5244
        %5278 = vst.msk [vmem:[%s369 + $0x8] sm:$0xff] %vm5276, %v5245
        %5279 = vst.msk [vmem:[%s369 + $0x10] sm:$0xff] %vm5276, %v5246
        %5280 = vst.msk [vmem:[%s369 + $0x18] sm:$0xff] %vm5276, %v5247
        %5281 = vst.msk [vmem:[%s369 + $0x20] sm:$0xff] %vm5276, %v5248
        %5282 = vst.msk [vmem:[%s369 + $0x28] sm:$0xff] %vm5276, %v5249
        %5283 = vst.msk [vmem:[%s369 + $0x30] sm:$0xff] %vm5276, %v5250
        %5284 = vst.msk [vmem:[%s369 + $0x38] sm:$0xff] %vm5276, %v5251
        %5285 = vst.msk [vmem:[%s369 + $0x40] sm:$0xff] %vm5276, %v5252
        %5286 = vst.msk [vmem:[%s369 + $0x48] sm:$0xff] %vm5276, %v5253
        %5287 = vst.msk [vmem:[%s369 + $0x50] sm:$0xff] %vm5276, %v5254
        %5288 = vst.msk [vmem:[%s369 + $0x58] sm:$0xff] %vm5276, %v5255
        %5289 = vst.msk [vmem:[%s369 + $0x60] sm:$0xff] %vm5276, %v5256
        %5290 = vst.msk [vmem:[%s369 + $0x68] sm:$0xff] %vm5276, %v5257
        %5291 = vst.msk [vmem:[%s369 + $0x70] sm:$0xff] %vm5276, %v5258
        %5292 = vst.msk [vmem:[%s369 + $0x78] sm:$0xff] %vm5276, %v5259
        %5293 = vst.msk [vmem:[%s369 + $0x80] sm:$0xff] %vm5276, %v5260
        %5294 = vst.msk [vmem:[%s369 + $0x88] sm:$0xff] %vm5276, %v5261
        %5295 = vst.msk [vmem:[%s369 + $0x90] sm:$0xff] %vm5276, %v5262
        %5296 = vst.msk [vmem:[%s369 + $0x98] sm:$0xff] %vm5276, %v5263
        %5297 = vst.msk [vmem:[%s369 + $0xa0] sm:$0xff] %vm5276, %v5264
        %5298 = vst.msk [vmem:[%s369 + $0xa8] sm:$0xff] %vm5276, %v5265
        %5299 = vst.msk [vmem:[%s369 + $0xb0] sm:$0xff] %vm5276, %v5266
        %5300 = vst.msk [vmem:[%s369 + $0xb8] sm:$0xff] %vm5276, %v5267
        %5301 = vst.msk [vmem:[%s369 + $0xc0] sm:$0xff] %vm5276, %v5268
        %5302 = vst.msk [vmem:[%s369 + $0xc8] sm:$0xff] %vm5276, %v5269
        %5303 = vst.msk [vmem:[%s369 + $0xd0] sm:$0xff] %vm5276, %v5270
        %5304 = vst.msk [vmem:[%s369 + $0xd8] sm:$0xff] %vm5276, %v5271
        %5305 = vst.msk [vmem:[%s369 + $0xe0] sm:$0xff] %vm5276, %v5272
        %5306 = vst.msk [vmem:[%s369 + $0xe8] sm:$0xff] %vm5276, %v5273
        %5307 = vst.msk [vmem:[%s369 + $0xf0] sm:$0xff] %vm5276, %v5274
        %5308 = vst.msk [vmem:[%s369 + $0xf8] sm:$0xff] %vm5276, %v5275
        %s5309 = sand.u32 %s186, 1
        %s5310 = sand.u32 %s186, 1
        %s5311 = smul.addr %s5310, 256
        %s5312 = scalar_lea.vmem [#allocation13], %s5311
        // Predicated region
        $region73: #{tpu_custom_call.1} parent=47 // pred_check
          %p5313 = pneg %p196
        $region74: #{tpu_custom_call.1} parent=47 // pred_check_branch
          %5315 = sbr.rel (%p5313) target = $region76
        $region75: #{tpu_custom_call.1} parent=47 // pred_region
          %s5316 = smul.u32 32, %s26
          %s5317 = ssub.s32 33, %s5316
          %p5318 = scmp.lt.s32.totalorder %s5317, 32
          %s5319 = scalar_select %p5318, %s5317, 32
          %s5320 = smul.u32 128, %s5319
          %p5321 = scmp.ne.s32.totalorder 0, %s5320
          %s5322 = smul.addr %s5316, 8
          %s5323 = scalar_lea.vmem %s7, %s5322
          // Predicated region
          $region77: #{tpu_custom_call.1} parent=75 // pred_check
            %p5324 = pneg %p5321
          $region78: #{tpu_custom_call.1} parent=75 // pred_check_branch
            %5326 = sbr.rel (%p5324) target = $region80
          $region79: #{tpu_custom_call.1} parent=75 // pred_region
            // Predicated region
            $region81: #{tpu_custom_call.1} parent=79 // pred_check
              _
            $region82: #{tpu_custom_call.1} parent=79 // pred_check_branch
              %5328 = sbr.rel (0) target = $region84
            $region83: #{tpu_custom_call.1} parent=79 // pred_region
              // Predicated region
              $region103: #{tpu_custom_call.1} parent=83 // pred_check
                _
              $region104: #{tpu_custom_call.1} parent=83 // pred_check_branch
                %5439 = sbr.rel (0) target = $region106
              $region105: #{tpu_custom_call.1} parent=83 // pred_region
                %s5440 = sshrl.u32 %s5319, 5
                // While loop
                $region107: #{tpu_custom_call.1} parent=105 // loop_pre_header
                  _
                $region108: #{tpu_custom_call.1} parent=105 // loop_header
                  %s5442 = sphi 0, %s5444
                  %p5443 = scmp.ge.s32.totalorder %s5442, %s5440
                  %s5447 = sphi 0, %s5516
                  %s5448 = sphi %s5312, %s5519
                  %s5449 = sphi %s5323, %s5520
                $region109: #{tpu_custom_call.1} parent=105 // loop_header_branch
                  %5446 = sbr.rel (%p5443) target = $region113
                $region110: #{tpu_custom_call.1} parent=105 // loop_body
                  %v5450 = vld [vmem:[%s5448] sm:$0xff]
                  %5451 = vst [vmem:[%s5449] sm:$0xff] %v5450
                  %v5452 = vld [vmem:[%s5448 + $0x8] sm:$0xff]
                  %5453 = vst [vmem:[%s5449 + $0x8] sm:$0xff] %v5452
                  %v5454 = vld [vmem:[%s5448 + $0x10] sm:$0xff]
                  %5455 = vst [vmem:[%s5449 + $0x10] sm:$0xff] %v5454
                  %v5456 = vld [vmem:[%s5448 + $0x18] sm:$0xff]
                  %5457 = vst [vmem:[%s5449 + $0x18] sm:$0xff] %v5456
                  %v5458 = vld [vmem:[%s5448 + $0x20] sm:$0xff]
                  %5459 = vst [vmem:[%s5449 + $0x20] sm:$0xff] %v5458
                  %v5460 = vld [vmem:[%s5448 + $0x28] sm:$0xff]
                  %5461 = vst [vmem:[%s5449 + $0x28] sm:$0xff] %v5460
                  %v5462 = vld [vmem:[%s5448 + $0x30] sm:$0xff]
                  %5463 = vst [vmem:[%s5449 + $0x30] sm:$0xff] %v5462
                  %v5464 = vld [vmem:[%s5448 + $0x38] sm:$0xff]
                  %5465 = vst [vmem:[%s5449 + $0x38] sm:$0xff] %v5464
                  %v5466 = vld [vmem:[%s5448 + $0x40] sm:$0xff]
                  %5467 = vst [vmem:[%s5449 + $0x40] sm:$0xff] %v5466
                  %v5468 = vld [vmem:[%s5448 + $0x48] sm:$0xff]
                  %5469 = vst [vmem:[%s5449 + $0x48] sm:$0xff] %v5468
                  %v5470 = vld [vmem:[%s5448 + $0x50] sm:$0xff]
                  %5471 = vst [vmem:[%s5449 + $0x50] sm:$0xff] %v5470
                  %v5472 = vld [vmem:[%s5448 + $0x58] sm:$0xff]
                  %5473 = vst [vmem:[%s5449 + $0x58] sm:$0xff] %v5472
                  %v5474 = vld [vmem:[%s5448 + $0x60] sm:$0xff]
                  %5475 = vst [vmem:[%s5449 + $0x60] sm:$0xff] %v5474
                  %v5476 = vld [vmem:[%s5448 + $0x68] sm:$0xff]
                  %5477 = vst [vmem:[%s5449 + $0x68] sm:$0xff] %v5476
                  %v5478 = vld [vmem:[%s5448 + $0x70] sm:$0xff]
                  %5479 = vst [vmem:[%s5449 + $0x70] sm:$0xff] %v5478
                  %v5480 = vld [vmem:[%s5448 + $0x78] sm:$0xff]
                  %5481 = vst [vmem:[%s5449 + $0x78] sm:$0xff] %v5480
                  %v5482 = vld [vmem:[%s5448 + $0x80] sm:$0xff]
                  %5483 = vst [vmem:[%s5449 + $0x80] sm:$0xff] %v5482
                  %v5484 = vld [vmem:[%s5448 + $0x88] sm:$0xff]
                  %5485 = vst [vmem:[%s5449 + $0x88] sm:$0xff] %v5484
                  %v5486 = vld [vmem:[%s5448 + $0x90] sm:$0xff]
                  %5487 = vst [vmem:[%s5449 + $0x90] sm:$0xff] %v5486
                  %v5488 = vld [vmem:[%s5448 + $0x98] sm:$0xff]
                  %5489 = vst [vmem:[%s5449 + $0x98] sm:$0xff] %v5488
                  %v5490 = vld [vmem:[%s5448 + $0xa0] sm:$0xff]
                  %5491 = vst [vmem:[%s5449 + $0xa0] sm:$0xff] %v5490
                  %v5492 = vld [vmem:[%s5448 + $0xa8] sm:$0xff]
                  %5493 = vst [vmem:[%s5449 + $0xa8] sm:$0xff] %v5492
                  %v5494 = vld [vmem:[%s5448 + $0xb0] sm:$0xff]
                  %5495 = vst [vmem:[%s5449 + $0xb0] sm:$0xff] %v5494
                  %v5496 = vld [vmem:[%s5448 + $0xb8] sm:$0xff]
                  %5497 = vst [vmem:[%s5449 + $0xb8] sm:$0xff] %v5496
                  %v5498 = vld [vmem:[%s5448 + $0xc0] sm:$0xff]
                  %5499 = vst [vmem:[%s5449 + $0xc0] sm:$0xff] %v5498
                  %v5500 = vld [vmem:[%s5448 + $0xc8] sm:$0xff]
                  %5501 = vst [vmem:[%s5449 + $0xc8] sm:$0xff] %v5500
                  %v5502 = vld [vmem:[%s5448 + $0xd0] sm:$0xff]
                  %5503 = vst [vmem:[%s5449 + $0xd0] sm:$0xff] %v5502
                  %v5504 = vld [vmem:[%s5448 + $0xd8] sm:$0xff]
                  %5505 = vst [vmem:[%s5449 + $0xd8] sm:$0xff] %v5504
                  %v5506 = vld [vmem:[%s5448 + $0xe0] sm:$0xff]
                  %5507 = vst [vmem:[%s5449 + $0xe0] sm:$0xff] %v5506
                  %v5508 = vld [vmem:[%s5448 + $0xe8] sm:$0xff]
                  %5509 = vst [vmem:[%s5449 + $0xe8] sm:$0xff] %v5508
                  %v5510 = vld [vmem:[%s5448 + $0xf0] sm:$0xff]
                  %5511 = vst [vmem:[%s5449 + $0xf0] sm:$0xff] %v5510
                  %v5512 = vld [vmem:[%s5448 + $0xf8] sm:$0xff]
                  %5513 = vst [vmem:[%s5449 + $0xf8] sm:$0xff] %v5512
                  %s5514 = sadd.s32 1, %s5447
                  %p5515 = scmp.ge.s32.totalorder %s5514, %s5440
                  %s5516 = scalar_select %p5515, 0, %s5514
                  %s5517 = smul.u32 %s5516, 256
                  %s5518 = smul.u32 %s5516, 256
                  %s5519 = scalar_lea.vmem %s5312, %s5517 [#allocation13]
                  %s5520 = scalar_lea.vmem %s5323, %s5518
                $region111: #{tpu_custom_call.1} parent=105 // loop_footer
                  %s5444 = sadd.s32 %s5442, 1
                $region112: #{tpu_custom_call.1} parent=105 // loop_footer_branch
                  %5441 = sbr.rel target = $region108
                $region113: #{tpu_custom_call.1} parent=105 // loop_exit
                  _
                %s5521 = sshrl.u32 %s5319, 5
                %s5522 = sand.u32 %s5319, 31
                %s5523 = smul.u32 %s5521, 32
                %s5524 = smul.u32 8, %s5523
                %s5525 = scalar_lea.vmem %s5312, %s5524 [#allocation13]
                %s5526 = smul.u32 8, %s5523
                %s5527 = scalar_lea.vmem %s5323, %s5526
                // While loop
                $region114: #{tpu_custom_call.1} parent=105 // loop_pre_header
                  _
                $region115: #{tpu_custom_call.1} parent=105 // loop_header
                  %s5529 = sphi 0, %s5531
                  %p5530 = scmp.ge.s32.totalorder %s5529, %s5522
                  %s5534 = sphi 0, %s5541
                  %s5535 = sphi %s5525, %s5544
                  %s5536 = sphi %s5527, %s5545
                $region116: #{tpu_custom_call.1} parent=105 // loop_header_branch
                  %5533 = sbr.rel (%p5530) target = $region120
                $region117: #{tpu_custom_call.1} parent=105 // loop_body
                  %v5537 = vld [vmem:[%s5535] sm:$0xff]
                  %5538 = vst [vmem:[%s5536] sm:$0xff] %v5537
                  %s5539 = sadd.s32 1, %s5534
                  %p5540 = scmp.ge.s32.totalorder %s5539, %s5522
                  %s5541 = scalar_select %p5540, 0, %s5539
                  %s5542 = smul.u32 %s5541, 8
                  %s5543 = smul.u32 %s5541, 8
                  %s5544 = scalar_lea.vmem %s5525, %s5542 [#allocation13]
                  %s5545 = scalar_lea.vmem %s5527, %s5543
                $region118: #{tpu_custom_call.1} parent=105 // loop_footer
                  %s5531 = sadd.s32 %s5529, 1
                $region119: #{tpu_custom_call.1} parent=105 // loop_footer_branch
                  %5528 = sbr.rel target = $region115
                $region120: #{tpu_custom_call.1} parent=105 // loop_exit
                  _
              $region106: #{tpu_custom_call.1} parent=83 // pred_fallthru
                _
              // Predicated region
              $region121: #{tpu_custom_call.1} parent=83 // pred_check
                _
              $region122: #{tpu_custom_call.1} parent=83 // pred_check_branch
                %5547 = sbr.rel target = $region124
              $region123: #{tpu_custom_call.1} parent=83 // pred_region
                _
              $region124: #{tpu_custom_call.1} parent=83 // pred_fallthru
                _
            $region84: #{tpu_custom_call.1} parent=79 // pred_fallthru
              _
            // Predicated region
            $region85: #{tpu_custom_call.1} parent=79 // pred_check
              _
            $region86: #{tpu_custom_call.1} parent=79 // pred_check_branch
              %5330 = sbr.rel target = $region88
            $region87: #{tpu_custom_call.1} parent=79 // pred_region
              %s5332 = sshrl.u32 %s5319, 5
              // While loop
              $region89: #{tpu_custom_call.1} parent=87 // loop_pre_header
                _
              $region90: #{tpu_custom_call.1} parent=87 // loop_header
                %s5334 = sphi 0, %s5336
                %p5335 = scmp.ge.s32.totalorder %s5334, %s5332
                %s5339 = sphi 0, %s5408
                %s5340 = sphi %s5312, %s5411
                %s5341 = sphi %s5323, %s5412
              $region91: #{tpu_custom_call.1} parent=87 // loop_header_branch
                %5338 = sbr.rel (%p5335) target = $region95
              $region92: #{tpu_custom_call.1} parent=87 // loop_body
                %v5342 = vld [vmem:[%s5340] sm:$0xff]
                %5343 = vst [vmem:[%s5341] sm:$0xff] %v5342
                %v5344 = vld [vmem:[%s5340 + $0x8] sm:$0xff]
                %5345 = vst [vmem:[%s5341 + $0x8] sm:$0xff] %v5344
                %v5346 = vld [vmem:[%s5340 + $0x10] sm:$0xff]
                %5347 = vst [vmem:[%s5341 + $0x10] sm:$0xff] %v5346
                %v5348 = vld [vmem:[%s5340 + $0x18] sm:$0xff]
                %5349 = vst [vmem:[%s5341 + $0x18] sm:$0xff] %v5348
                %v5350 = vld [vmem:[%s5340 + $0x20] sm:$0xff]
                %5351 = vst [vmem:[%s5341 + $0x20] sm:$0xff] %v5350
                %v5352 = vld [vmem:[%s5340 + $0x28] sm:$0xff]
                %5353 = vst [vmem:[%s5341 + $0x28] sm:$0xff] %v5352
                %v5354 = vld [vmem:[%s5340 + $0x30] sm:$0xff]
                %5355 = vst [vmem:[%s5341 + $0x30] sm:$0xff] %v5354
                %v5356 = vld [vmem:[%s5340 + $0x38] sm:$0xff]
                %5357 = vst [vmem:[%s5341 + $0x38] sm:$0xff] %v5356
                %v5358 = vld [vmem:[%s5340 + $0x40] sm:$0xff]
                %5359 = vst [vmem:[%s5341 + $0x40] sm:$0xff] %v5358
                %v5360 = vld [vmem:[%s5340 + $0x48] sm:$0xff]
                %5361 = vst [vmem:[%s5341 + $0x48] sm:$0xff] %v5360
                %v5362 = vld [vmem:[%s5340 + $0x50] sm:$0xff]
                %5363 = vst [vmem:[%s5341 + $0x50] sm:$0xff] %v5362
                %v5364 = vld [vmem:[%s5340 + $0x58] sm:$0xff]
                %5365 = vst [vmem:[%s5341 + $0x58] sm:$0xff] %v5364
                %v5366 = vld [vmem:[%s5340 + $0x60] sm:$0xff]
                %5367 = vst [vmem:[%s5341 + $0x60] sm:$0xff] %v5366
                %v5368 = vld [vmem:[%s5340 + $0x68] sm:$0xff]
                %5369 = vst [vmem:[%s5341 + $0x68] sm:$0xff] %v5368
                %v5370 = vld [vmem:[%s5340 + $0x70] sm:$0xff]
                %5371 = vst [vmem:[%s5341 + $0x70] sm:$0xff] %v5370
                %v5372 = vld [vmem:[%s5340 + $0x78] sm:$0xff]
                %5373 = vst [vmem:[%s5341 + $0x78] sm:$0xff] %v5372
                %v5374 = vld [vmem:[%s5340 + $0x80] sm:$0xff]
                %5375 = vst [vmem:[%s5341 + $0x80] sm:$0xff] %v5374
                %v5376 = vld [vmem:[%s5340 + $0x88] sm:$0xff]
                %5377 = vst [vmem:[%s5341 + $0x88] sm:$0xff] %v5376
                %v5378 = vld [vmem:[%s5340 + $0x90] sm:$0xff]
                %5379 = vst [vmem:[%s5341 + $0x90] sm:$0xff] %v5378
                %v5380 = vld [vmem:[%s5340 + $0x98] sm:$0xff]
                %5381 = vst [vmem:[%s5341 + $0x98] sm:$0xff] %v5380
                %v5382 = vld [vmem:[%s5340 + $0xa0] sm:$0xff]
                %5383 = vst [vmem:[%s5341 + $0xa0] sm:$0xff] %v5382
                %v5384 = vld [vmem:[%s5340 + $0xa8] sm:$0xff]
                %5385 = vst [vmem:[%s5341 + $0xa8] sm:$0xff] %v5384
                %v5386 = vld [vmem:[%s5340 + $0xb0] sm:$0xff]
                %5387 = vst [vmem:[%s5341 + $0xb0] sm:$0xff] %v5386
                %v5388 = vld [vmem:[%s5340 + $0xb8] sm:$0xff]
                %5389 = vst [vmem:[%s5341 + $0xb8] sm:$0xff] %v5388
                %v5390 = vld [vmem:[%s5340 + $0xc0] sm:$0xff]
                %5391 = vst [vmem:[%s5341 + $0xc0] sm:$0xff] %v5390
                %v5392 = vld [vmem:[%s5340 + $0xc8] sm:$0xff]
                %5393 = vst [vmem:[%s5341 + $0xc8] sm:$0xff] %v5392
                %v5394 = vld [vmem:[%s5340 + $0xd0] sm:$0xff]
                %5395 = vst [vmem:[%s5341 + $0xd0] sm:$0xff] %v5394
                %v5396 = vld [vmem:[%s5340 + $0xd8] sm:$0xff]
                %5397 = vst [vmem:[%s5341 + $0xd8] sm:$0xff] %v5396
                %v5398 = vld [vmem:[%s5340 + $0xe0] sm:$0xff]
                %5399 = vst [vmem:[%s5341 + $0xe0] sm:$0xff] %v5398
                %v5400 = vld [vmem:[%s5340 + $0xe8] sm:$0xff]
                %5401 = vst [vmem:[%s5341 + $0xe8] sm:$0xff] %v5400
                %v5402 = vld [vmem:[%s5340 + $0xf0] sm:$0xff]
                %5403 = vst [vmem:[%s5341 + $0xf0] sm:$0xff] %v5402
                %v5404 = vld [vmem:[%s5340 + $0xf8] sm:$0xff]
                %5405 = vst [vmem:[%s5341 + $0xf8] sm:$0xff] %v5404
                %s5406 = sadd.s32 1, %s5339
                %p5407 = scmp.ge.s32.totalorder %s5406, %s5332
                %s5408 = scalar_select %p5407, 0, %s5406
                %s5409 = smul.u32 %s5408, 256
                %s5410 = smul.u32 %s5408, 256
                %s5411 = scalar_lea.vmem %s5312, %s5409 [#allocation13]
                %s5412 = scalar_lea.vmem %s5323, %s5410
              $region93: #{tpu_custom_call.1} parent=87 // loop_footer
                %s5336 = sadd.s32 %s5334, 1
              $region94: #{tpu_custom_call.1} parent=87 // loop_footer_branch
                %5333 = sbr.rel target = $region90
              $region95: #{tpu_custom_call.1} parent=87 // loop_exit
                _
              %s5413 = sshrl.u32 %s5319, 5
              %s5414 = sand.u32 %s5319, 31
              %s5415 = smul.u32 %s5413, 32
              %s5416 = smul.u32 8, %s5415
              %s5417 = scalar_lea.vmem %s5312, %s5416 [#allocation13]
              %s5418 = smul.u32 8, %s5415
              %s5419 = scalar_lea.vmem %s5323, %s5418
              // While loop
              $region96: #{tpu_custom_call.1} parent=87 // loop_pre_header
                _
              $region97: #{tpu_custom_call.1} parent=87 // loop_header
                %s5421 = sphi 0, %s5423
                %p5422 = scmp.ge.s32.totalorder %s5421, %s5414
                %s5426 = sphi 0, %s5433
                %s5427 = sphi %s5417, %s5436
                %s5428 = sphi %s5419, %s5437
              $region98: #{tpu_custom_call.1} parent=87 // loop_header_branch
                %5425 = sbr.rel (%p5422) target = $region102
              $region99: #{tpu_custom_call.1} parent=87 // loop_body
                %v5429 = vld [vmem:[%s5427] sm:$0xff]
                %5430 = vst [vmem:[%s5428] sm:$0xff] %v5429
                %s5431 = sadd.s32 1, %s5426
                %p5432 = scmp.ge.s32.totalorder %s5431, %s5414
                %s5433 = scalar_select %p5432, 0, %s5431
                %s5434 = smul.u32 %s5433, 8
                %s5435 = smul.u32 %s5433, 8
                %s5436 = scalar_lea.vmem %s5417, %s5434 [#allocation13]
                %s5437 = scalar_lea.vmem %s5419, %s5435
              $region100: #{tpu_custom_call.1} parent=87 // loop_footer
                %s5423 = sadd.s32 %s5421, 1
              $region101: #{tpu_custom_call.1} parent=87 // loop_footer_branch
                %5420 = sbr.rel target = $region97
              $region102: #{tpu_custom_call.1} parent=87 // loop_exit
                _
            $region88: #{tpu_custom_call.1} parent=79 // pred_fallthru
              _
          $region80: #{tpu_custom_call.1} parent=75 // pred_fallthru
            _
          %5548 = vnop
        $region76: #{tpu_custom_call.1} parent=47 // pred_fallthru
          _
      $region48: #{tpu_custom_call.1} parent=5 // pred_fallthru
        _
      %p5549 = scmp.le.s32.totalorder 2, %s21
      // Predicated region
      $region125: #{tpu_custom_call.1} parent=5 // pred_check
        %p5550 = pneg %p5549
      $region126: #{tpu_custom_call.1} parent=5 // pred_check_branch
        %5552 = sbr.rel (%p5550) target = $region128
      $region127: #{tpu_custom_call.1} parent=5 // pred_region
        %s5553 = ssub.s32 %s21, 2
        // Predicated region
        $region129: #{tpu_custom_call.1} parent=127 // pred_check
          %p5554 = pneg %p202
        $region130: #{tpu_custom_call.1} parent=127 // pred_check_branch
          %5556 = sbr.rel (%p5554) target = $region132
        $region131: #{tpu_custom_call.1} parent=127 // pred_region
          %s5557 = sand.u32 %s187, 1
          %s5558 = sand.u32 %s187, 1
          %s5559 = smul.addr %s5558, 256
          %s5560 = scalar_lea.vmem [#allocation13], %s5559
        $region132: #{tpu_custom_call.1} parent=127 // pred_fallthru
          _
      $region128: #{tpu_custom_call.1} parent=5 // pred_fallthru
        _
    $region6: #{tpu_custom_call.1} parent=1 // loop_footer
      %s25 = sadd.s32 1, %s21
    $region7: #{tpu_custom_call.1} parent=1 // loop_footer_branch
      %20 = sbr.rel target = $region3
    $region8: #{tpu_custom_call.1} parent=1 // loop_exit
      _
    %5561 = vsyncpa [#allocation4], 1
    %s5562 = scalar_lea.sflag [#allocation4], 1
    %5563 = vsyncpa %s5562, 1
    %5564 = vsyncpa [#allocation6], 1
    %5565 = vsyncpa [#allocation9], 1
    %5566 = vsyncpa [#allocation12], 1

</llo_original>
